<compile_context>
chip_gen: v6e
topology: v6e:2x2x1
jax: 0.10.0
libtpu: 0.0.40
codegen_flags: <defaults>
</compile_context>

<pallas_src>
import functools
import math

import jax
import jax.numpy as jnp
from jax.experimental import pallas as pl
from jax.experimental.pallas import tpu as pltpu

LN_EPS = 1e-5  # PyTorch nn.LayerNorm default


# ---------------------------------------------------------------------------
# In-kernel math helpers (traced inside the Pallas body)
# ---------------------------------------------------------------------------
def _layer_norm(x, w, b):
    mu = jnp.mean(x, axis=-1, keepdims=True)
    xc = x - mu
    var = jnp.mean(xc * xc, axis=-1, keepdims=True)
    return xc * jax.lax.rsqrt(var + LN_EPS) * w + b


def _erf(x):
    # TODO(synk): exact erf lowering is not guaranteed on Mosaic; A&S 7.1.26
    # rational approximation (~1.5e-7 abs error) keeps GELU ~= PyTorch nn.GELU().
    p = 0.3275911
    a1, a2, a3, a4, a5 = 0.254829592, -0.284496736, 1.421413741, -1.453152027, 1.061405429
    ax = jnp.abs(x)
    t = pl.reciprocal(1.0 + p * ax, approx=True)   # EUP reciprocal, keeps VALU free
    poly = ((((a5 * t + a4) * t + a3) * t + a2) * t + a1) * t
    y = 1.0 - poly * jnp.exp(-ax * ax)
    return jnp.where(x >= 0, y, -y)


def _gelu(x):
    return 0.5 * x * (1.0 + _erf(x * (1.0 / math.sqrt(2.0))))


# ---------------------------------------------------------------------------
# Kernel body: one grid step = (TB batch elements, one layer)
# ---------------------------------------------------------------------------
def _resampler_kernel(x_ref, lat0_ref, pos_ref, fcw_ref, fcb_ref,
                      nmw_ref, nmb_ref, nlw_ref, nlb_ref,
                      wq_ref, wkv_ref, wo_ref,
                      flnw_ref, flnb_ref, fw1_ref, fw2_ref,
                      fnw_ref, fnb_ref, out_ref,
                      xp_ref, lat_ref, kvin_ref, attn_ref,
                      *, nheads, d_head):
    l = pl.program_id(1)
    TB, S, _ = x_ref.shape
    N = lat0_ref.shape[0]
    M = S + N
    hdh = nheads * d_head
    bf16 = jnp.bfloat16

    # ---------- once per batch tile: x = fc(x) + pos ; broadcast latents ----------
    @pl.when(l == 0)
    def _init():
        xall = x_ref[...].reshape(TB * S, -1)
        xp = jnp.dot(xall.astype(bf16), fcw_ref[...],
                     preferred_element_type=jnp.float32) + fcb_ref[...]
        pos = pos_ref[...]
        lat0 = lat0_ref[...]
        for b in range(TB):
            xp_ref[b * S:(b + 1) * S, :] = xp[b * S:(b + 1) * S, :] + pos
            lat_ref[b * N:(b + 1) * N, :] = lat0

    xp = xp_ref[...]          # (TB*S, D) f32
    lat = lat_ref[...]        # (TB*N, D) f32

    # ------------------------------ PerceiverAttention ------------------------------
    xn = _layer_norm(xp, nmw_ref[0], nmb_ref[0])     # norm_medias
    ln = _layer_norm(lat, nlw_ref[0], nlb_ref[0])    # norm_latents

    # kv input = [x_norm ; latents_norm] per batch element, staged in a VMEM
    # scratch instead of a per-layer concatenate.
    for b in range(TB):
        kvin_ref[b * M:b * M + S, :] = xn[b * S:(b + 1) * S, :].astype(bf16)
        kvin_ref[b * M + S:(b + 1) * M, :] = ln[b * N:(b + 1) * N, :].astype(bf16)

    # projections batched over all TB rows (wq is pre-scaled by sqrt(d_head))
    q = jnp.dot(ln.astype(bf16), wq_ref[0],
                preferred_element_type=jnp.float32).astype(bf16)      # (TB*N, H*dh)
    kv = jnp.dot(kvin_ref[...], wkv_ref[0],
                 preferred_element_type=jnp.float32).astype(bf16)     # (TB*M, 2*H*dh)
    k = kv[:, :hdh]
    v = kv[:, hdh:]

    # per (batch element, head) attention; head outputs go straight into the
    # (TB*N, H*dh) scratch slice (no lane-axis concatenation of heads).
    for b in range(TB):
        qb = q[b * N:(b + 1) * N, :]
        kb = k[b * M:(b + 1) * M, :]
        vb = v[b * M:(b + 1) * M, :]
        for h in range(nheads):
            sl = slice(h * d_head, (h + 1) * d_head)
            sim = jax.lax.dot_general(qb[:, sl], kb[:, sl],
                                      (((1,), (1,)), ((), ())),
                                      preferred_element_type=jnp.float32)   # (N, S+N)
            sim = sim - jnp.max(sim, axis=-1, keepdims=True)
            e = jnp.exp(sim)
            att = e * pl.reciprocal(jnp.sum(e, axis=-1, keepdims=True), approx=True)
            oh = jnp.dot(att.astype(bf16), vb[:, sl],
                         preferred_element_type=jnp.float32)                # (N, dh)
            attn_ref[b * N:(b + 1) * N, sl] = oh.astype(bf16)

    lat = jnp.dot(attn_ref[...], wo_ref[0],
                  preferred_element_type=jnp.float32) + lat

    # ---------------------------------- FeedForward ----------------------------------
    f = _layer_norm(lat, flnw_ref[0], flnb_ref[0])
    h1 = _gelu(jnp.dot(f.astype(bf16), fw1_ref[0], preferred_element_type=jnp.float32))
    lat = jnp.dot(h1.astype(bf16), fw2_ref[0], preferred_element_type=jnp.float32) + lat

    lat_ref[...] = lat

    # --------------------------------- final LayerNorm --------------------------------
    @pl.when(l == pl.num_programs(1) - 1)
    def _final():
        out = _layer_norm(lat, fnw_ref[...], fnb_ref[...])
        for b in range(TB):
            out_ref[b] = out[b * N:(b + 1) * N, :]


# ---------------------------------------------------------------------------
# Wrapper
# ---------------------------------------------------------------------------
def perceiver_resampler(x, params, *, num_layers, nheads, d_head, batch_tile=2):
    B, S, d_in = x.shape
    N, D = params["latents"].shape
    hdh = nheads * d_head
    ff_hidden = params["ff_w1"].shape[-1]
    TB = batch_tile
    assert B % TB == 0, "batch must be divisible by batch_tile"

    # Fold the q scale (q / d_head**-0.5  ==  q * sqrt(d_head)) into to_q once,
    # outside the kernel (removes a per-layer full-tile VPU multiply).
    wq_scaled = (params["wq"].astype(jnp.float32) * (d_head ** 0.5)
                 ).astype(params["wq"].dtype)

    def const(shape):
        return pl.BlockSpec(shape, lambda b, l: (0,) * len(shape))

    def per_layer(shape):
        return pl.BlockSpec((1,) + shape, lambda b, l: (l,) + (0,) * len(shape))

    in_specs = [
        pl.BlockSpec((TB, S, d_in), lambda b, l: (b, 0, 0)),   # x
        const((N, D)),                                         # latents
        const((S, D)),                                         # positional encoding
        const((d_in, D)), const((1, D)),                       # fc weight / bias
        per_layer((1, D)), per_layer((1, D)),                  # norm_medias w, b
        per_layer((1, D)), per_layer((1, D)),                  # norm_latents w, b
        per_layer((D, hdh)),                                   # to_q (pre-scaled)
        per_layer((D, 2 * hdh)),                               # to_kv
        per_layer((hdh, D)),                                   # to_out
        per_layer((1, D)), per_layer((1, D)),                  # ffn LayerNorm w, b
        per_layer((D, ff_hidden)),                             # ffn W1
        per_layer((ff_hidden, D)),                             # ffn W2
        const((1, D)), const((1, D)),                          # final LayerNorm w, b
    ]

    scratch_shapes = [
        pltpu.VMEM((TB * S, D), jnp.float32),           # fc(x)+pos, reused every layer
        pltpu.VMEM((TB * N, D), jnp.float32),           # latent carry across layers
        pltpu.VMEM((TB * (S + N), D), jnp.bfloat16),    # kv input (x_norm ; lat_norm)
        pltpu.VMEM((TB * N, hdh), jnp.bfloat16),        # per-head attention outputs
    ]

    kernel = functools.partial(_resampler_kernel, nheads=nheads, d_head=d_head)

    return pl.pallas_call(
        kernel,
        out_shape=jax.ShapeDtypeStruct((B, N, D), jnp.float32),
        grid=(B // TB, num_layers),
        in_specs=in_specs,
        out_specs=pl.BlockSpec((TB, N, D), lambda b, l: (b, 0, 0)),
        scratch_shapes=scratch_shapes,
        compiler_params=pltpu.CompilerParams(
            dimension_semantics=("parallel", "arbitrary"),
            # Explicit scoped-VMEM budget (v5e default is only 16 MiB); stays well
            # below v7x's 64 MiB physical VMEM. Per-layer weight blocks are the only
            # large tiles and they *want* double-buffering to hide next-layer DMA.
            vmem_limit_bytes=48 * 1024 * 1024),
    )(x, params["latents"], params["pos"], params["fc_w"], params["fc_b"],
      params["nm_w"], params["nm_b"], params["nl_w"], params["nl_b"],
      wq_scaled, params["wkv"], params["wo"],
      params["ffln_w"], params["ffln_b"], params["ff_w1"], params["ff_w2"],
      params["fn_w"], params["fn_b"])


# ---------------------------------------------------------------------------
# Pure-JAX f32 reference (mirrors the PyTorch module; weights upcast from bf16)
# ---------------------------------------------------------------------------
def reference(x, params, *, num_layers, nheads, d_head):
    hdh = nheads * d_head
    f32 = lambda a: a.astype(jnp.float32)

    def ln_(t, w, b):
        mu = jnp.mean(t, axis=-1, keepdims=True)
        tc = t - mu
        var = jnp.mean(tc * tc, axis=-1, keepdims=True)
        return tc * jax.lax.rsqrt(var + LN_EPS) * w + b

    x = x @ f32(params["fc_w"]) + params["fc_b"]
    x = x + params["pos"][None]
    B = x.shape[0]
    lat = jnp.broadcast_to(params["latents"][None], (B,) + params["latents"].shape)

    for l in range(num_layers):
        xn = ln_(x, params["nm_w"][l], params["nm_b"][l])
        lnm = ln_(lat, params["nl_w"][l], params["nl_b"][l])
        q = (lnm @ f32(params["wq"][l])) * (d_head ** 0.5)
        kv_in = jnp.concatenate([xn, lnm], axis=1)
        kv = kv_in @ f32(params["wkv"][l])
        k, v = kv[..., :hdh], kv[..., hdh:]
        Nl, Mk = q.shape[1], kv.shape[1]
        qh = q.reshape(B, Nl, nheads, d_head).transpose(0, 2, 1, 3)
        kh = k.reshape(B, Mk, nheads, d_head).transpose(0, 2, 1, 3)
        vh = v.reshape(B, Mk, nheads, d_head).transpose(0, 2, 1, 3)
        sim = jnp.einsum("bhid,bhjd->bhij", qh, kh)
        sim = sim - sim.max(-1, keepdims=True)
        att = jax.nn.softmax(sim, axis=-1)
        o = jnp.einsum("bhij,bhjd->bhid", att, vh)
        o = o.transpose(0, 2, 1, 3).reshape(B, Nl, hdh)
        lat = o @ f32(params["wo"][l]) + lat
        f = ln_(lat, params["ffln_w"][l], params["ffln_b"][l])
        h1 = jax.nn.gelu(f @ f32(params["ff_w1"][l]), approximate=False)
        lat = h1 @ f32(params["ff_w2"][l]) + lat

    return ln_(lat, params["fn_w"], params["fn_b"])


# ---------------------------------------------------------------------------
# Deterministic parameter construction + run
# ---------------------------------------------------------------------------
def make_params(key, *, d_input, d_model, num_latents, num_layers, d_head,
                nheads, ff_mult, seq_len, max_len=64):
    hdh = nheads * d_head
    ff_hidden = int(d_model * ff_mult)
    ks = jax.random.split(key, 8)
    # matmul weights stored bf16 (half VMEM/HBM, native MXU input dtype)
    wgt = lambda k, shape, s=0.05: (s * jax.random.normal(k, shape)).astype(jnp.bfloat16)

    # sinusoidal positional encoding (PositionalEncoding, max_len=64)
    position = jnp.arange(max_len, dtype=jnp.float32)[:, None]
    div_term = jnp.exp(jnp.arange(0, d_model, 2, dtype=jnp.float32)
                       * (-math.log(10000.0) / d_model))
    enc = jnp.zeros((max_len, d_model), jnp.float32)
    enc = enc.at[:, 0::2].set(jnp.sin(position * div_term))
    enc = enc.at[:, 1::2].set(jnp.cos(position * div_term))

    return dict(
        latents=jax.random.normal(ks[0], (num_latents, d_model), jnp.float32),
        pos=enc[:seq_len],
        fc_w=wgt(ks[1], (d_input, d_model)),
        fc_b=(0.05 * jax.random.normal(ks[2], (1, d_model))).astype(jnp.float32),
        nm_w=jnp.ones((num_layers, 1, d_model), jnp.float32),
        nm_b=jnp.zeros((num_layers, 1, d_model), jnp.float32),
        nl_w=jnp.ones((num_layers, 1, d_model), jnp.float32),
        nl_b=jnp.zeros((num_layers, 1, d_model), jnp.float32),
        wq=wgt(ks[3], (num_layers, d_model, hdh)),
        wkv=wgt(ks[4], (num_layers, d_model, 2 * hdh)),
        wo=wgt(ks[5], (num_layers, hdh, d_model)),
        ffln_w=jnp.ones((num_layers, 1, d_model), jnp.float32),
        ffln_b=jnp.zeros((num_layers, 1, d_model), jnp.float32),
        ff_w1=wgt(ks[6], (num_layers, d_model, ff_hidden)),
        ff_w2=wgt(ks[7], (num_layers, ff_hidden, d_model)),
        fn_w=jnp.ones((1, d_model), jnp.float32),
        fn_b=jnp.zeros((1, d_model), jnp.float32),
    )


if __name__ == "__main__":
    B, S, d_input = 4, 8, 16
    d_model, num_latents = 32, 8
    num_layers, d_head, nheads, ff_mult = 2, 16, 4, 2
    batch_tile = 2

    key = jax.random.PRNGKey(0)
    pkey, xkey = jax.random.split(key)
    params = make_params(pkey, d_input=d_input, d_model=d_model,
                         num_latents=num_latents, num_layers=num_layers,
                         d_head=d_head, nheads=nheads, ff_mult=ff_mult,
                         seq_len=S)
    x = jax.random.normal(xkey, (B, S, d_input), jnp.float32)

    out = perceiver_resampler(x, params, num_layers=num_layers, nheads=nheads,
                              d_head=d_head, batch_tile=batch_tile)
    out = jax.block_until_ready(out)
    assert out.shape == (B, num_latents, d_model)

    ref = jax.block_until_ready(
        reference(x, params, num_layers=num_layers, nheads=nheads, d_head=d_head))
    max_err = float(jnp.max(jnp.abs(out - ref)))
    # kernel uses bf16 matmul inputs / approx EUP reciprocal vs f32 reference math
    assert max_err < 3e-2, f"mismatch vs reference: {max_err}"

    print("KERNEL_OK")
</pallas_src>

<mosaic_0001>
module attributes {stable_mosaic.version = 11 : i64} {
  func.func @_resampler_kernel(%arg0: i32, %arg1: i32, %arg2: memref<2x8x16xf32, #tpu.memory_space<vmem>>, %arg3: memref<8x32xf32, #tpu.memory_space<vmem>>, %arg4: memref<8x32xf32, #tpu.memory_space<vmem>>, %arg5: memref<16x32xbf16, #tpu.memory_space<vmem>>, %arg6: memref<1x32xf32, #tpu.memory_space<vmem>>, %arg7: memref<1x1x32xf32, #tpu.memory_space<vmem>>, %arg8: memref<1x1x32xf32, #tpu.memory_space<vmem>>, %arg9: memref<1x1x32xf32, #tpu.memory_space<vmem>>, %arg10: memref<1x1x32xf32, #tpu.memory_space<vmem>>, %arg11: memref<1x32x64xbf16, #tpu.memory_space<vmem>>, %arg12: memref<1x32x128xbf16, #tpu.memory_space<vmem>>, %arg13: memref<1x64x32xbf16, #tpu.memory_space<vmem>>, %arg14: memref<1x1x32xf32, #tpu.memory_space<vmem>>, %arg15: memref<1x1x32xf32, #tpu.memory_space<vmem>>, %arg16: memref<1x32x64xbf16, #tpu.memory_space<vmem>>, %arg17: memref<1x64x32xbf16, #tpu.memory_space<vmem>>, %arg18: memref<1x32xf32, #tpu.memory_space<vmem>>, %arg19: memref<1x32xf32, #tpu.memory_space<vmem>>, %arg20: memref<2x8x32xf32, #tpu.memory_space<vmem>>, %arg21: memref<16x32xf32, #tpu.memory_space<vmem>>, %arg22: memref<16x32xf32, #tpu.memory_space<vmem>>, %arg23: memref<32x32xbf16, #tpu.memory_space<vmem>>, %arg24: memref<16x64xbf16, #tpu.memory_space<vmem>>) attributes {dimension_semantics = [#tpu.dimension_semantics<parallel>, #tpu.dimension_semantics<arbitrary>], iteration_bounds = array<i64: 2, 2>, scalar_prefetch = 0 : i64, scratch_operands = 4 : i64, tpu.core_type = #tpu.core_type<tc>, window_params = [{transform_indices = @transform_0, window_bounds = array<i64: 2, 8, 16>}, {pipeline_mode = #tpu.pipeline_mode<synchronous>, transform_indices = @transform_1, window_bounds = array<i64: 8, 32>}, {pipeline_mode = #tpu.pipeline_mode<synchronous>, transform_indices = @transform_2, window_bounds = array<i64: 8, 32>}, {pipeline_mode = #tpu.pipeline_mode<synchronous>, transform_indices = @transform_3, window_bounds = array<i64: 16, 32>}, {pipeline_mode = #tpu.pipeline_mode<synchronous>, transform_indices = @transform_4, window_bounds = array<i64: 1, 32>}, {transform_indices = @transform_5, window_bounds = array<i64: 1, 1, 32>}, {transform_indices = @transform_6, window_bounds = array<i64: 1, 1, 32>}, {transform_indices = @transform_7, window_bounds = array<i64: 1, 1, 32>}, {transform_indices = @transform_8, window_bounds = array<i64: 1, 1, 32>}, {transform_indices = @transform_9, window_bounds = array<i64: 1, 32, 64>}, {transform_indices = @transform_10, window_bounds = array<i64: 1, 32, 128>}, {transform_indices = @transform_11, window_bounds = array<i64: 1, 64, 32>}, {transform_indices = @transform_12, window_bounds = array<i64: 1, 1, 32>}, {transform_indices = @transform_13, window_bounds = array<i64: 1, 1, 32>}, {transform_indices = @transform_14, window_bounds = array<i64: 1, 32, 64>}, {transform_indices = @transform_15, window_bounds = array<i64: 1, 64, 32>}, {pipeline_mode = #tpu.pipeline_mode<synchronous>, transform_indices = @transform_16, window_bounds = array<i64: 1, 32>}, {pipeline_mode = #tpu.pipeline_mode<synchronous>, transform_indices = @transform_17, window_bounds = array<i64: 1, 32>}, {transform_indices = @transform_18, window_bounds = array<i64: 2, 8, 32>}]} {
    %c0_i32 = arith.constant 0 : i32
    %0 = arith.cmpi eq, %arg1, %c0_i32 : i32
    %1 = arith.extui %0 : i1 to i32
    %c0_i32_0 = arith.constant 0 : i32
    %2 = arith.cmpi ne, %1, %c0_i32_0 : i32
    scf.if %2 {
      %c0_128 = arith.constant 0 : index
      %c0_129 = arith.constant 0 : index
      %c0_130 = arith.constant 0 : index
      %308 = vector.load %arg2[%c0_128, %c0_129, %c0_130] : memref<2x8x16xf32, #tpu.memory_space<vmem>>, vector<2x8x16xf32>
      %309 = vector.shape_cast %308 : vector<2x8x16xf32> to vector<16x16xf32>
      %310 = arith.truncf %309 : vector<16x16xf32> to vector<16x16xbf16>
      %c0_131 = arith.constant 0 : index
      %c0_132 = arith.constant 0 : index
      %311 = vector.load %arg5[%c0_131, %c0_132] : memref<16x32xbf16, #tpu.memory_space<vmem>>, vector<16x32xbf16>
      %cst_133 = arith.constant dense<0.000000e+00> : vector<16x32xf32>
      %312 = tpu.matmul %310, %311, %cst_133 {dimension_numbers = #tpu.dot_dimension_numbers<[1], [0], [0], [1], [0, 0, 1, 1], [], []>} : vector<16x16xbf16>, vector<16x32xbf16>, vector<16x32xf32> -> vector<16x32xf32>
      %c0_134 = arith.constant 0 : index
      %c0_135 = arith.constant 0 : index
      %313 = vector.load %arg6[%c0_134, %c0_135] : memref<1x32xf32, #tpu.memory_space<vmem>>, vector<1x32xf32>
      %314 = vector.broadcast %313 : vector<1x32xf32> to vector<16x32xf32>
      %315 = arith.addf %312, %314 : vector<16x32xf32>
      %c0_136 = arith.constant 0 : index
      %c0_137 = arith.constant 0 : index
      %316 = vector.load %arg4[%c0_136, %c0_137] : memref<8x32xf32, #tpu.memory_space<vmem>>, vector<8x32xf32>
      %c0_138 = arith.constant 0 : index
      %c0_139 = arith.constant 0 : index
      %317 = vector.load %arg3[%c0_138, %c0_139] : memref<8x32xf32, #tpu.memory_space<vmem>>, vector<8x32xf32>
      %318 = vector.extract_strided_slice %315 {offsets = [0, 0], sizes = [8, 32], strides = [1, 1]} : vector<16x32xf32> to vector<8x32xf32>
      %319 = arith.addf %318, %316 : vector<8x32xf32>
      %c0_140 = arith.constant 0 : index
      %c0_141 = arith.constant 0 : index
      %320 = vector.load %arg21[%c0_140, %c0_141] : memref<16x32xf32, #tpu.memory_space<vmem>>, vector<8x32xf32>
      tpu.vector_store %arg21[%c0_140, %c0_141], %319 {strides = array<i32>} : memref<16x32xf32, #tpu.memory_space<vmem>>, vector<8x32xf32>,
      %c0_142 = arith.constant 0 : index
      %c0_143 = arith.constant 0 : index
      %321 = vector.load %arg22[%c0_142, %c0_143] : memref<16x32xf32, #tpu.memory_space<vmem>>, vector<8x32xf32>
      tpu.vector_store %arg22[%c0_142, %c0_143], %317 {strides = array<i32>} : memref<16x32xf32, #tpu.memory_space<vmem>>, vector<8x32xf32>,
      %322 = vector.extract_strided_slice %315 {offsets = [8, 0], sizes = [8, 32], strides = [1, 1]} : vector<16x32xf32> to vector<8x32xf32>
      %323 = arith.addf %322, %316 : vector<8x32xf32>
      %c8_144 = arith.constant 8 : index
      %c0_145 = arith.constant 0 : index
      %324 = vector.load %arg21[%c8_144, %c0_145] : memref<16x32xf32, #tpu.memory_space<vmem>>, vector<8x32xf32>
      tpu.vector_store %arg21[%c8_144, %c0_145], %323 {strides = array<i32>} : memref<16x32xf32, #tpu.memory_space<vmem>>, vector<8x32xf32>,
      %c8_146 = arith.constant 8 : index
      %c0_147 = arith.constant 0 : index
      %325 = vector.load %arg22[%c8_146, %c0_147] : memref<16x32xf32, #tpu.memory_space<vmem>>, vector<8x32xf32>
      tpu.vector_store %arg22[%c8_146, %c0_147], %317 {strides = array<i32>} : memref<16x32xf32, #tpu.memory_space<vmem>>, vector<8x32xf32>,
    } else {
    }
    %c0 = arith.constant 0 : index
    %c0_1 = arith.constant 0 : index
    %3 = vector.load %arg21[%c0, %c0_1] : memref<16x32xf32, #tpu.memory_space<vmem>>, vector<16x32xf32>
    %c0_2 = arith.constant 0 : index
    %c0_3 = arith.constant 0 : index
    %4 = vector.load %arg22[%c0_2, %c0_3] : memref<16x32xf32, #tpu.memory_space<vmem>>, vector<16x32xf32>
    %c0_4 = arith.constant 0 : index
    %c0_5 = arith.constant 0 : index
    %c0_6 = arith.constant 0 : index
    %5 = vector.load %arg7[%c0_4, %c0_5, %c0_6] : memref<1x1x32xf32, #tpu.memory_space<vmem>>, vector<1x1x32xf32>
    %6 = vector.shape_cast %5 : vector<1x1x32xf32> to vector<1x32xf32>
    %c0_7 = arith.constant 0 : index
    %c0_8 = arith.constant 0 : index
    %c0_9 = arith.constant 0 : index
    %7 = vector.load %arg8[%c0_7, %c0_8, %c0_9] : memref<1x1x32xf32, #tpu.memory_space<vmem>>, vector<1x1x32xf32>
    %8 = vector.shape_cast %7 : vector<1x1x32xf32> to vector<1x32xf32>
    %cst = arith.constant dense<0.000000e+00> : vector<16xf32>
    %9 = vector.multi_reduction <add>, %3, %cst [1] : vector<16x32xf32> to vector<16xf32>
    %10 = vector.shape_cast %9 : vector<16xf32> to vector<16x1xf32>
    %cst_10 = arith.constant 3.200000e+01 : f32
    %11 = vector.broadcast %cst_10 : f32 to vector<16x1xf32>
    %12 = arith.divf %10, %11 : vector<16x1xf32>
    %13 = vector.broadcast %12 : vector<16x1xf32> to vector<16x32xf32>
    %14 = arith.subf %3, %13 : vector<16x32xf32>
    %15 = arith.mulf %14, %14 : vector<16x32xf32>
    %cst_11 = arith.constant dense<0.000000e+00> : vector<16xf32>
    %16 = vector.multi_reduction <add>, %15, %cst_11 [1] : vector<16x32xf32> to vector<16xf32>
    %17 = vector.shape_cast %16 : vector<16xf32> to vector<16x1xf32>
    %cst_12 = arith.constant 3.200000e+01 : f32
    %18 = vector.broadcast %cst_12 : f32 to vector<16x1xf32>
    %19 = arith.divf %17, %18 : vector<16x1xf32>
    %cst_13 = arith.constant 9.99999974E-6 : f32
    %20 = vector.broadcast %cst_13 : f32 to vector<16x1xf32>
    %21 = arith.addf %19, %20 : vector<16x1xf32>
    %22 = math.rsqrt %21 : vector<16x1xf32>
    %23 = vector.broadcast %22 : vector<16x1xf32> to vector<16x32xf32>
    %24 = arith.mulf %14, %23 : vector<16x32xf32>
    %25 = vector.broadcast %6 : vector<1x32xf32> to vector<16x32xf32>
    %26 = arith.mulf %24, %25 : vector<16x32xf32>
    %27 = vector.broadcast %8 : vector<1x32xf32> to vector<16x32xf32>
    %28 = arith.addf %26, %27 : vector<16x32xf32>
    %c0_14 = arith.constant 0 : index
    %c0_15 = arith.constant 0 : index
    %c0_16 = arith.constant 0 : index
    %29 = vector.load %arg9[%c0_14, %c0_15, %c0_16] : memref<1x1x32xf32, #tpu.memory_space<vmem>>, vector<1x1x32xf32>
    %30 = vector.shape_cast %29 : vector<1x1x32xf32> to vector<1x32xf32>
    %c0_17 = arith.constant 0 : index
    %c0_18 = arith.constant 0 : index
    %c0_19 = arith.constant 0 : index
    %31 = vector.load %arg10[%c0_17, %c0_18, %c0_19] : memref<1x1x32xf32, #tpu.memory_space<vmem>>, vector<1x1x32xf32>
    %32 = vector.shape_cast %31 : vector<1x1x32xf32> to vector<1x32xf32>
    %cst_20 = arith.constant dense<0.000000e+00> : vector<16xf32>
    %33 = vector.multi_reduction <add>, %4, %cst_20 [1] : vector<16x32xf32> to vector<16xf32>
    %34 = vector.shape_cast %33 : vector<16xf32> to vector<16x1xf32>
    %cst_21 = arith.constant 3.200000e+01 : f32
    %35 = vector.broadcast %cst_21 : f32 to vector<16x1xf32>
    %36 = arith.divf %34, %35 : vector<16x1xf32>
    %37 = vector.broadcast %36 : vector<16x1xf32> to vector<16x32xf32>
    %38 = arith.subf %4, %37 : vector<16x32xf32>
    %39 = arith.mulf %38, %38 : vector<16x32xf32>
    %cst_22 = arith.constant dense<0.000000e+00> : vector<16xf32>
    %40 = vector.multi_reduction <add>, %39, %cst_22 [1] : vector<16x32xf32> to vector<16xf32>
    %41 = vector.shape_cast %40 : vector<16xf32> to vector<16x1xf32>
    %cst_23 = arith.constant 3.200000e+01 : f32
    %42 = vector.broadcast %cst_23 : f32 to vector<16x1xf32>
    %43 = arith.divf %41, %42 : vector<16x1xf32>
    %cst_24 = arith.constant 9.99999974E-6 : f32
    %44 = vector.broadcast %cst_24 : f32 to vector<16x1xf32>
    %45 = arith.addf %43, %44 : vector<16x1xf32>
    %46 = math.rsqrt %45 : vector<16x1xf32>
    %47 = vector.broadcast %46 : vector<16x1xf32> to vector<16x32xf32>
    %48 = arith.mulf %38, %47 : vector<16x32xf32>
    %49 = vector.broadcast %30 : vector<1x32xf32> to vector<16x32xf32>
    %50 = arith.mulf %48, %49 : vector<16x32xf32>
    %51 = vector.broadcast %32 : vector<1x32xf32> to vector<16x32xf32>
    %52 = arith.addf %50, %51 : vector<16x32xf32>
    %53 = vector.extract_strided_slice %28 {offsets = [0, 0], sizes = [8, 32], strides = [1, 1]} : vector<16x32xf32> to vector<8x32xf32>
    %54 = arith.truncf %53 : vector<8x32xf32> to vector<8x32xbf16>
    %c0_25 = arith.constant 0 : index
    %c0_26 = arith.constant 0 : index
    %55 = vector.load %arg23[%c0_25, %c0_26] : memref<32x32xbf16, #tpu.memory_space<vmem>>, vector<8x32xbf16>
    tpu.vector_store %arg23[%c0_25, %c0_26], %54 {strides = array<i32>} : memref<32x32xbf16, #tpu.memory_space<vmem>>, vector<8x32xbf16>,
    %56 = vector.extract_strided_slice %52 {offsets = [0, 0], sizes = [8, 32], strides = [1, 1]} : vector<16x32xf32> to vector<8x32xf32>
    %57 = arith.truncf %56 : vector<8x32xf32> to vector<8x32xbf16>
    %c8 = arith.constant 8 : index
    %c0_27 = arith.constant 0 : index
    %58 = vector.load %arg23[%c8, %c0_27] : memref<32x32xbf16, #tpu.memory_space<vmem>>, vector<8x32xbf16>
    tpu.vector_store %arg23[%c8, %c0_27], %57 {strides = array<i32>} : memref<32x32xbf16, #tpu.memory_space<vmem>>, vector<8x32xbf16>,
    %59 = vector.extract_strided_slice %28 {offsets = [8, 0], sizes = [8, 32], strides = [1, 1]} : vector<16x32xf32> to vector<8x32xf32>
    %60 = arith.truncf %59 : vector<8x32xf32> to vector<8x32xbf16>
    %c16 = arith.constant 16 : index
    %c0_28 = arith.constant 0 : index
    %61 = vector.load %arg23[%c16, %c0_28] : memref<32x32xbf16, #tpu.memory_space<vmem>>, vector<8x32xbf16>
    tpu.vector_store %arg23[%c16, %c0_28], %60 {strides = array<i32>} : memref<32x32xbf16, #tpu.memory_space<vmem>>, vector<8x32xbf16>,
    %62 = vector.extract_strided_slice %52 {offsets = [8, 0], sizes = [8, 32], strides = [1, 1]} : vector<16x32xf32> to vector<8x32xf32>
    %63 = arith.truncf %62 : vector<8x32xf32> to vector<8x32xbf16>
    %c24 = arith.constant 24 : index
    %c0_29 = arith.constant 0 : index
    %64 = vector.load %arg23[%c24, %c0_29] : memref<32x32xbf16, #tpu.memory_space<vmem>>, vector<8x32xbf16>
    tpu.vector_store %arg23[%c24, %c0_29], %63 {strides = array<i32>} : memref<32x32xbf16, #tpu.memory_space<vmem>>, vector<8x32xbf16>,
    %65 = arith.truncf %52 : vector<16x32xf32> to vector<16x32xbf16>
    %c0_30 = arith.constant 0 : index
    %c0_31 = arith.constant 0 : index
    %c0_32 = arith.constant 0 : index
    %66 = vector.load %arg11[%c0_30, %c0_31, %c0_32] : memref<1x32x64xbf16, #tpu.memory_space<vmem>>, vector<1x32x64xbf16>
    %67 = vector.shape_cast %66 : vector<1x32x64xbf16> to vector<32x64xbf16>
    %cst_33 = arith.constant dense<0.000000e+00> : vector<16x64xf32>
    %68 = tpu.matmul %65, %67, %cst_33 {dimension_numbers = #tpu.dot_dimension_numbers<[1], [0], [0], [1], [0, 0, 1, 1], [], []>} : vector<16x32xbf16>, vector<32x64xbf16>, vector<16x64xf32> -> vector<16x64xf32>
    %69 = arith.truncf %68 : vector<16x64xf32> to vector<16x64xbf16>
    %c0_34 = arith.constant 0 : index
    %c0_35 = arith.constant 0 : index
    %70 = vector.load %arg23[%c0_34, %c0_35] : memref<32x32xbf16, #tpu.memory_space<vmem>>, vector<32x32xbf16>
    %c0_36 = arith.constant 0 : index
    %c0_37 = arith.constant 0 : index
    %c0_38 = arith.constant 0 : index
    %71 = vector.load %arg12[%c0_36, %c0_37, %c0_38] : memref<1x32x128xbf16, #tpu.memory_space<vmem>>, vector<1x32x128xbf16>
    %72 = vector.shape_cast %71 : vector<1x32x128xbf16> to vector<32x128xbf16>
    %cst_39 = arith.constant dense<0.000000e+00> : vector<32x128xf32>
    %73 = tpu.matmul %70, %72, %cst_39 {dimension_numbers = #tpu.dot_dimension_numbers<[1], [0], [0], [1], [0, 0, 1, 1], [], []>} : vector<32x32xbf16>, vector<32x128xbf16>, vector<32x128xf32> -> vector<32x128xf32>
    %74 = arith.truncf %73 : vector<32x128xf32> to vector<32x128xbf16>
    %75 = vector.extract_strided_slice %74 {offsets = [0, 0], sizes = [32, 64], strides = [1, 1]} : vector<32x128xbf16> to vector<32x64xbf16>
    %76 = vector.extract_strided_slice %74 {offsets = [0, 64], sizes = [32, 64], strides = [1, 1]} : vector<32x128xbf16> to vector<32x64xbf16>
    %77 = vector.extract_strided_slice %69 {offsets = [0, 0], sizes = [8, 64], strides = [1, 1]} : vector<16x64xbf16> to vector<8x64xbf16>
    %78 = vector.extract_strided_slice %75 {offsets = [0, 0], sizes = [16, 64], strides = [1, 1]} : vector<32x64xbf16> to vector<16x64xbf16>
    %79 = vector.extract_strided_slice %76 {offsets = [0, 0], sizes = [16, 64], strides = [1, 1]} : vector<32x64xbf16> to vector<16x64xbf16>
    %80 = vector.extract_strided_slice %77 {offsets = [0, 0], sizes = [8, 16], strides = [1, 1]} : vector<8x64xbf16> to vector<8x16xbf16>
    %81 = vector.extract_strided_slice %78 {offsets = [0, 0], sizes = [16, 16], strides = [1, 1]} : vector<16x64xbf16> to vector<16x16xbf16>
    %cst_40 = arith.constant dense<0.000000e+00> : vector<8x16xf32>
    %82 = tpu.matmul %80, %81, %cst_40 {dimension_numbers = #tpu.dot_dimension_numbers<[1], [1], [0], [0], [0, 0, 1, 0], [], []>} : vector<8x16xbf16>, vector<16x16xbf16>, vector<8x16xf32> -> vector<8x16xf32>
    %cst_41 = arith.constant dense<0xFF800000> : vector<8xf32>
    %83 = vector.multi_reduction <maximumf>, %82, %cst_41 [1] : vector<8x16xf32> to vector<8xf32>
    %84 = vector.shape_cast %83 : vector<8xf32> to vector<8x1xf32>
    %85 = vector.broadcast %84 : vector<8x1xf32> to vector<8x16xf32>
    %86 = arith.subf %82, %85 : vector<8x16xf32>
    %87 = math.exp %86 : vector<8x16xf32>
    %cst_42 = arith.constant dense<0.000000e+00> : vector<8xf32>
    %88 = vector.multi_reduction <add>, %87, %cst_42 [1] : vector<8x16xf32> to vector<8xf32>
    %89 = vector.shape_cast %88 : vector<8xf32> to vector<8x1xf32>
    %90 = tpu.reciprocal %89 {approx = true} : vector<8x1xf32> -> vector<8x1xf32>
    %91 = vector.broadcast %90 : vector<8x1xf32> to vector<8x16xf32>
    %92 = arith.mulf %87, %91 : vector<8x16xf32>
    %93 = arith.truncf %92 : vector<8x16xf32> to vector<8x16xbf16>
    %94 = vector.extract_strided_slice %79 {offsets = [0, 0], sizes = [16, 16], strides = [1, 1]} : vector<16x64xbf16> to vector<16x16xbf16>
    %cst_43 = arith.constant dense<0.000000e+00> : vector<8x16xf32>
    %95 = tpu.matmul %93, %94, %cst_43 {dimension_numbers = #tpu.dot_dimension_numbers<[1], [0], [0], [1], [0, 0, 1, 1], [], []>} : vector<8x16xbf16>, vector<16x16xbf16>, vector<8x16xf32> -> vector<8x16xf32>
    %96 = arith.truncf %95 : vector<8x16xf32> to vector<8x16xbf16>
    %c0_44 = arith.constant 0 : index
    %c0_45 = arith.constant 0 : index
    %97 = vector.load %arg24[%c0_44, %c0_45] : memref<16x64xbf16, #tpu.memory_space<vmem>>, vector<8x16xbf16>
    tpu.vector_store %arg24[%c0_44, %c0_45], %96 {strides = array<i32>} : memref<16x64xbf16, #tpu.memory_space<vmem>>, vector<8x16xbf16>,
    %98 = vector.extract_strided_slice %77 {offsets = [0, 16], sizes = [8, 16], strides = [1, 1]} : vector<8x64xbf16> to vector<8x16xbf16>
    %99 = vector.extract_strided_slice %78 {offsets = [0, 16], sizes = [16, 16], strides = [1, 1]} : vector<16x64xbf16> to vector<16x16xbf16>
    %cst_46 = arith.constant dense<0.000000e+00> : vector<8x16xf32>
    %100 = tpu.matmul %98, %99, %cst_46 {dimension_numbers = #tpu.dot_dimension_numbers<[1], [1], [0], [0], [0, 0, 1, 0], [], []>} : vector<8x16xbf16>, vector<16x16xbf16>, vector<8x16xf32> -> vector<8x16xf32>
    %cst_47 = arith.constant dense<0xFF800000> : vector<8xf32>
    %101 = vector.multi_reduction <maximumf>, %100, %cst_47 [1] : vector<8x16xf32> to vector<8xf32>
    %102 = vector.shape_cast %101 : vector<8xf32> to vector<8x1xf32>
    %103 = vector.broadcast %102 : vector<8x1xf32> to vector<8x16xf32>
    %104 = arith.subf %100, %103 : vector<8x16xf32>
    %105 = math.exp %104 : vector<8x16xf32>
    %cst_48 = arith.constant dense<0.000000e+00> : vector<8xf32>
    %106 = vector.multi_reduction <add>, %105, %cst_48 [1] : vector<8x16xf32> to vector<8xf32>
    %107 = vector.shape_cast %106 : vector<8xf32> to vector<8x1xf32>
    %108 = tpu.reciprocal %107 {approx = true} : vector<8x1xf32> -> vector<8x1xf32>
    %109 = vector.broadcast %108 : vector<8x1xf32> to vector<8x16xf32>
    %110 = arith.mulf %105, %109 : vector<8x16xf32>
    %111 = arith.truncf %110 : vector<8x16xf32> to vector<8x16xbf16>
    %112 = vector.extract_strided_slice %79 {offsets = [0, 16], sizes = [16, 16], strides = [1, 1]} : vector<16x64xbf16> to vector<16x16xbf16>
    %cst_49 = arith.constant dense<0.000000e+00> : vector<8x16xf32>
    %113 = tpu.matmul %111, %112, %cst_49 {dimension_numbers = #tpu.dot_dimension_numbers<[1], [0], [0], [1], [0, 0, 1, 1], [], []>} : vector<8x16xbf16>, vector<16x16xbf16>, vector<8x16xf32> -> vector<8x16xf32>
    %114 = arith.truncf %113 : vector<8x16xf32> to vector<8x16xbf16>
    %c0_50 = arith.constant 0 : index
    %c16_51 = arith.constant 16 : index
    %115 = vector.load %arg24[%c0_50, %c16_51] : memref<16x64xbf16, #tpu.memory_space<vmem>>, vector<8x16xbf16>
    tpu.vector_store %arg24[%c0_50, %c16_51], %114 {strides = array<i32>} : memref<16x64xbf16, #tpu.memory_space<vmem>>, vector<8x16xbf16>,
    %116 = vector.extract_strided_slice %77 {offsets = [0, 32], sizes = [8, 16], strides = [1, 1]} : vector<8x64xbf16> to vector<8x16xbf16>
    %117 = vector.extract_strided_slice %78 {offsets = [0, 32], sizes = [16, 16], strides = [1, 1]} : vector<16x64xbf16> to vector<16x16xbf16>
    %cst_52 = arith.constant dense<0.000000e+00> : vector<8x16xf32>
    %118 = tpu.matmul %116, %117, %cst_52 {dimension_numbers = #tpu.dot_dimension_numbers<[1], [1], [0], [0], [0, 0, 1, 0], [], []>} : vector<8x16xbf16>, vector<16x16xbf16>, vector<8x16xf32> -> vector<8x16xf32>
    %cst_53 = arith.constant dense<0xFF800000> : vector<8xf32>
    %119 = vector.multi_reduction <maximumf>, %118, %cst_53 [1] : vector<8x16xf32> to vector<8xf32>
    %120 = vector.shape_cast %119 : vector<8xf32> to vector<8x1xf32>
    %121 = vector.broadcast %120 : vector<8x1xf32> to vector<8x16xf32>
    %122 = arith.subf %118, %121 : vector<8x16xf32>
    %123 = math.exp %122 : vector<8x16xf32>
    %cst_54 = arith.constant dense<0.000000e+00> : vector<8xf32>
    %124 = vector.multi_reduction <add>, %123, %cst_54 [1] : vector<8x16xf32> to vector<8xf32>
    %125 = vector.shape_cast %124 : vector<8xf32> to vector<8x1xf32>
    %126 = tpu.reciprocal %125 {approx = true} : vector<8x1xf32> -> vector<8x1xf32>
    %127 = vector.broadcast %126 : vector<8x1xf32> to vector<8x16xf32>
    %128 = arith.mulf %123, %127 : vector<8x16xf32>
    %129 = arith.truncf %128 : vector<8x16xf32> to vector<8x16xbf16>
    %130 = vector.extract_strided_slice %79 {offsets = [0, 32], sizes = [16, 16], strides = [1, 1]} : vector<16x64xbf16> to vector<16x16xbf16>
    %cst_55 = arith.constant dense<0.000000e+00> : vector<8x16xf32>
    %131 = tpu.matmul %129, %130, %cst_55 {dimension_numbers = #tpu.dot_dimension_numbers<[1], [0], [0], [1], [0, 0, 1, 1], [], []>} : vector<8x16xbf16>, vector<16x16xbf16>, vector<8x16xf32> -> vector<8x16xf32>
    %132 = arith.truncf %131 : vector<8x16xf32> to vector<8x16xbf16>
    %c0_56 = arith.constant 0 : index
    %c32 = arith.constant 32 : index
    %133 = vector.load %arg24[%c0_56, %c32] : memref<16x64xbf16, #tpu.memory_space<vmem>>, vector<8x16xbf16>
    tpu.vector_store %arg24[%c0_56, %c32], %132 {strides = array<i32>} : memref<16x64xbf16, #tpu.memory_space<vmem>>, vector<8x16xbf16>,
    %134 = vector.extract_strided_slice %77 {offsets = [0, 48], sizes = [8, 16], strides = [1, 1]} : vector<8x64xbf16> to vector<8x16xbf16>
    %135 = vector.extract_strided_slice %78 {offsets = [0, 48], sizes = [16, 16], strides = [1, 1]} : vector<16x64xbf16> to vector<16x16xbf16>
    %cst_57 = arith.constant dense<0.000000e+00> : vector<8x16xf32>
    %136 = tpu.matmul %134, %135, %cst_57 {dimension_numbers = #tpu.dot_dimension_numbers<[1], [1], [0], [0], [0, 0, 1, 0], [], []>} : vector<8x16xbf16>, vector<16x16xbf16>, vector<8x16xf32> -> vector<8x16xf32>
    %cst_58 = arith.constant dense<0xFF800000> : vector<8xf32>
    %137 = vector.multi_reduction <maximumf>, %136, %cst_58 [1] : vector<8x16xf32> to vector<8xf32>
    %138 = vector.shape_cast %137 : vector<8xf32> to vector<8x1xf32>
    %139 = vector.broadcast %138 : vector<8x1xf32> to vector<8x16xf32>
    %140 = arith.subf %136, %139 : vector<8x16xf32>
    %141 = math.exp %140 : vector<8x16xf32>
    %cst_59 = arith.constant dense<0.000000e+00> : vector<8xf32>
    %142 = vector.multi_reduction <add>, %141, %cst_59 [1] : vector<8x16xf32> to vector<8xf32>
    %143 = vector.shape_cast %142 : vector<8xf32> to vector<8x1xf32>
    %144 = tpu.reciprocal %143 {approx = true} : vector<8x1xf32> -> vector<8x1xf32>
    %145 = vector.broadcast %144 : vector<8x1xf32> to vector<8x16xf32>
    %146 = arith.mulf %141, %145 : vector<8x16xf32>
    %147 = arith.truncf %146 : vector<8x16xf32> to vector<8x16xbf16>
    %148 = vector.extract_strided_slice %79 {offsets = [0, 48], sizes = [16, 16], strides = [1, 1]} : vector<16x64xbf16> to vector<16x16xbf16>
    %cst_60 = arith.constant dense<0.000000e+00> : vector<8x16xf32>
    %149 = tpu.matmul %147, %148, %cst_60 {dimension_numbers = #tpu.dot_dimension_numbers<[1], [0], [0], [1], [0, 0, 1, 1], [], []>} : vector<8x16xbf16>, vector<16x16xbf16>, vector<8x16xf32> -> vector<8x16xf32>
    %150 = arith.truncf %149 : vector<8x16xf32> to vector<8x16xbf16>
    %c0_61 = arith.constant 0 : index
    %c48 = arith.constant 48 : index
    %151 = vector.load %arg24[%c0_61, %c48] : memref<16x64xbf16, #tpu.memory_space<vmem>>, vector<8x16xbf16>
    tpu.vector_store %arg24[%c0_61, %c48], %150 {strides = array<i32>} : memref<16x64xbf16, #tpu.memory_space<vmem>>, vector<8x16xbf16>,
    %152 = vector.extract_strided_slice %69 {offsets = [8, 0], sizes = [8, 64], strides = [1, 1]} : vector<16x64xbf16> to vector<8x64xbf16>
    %153 = vector.extract_strided_slice %75 {offsets = [16, 0], sizes = [16, 64], strides = [1, 1]} : vector<32x64xbf16> to vector<16x64xbf16>
    %154 = vector.extract_strided_slice %76 {offsets = [16, 0], sizes = [16, 64], strides = [1, 1]} : vector<32x64xbf16> to vector<16x64xbf16>
    %155 = vector.extract_strided_slice %152 {offsets = [0, 0], sizes = [8, 16], strides = [1, 1]} : vector<8x64xbf16> to vector<8x16xbf16>
    %156 = vector.extract_strided_slice %153 {offsets = [0, 0], sizes = [16, 16], strides = [1, 1]} : vector<16x64xbf16> to vector<16x16xbf16>
    %cst_62 = arith.constant dense<0.000000e+00> : vector<8x16xf32>
    %157 = tpu.matmul %155, %156, %cst_62 {dimension_numbers = #tpu.dot_dimension_numbers<[1], [1], [0], [0], [0, 0, 1, 0], [], []>} : vector<8x16xbf16>, vector<16x16xbf16>, vector<8x16xf32> -> vector<8x16xf32>
    %cst_63 = arith.constant dense<0xFF800000> : vector<8xf32>
    %158 = vector.multi_reduction <maximumf>, %157, %cst_63 [1] : vector<8x16xf32> to vector<8xf32>
    %159 = vector.shape_cast %158 : vector<8xf32> to vector<8x1xf32>
    %160 = vector.broadcast %159 : vector<8x1xf32> to vector<8x16xf32>
    %161 = arith.subf %157, %160 : vector<8x16xf32>
    %162 = math.exp %161 : vector<8x16xf32>
    %cst_64 = arith.constant dense<0.000000e+00> : vector<8xf32>
    %163 = vector.multi_reduction <add>, %162, %cst_64 [1] : vector<8x16xf32> to vector<8xf32>
    %164 = vector.shape_cast %163 : vector<8xf32> to vector<8x1xf32>
    %165 = tpu.reciprocal %164 {approx = true} : vector<8x1xf32> -> vector<8x1xf32>
    %166 = vector.broadcast %165 : vector<8x1xf32> to vector<8x16xf32>
    %167 = arith.mulf %162, %166 : vector<8x16xf32>
    %168 = arith.truncf %167 : vector<8x16xf32> to vector<8x16xbf16>
    %169 = vector.extract_strided_slice %154 {offsets = [0, 0], sizes = [16, 16], strides = [1, 1]} : vector<16x64xbf16> to vector<16x16xbf16>
    %cst_65 = arith.constant dense<0.000000e+00> : vector<8x16xf32>
    %170 = tpu.matmul %168, %169, %cst_65 {dimension_numbers = #tpu.dot_dimension_numbers<[1], [0], [0], [1], [0, 0, 1, 1], [], []>} : vector<8x16xbf16>, vector<16x16xbf16>, vector<8x16xf32> -> vector<8x16xf32>
    %171 = arith.truncf %170 : vector<8x16xf32> to vector<8x16xbf16>
    %c8_66 = arith.constant 8 : index
    %c0_67 = arith.constant 0 : index
    %172 = vector.load %arg24[%c8_66, %c0_67] : memref<16x64xbf16, #tpu.memory_space<vmem>>, vector<8x16xbf16>
    tpu.vector_store %arg24[%c8_66, %c0_67], %171 {strides = array<i32>} : memref<16x64xbf16, #tpu.memory_space<vmem>>, vector<8x16xbf16>,
    %173 = vector.extract_strided_slice %152 {offsets = [0, 16], sizes = [8, 16], strides = [1, 1]} : vector<8x64xbf16> to vector<8x16xbf16>
    %174 = vector.extract_strided_slice %153 {offsets = [0, 16], sizes = [16, 16], strides = [1, 1]} : vector<16x64xbf16> to vector<16x16xbf16>
    %cst_68 = arith.constant dense<0.000000e+00> : vector<8x16xf32>
    %175 = tpu.matmul %173, %174, %cst_68 {dimension_numbers = #tpu.dot_dimension_numbers<[1], [1], [0], [0], [0, 0, 1, 0], [], []>} : vector<8x16xbf16>, vector<16x16xbf16>, vector<8x16xf32> -> vector<8x16xf32>
    %cst_69 = arith.constant dense<0xFF800000> : vector<8xf32>
    %176 = vector.multi_reduction <maximumf>, %175, %cst_69 [1] : vector<8x16xf32> to vector<8xf32>
    %177 = vector.shape_cast %176 : vector<8xf32> to vector<8x1xf32>
    %178 = vector.broadcast %177 : vector<8x1xf32> to vector<8x16xf32>
    %179 = arith.subf %175, %178 : vector<8x16xf32>
    %180 = math.exp %179 : vector<8x16xf32>
    %cst_70 = arith.constant dense<0.000000e+00> : vector<8xf32>
    %181 = vector.multi_reduction <add>, %180, %cst_70 [1] : vector<8x16xf32> to vector<8xf32>
    %182 = vector.shape_cast %181 : vector<8xf32> to vector<8x1xf32>
    %183 = tpu.reciprocal %182 {approx = true} : vector<8x1xf32> -> vector<8x1xf32>
    %184 = vector.broadcast %183 : vector<8x1xf32> to vector<8x16xf32>
    %185 = arith.mulf %180, %184 : vector<8x16xf32>
    %186 = arith.truncf %185 : vector<8x16xf32> to vector<8x16xbf16>
    %187 = vector.extract_strided_slice %154 {offsets = [0, 16], sizes = [16, 16], strides = [1, 1]} : vector<16x64xbf16> to vector<16x16xbf16>
    %cst_71 = arith.constant dense<0.000000e+00> : vector<8x16xf32>
    %188 = tpu.matmul %186, %187, %cst_71 {dimension_numbers = #tpu.dot_dimension_numbers<[1], [0], [0], [1], [0, 0, 1, 1], [], []>} : vector<8x16xbf16>, vector<16x16xbf16>, vector<8x16xf32> -> vector<8x16xf32>
    %189 = arith.truncf %188 : vector<8x16xf32> to vector<8x16xbf16>
    %c8_72 = arith.constant 8 : index
    %c16_73 = arith.constant 16 : index
    %190 = vector.load %arg24[%c8_72, %c16_73] : memref<16x64xbf16, #tpu.memory_space<vmem>>, vector<8x16xbf16>
    tpu.vector_store %arg24[%c8_72, %c16_73], %189 {strides = array<i32>} : memref<16x64xbf16, #tpu.memory_space<vmem>>, vector<8x16xbf16>,
    %191 = vector.extract_strided_slice %152 {offsets = [0, 32], sizes = [8, 16], strides = [1, 1]} : vector<8x64xbf16> to vector<8x16xbf16>
    %192 = vector.extract_strided_slice %153 {offsets = [0, 32], sizes = [16, 16], strides = [1, 1]} : vector<16x64xbf16> to vector<16x16xbf16>
    %cst_74 = arith.constant dense<0.000000e+00> : vector<8x16xf32>
    %193 = tpu.matmul %191, %192, %cst_74 {dimension_numbers = #tpu.dot_dimension_numbers<[1], [1], [0], [0], [0, 0, 1, 0], [], []>} : vector<8x16xbf16>, vector<16x16xbf16>, vector<8x16xf32> -> vector<8x16xf32>
    %cst_75 = arith.constant dense<0xFF800000> : vector<8xf32>
    %194 = vector.multi_reduction <maximumf>, %193, %cst_75 [1] : vector<8x16xf32> to vector<8xf32>
    %195 = vector.shape_cast %194 : vector<8xf32> to vector<8x1xf32>
    %196 = vector.broadcast %195 : vector<8x1xf32> to vector<8x16xf32>
    %197 = arith.subf %193, %196 : vector<8x16xf32>
    %198 = math.exp %197 : vector<8x16xf32>
    %cst_76 = arith.constant dense<0.000000e+00> : vector<8xf32>
    %199 = vector.multi_reduction <add>, %198, %cst_76 [1] : vector<8x16xf32> to vector<8xf32>
    %200 = vector.shape_cast %199 : vector<8xf32> to vector<8x1xf32>
    %201 = tpu.reciprocal %200 {approx = true} : vector<8x1xf32> -> vector<8x1xf32>
    %202 = vector.broadcast %201 : vector<8x1xf32> to vector<8x16xf32>
    %203 = arith.mulf %198, %202 : vector<8x16xf32>
    %204 = arith.truncf %203 : vector<8x16xf32> to vector<8x16xbf16>
    %205 = vector.extract_strided_slice %154 {offsets = [0, 32], sizes = [16, 16], strides = [1, 1]} : vector<16x64xbf16> to vector<16x16xbf16>
    %cst_77 = arith.constant dense<0.000000e+00> : vector<8x16xf32>
    %206 = tpu.matmul %204, %205, %cst_77 {dimension_numbers = #tpu.dot_dimension_numbers<[1], [0], [0], [1], [0, 0, 1, 1], [], []>} : vector<8x16xbf16>, vector<16x16xbf16>, vector<8x16xf32> -> vector<8x16xf32>
    %207 = arith.truncf %206 : vector<8x16xf32> to vector<8x16xbf16>
    %c8_78 = arith.constant 8 : index
    %c32_79 = arith.constant 32 : index
    %208 = vector.load %arg24[%c8_78, %c32_79] : memref<16x64xbf16, #tpu.memory_space<vmem>>, vector<8x16xbf16>
    tpu.vector_store %arg24[%c8_78, %c32_79], %207 {strides = array<i32>} : memref<16x64xbf16, #tpu.memory_space<vmem>>, vector<8x16xbf16>,
    %209 = vector.extract_strided_slice %152 {offsets = [0, 48], sizes = [8, 16], strides = [1, 1]} : vector<8x64xbf16> to vector<8x16xbf16>
    %210 = vector.extract_strided_slice %153 {offsets = [0, 48], sizes = [16, 16], strides = [1, 1]} : vector<16x64xbf16> to vector<16x16xbf16>
    %cst_80 = arith.constant dense<0.000000e+00> : vector<8x16xf32>
    %211 = tpu.matmul %209, %210, %cst_80 {dimension_numbers = #tpu.dot_dimension_numbers<[1], [1], [0], [0], [0, 0, 1, 0], [], []>} : vector<8x16xbf16>, vector<16x16xbf16>, vector<8x16xf32> -> vector<8x16xf32>
    %cst_81 = arith.constant dense<0xFF800000> : vector<8xf32>
    %212 = vector.multi_reduction <maximumf>, %211, %cst_81 [1] : vector<8x16xf32> to vector<8xf32>
    %213 = vector.shape_cast %212 : vector<8xf32> to vector<8x1xf32>
    %214 = vector.broadcast %213 : vector<8x1xf32> to vector<8x16xf32>
    %215 = arith.subf %211, %214 : vector<8x16xf32>
    %216 = math.exp %215 : vector<8x16xf32>
    %cst_82 = arith.constant dense<0.000000e+00> : vector<8xf32>
    %217 = vector.multi_reduction <add>, %216, %cst_82 [1] : vector<8x16xf32> to vector<8xf32>
    %218 = vector.shape_cast %217 : vector<8xf32> to vector<8x1xf32>
    %219 = tpu.reciprocal %218 {approx = true} : vector<8x1xf32> -> vector<8x1xf32>
    %220 = vector.broadcast %219 : vector<8x1xf32> to vector<8x16xf32>
    %221 = arith.mulf %216, %220 : vector<8x16xf32>
    %222 = arith.truncf %221 : vector<8x16xf32> to vector<8x16xbf16>
    %223 = vector.extract_strided_slice %154 {offsets = [0, 48], sizes = [16, 16], strides = [1, 1]} : vector<16x64xbf16> to vector<16x16xbf16>
    %cst_83 = arith.constant dense<0.000000e+00> : vector<8x16xf32>
    %224 = tpu.matmul %222, %223, %cst_83 {dimension_numbers = #tpu.dot_dimension_numbers<[1], [0], [0], [1], [0, 0, 1, 1], [], []>} : vector<8x16xbf16>, vector<16x16xbf16>, vector<8x16xf32> -> vector<8x16xf32>
    %225 = arith.truncf %224 : vector<8x16xf32> to vector<8x16xbf16>
    %c8_84 = arith.constant 8 : index
    %c48_85 = arith.constant 48 : index
    %226 = vector.load %arg24[%c8_84, %c48_85] : memref<16x64xbf16, #tpu.memory_space<vmem>>, vector<8x16xbf16>
    tpu.vector_store %arg24[%c8_84, %c48_85], %225 {strides = array<i32>} : memref<16x64xbf16, #tpu.memory_space<vmem>>, vector<8x16xbf16>,
    %c0_86 = arith.constant 0 : index
    %c0_87 = arith.constant 0 : index
    %227 = vector.load %arg24[%c0_86, %c0_87] : memref<16x64xbf16, #tpu.memory_space<vmem>>, vector<16x64xbf16>
    %c0_88 = arith.constant 0 : index
    %c0_89 = arith.constant 0 : index
    %c0_90 = arith.constant 0 : index
    %228 = vector.load %arg13[%c0_88, %c0_89, %c0_90] : memref<1x64x32xbf16, #tpu.memory_space<vmem>>, vector<1x64x32xbf16>
    %229 = vector.shape_cast %228 : vector<1x64x32xbf16> to vector<64x32xbf16>
    %cst_91 = arith.constant dense<0.000000e+00> : vector<16x32xf32>
    %230 = tpu.matmul %227, %229, %cst_91 {dimension_numbers = #tpu.dot_dimension_numbers<[1], [0], [0], [1], [0, 0, 1, 1], [], []>} : vector<16x64xbf16>, vector<64x32xbf16>, vector<16x32xf32> -> vector<16x32xf32>
    %231 = arith.addf %230, %4 : vector<16x32xf32>
    %c0_92 = arith.constant 0 : index
    %c0_93 = arith.constant 0 : index
    %c0_94 = arith.constant 0 : index
    %232 = vector.load %arg14[%c0_92, %c0_93, %c0_94] : memref<1x1x32xf32, #tpu.memory_space<vmem>>, vector<1x1x32xf32>
    %233 = vector.shape_cast %232 : vector<1x1x32xf32> to vector<1x32xf32>
    %c0_95 = arith.constant 0 : index
    %c0_96 = arith.constant 0 : index
    %c0_97 = arith.constant 0 : index
    %234 = vector.load %arg15[%c0_95, %c0_96, %c0_97] : memref<1x1x32xf32, #tpu.memory_space<vmem>>, vector<1x1x32xf32>
    %235 = vector.shape_cast %234 : vector<1x1x32xf32> to vector<1x32xf32>
    %cst_98 = arith.constant dense<0.000000e+00> : vector<16xf32>
    %236 = vector.multi_reduction <add>, %231, %cst_98 [1] : vector<16x32xf32> to vector<16xf32>
    %237 = vector.shape_cast %236 : vector<16xf32> to vector<16x1xf32>
    %cst_99 = arith.constant 3.200000e+01 : f32
    %238 = vector.broadcast %cst_99 : f32 to vector<16x1xf32>
    %239 = arith.divf %237, %238 : vector<16x1xf32>
    %240 = vector.broadcast %239 : vector<16x1xf32> to vector<16x32xf32>
    %241 = arith.subf %231, %240 : vector<16x32xf32>
    %242 = arith.mulf %241, %241 : vector<16x32xf32>
    %cst_100 = arith.constant dense<0.000000e+00> : vector<16xf32>
    %243 = vector.multi_reduction <add>, %242, %cst_100 [1] : vector<16x32xf32> to vector<16xf32>
    %244 = vector.shape_cast %243 : vector<16xf32> to vector<16x1xf32>
    %cst_101 = arith.constant 3.200000e+01 : f32
    %245 = vector.broadcast %cst_101 : f32 to vector<16x1xf32>
    %246 = arith.divf %244, %245 : vector<16x1xf32>
    %cst_102 = arith.constant 9.99999974E-6 : f32
    %247 = vector.broadcast %cst_102 : f32 to vector<16x1xf32>
    %248 = arith.addf %246, %247 : vector<16x1xf32>
    %249 = math.rsqrt %248 : vector<16x1xf32>
    %250 = vector.broadcast %249 : vector<16x1xf32> to vector<16x32xf32>
    %251 = arith.mulf %241, %250 : vector<16x32xf32>
    %252 = vector.broadcast %233 : vector<1x32xf32> to vector<16x32xf32>
    %253 = arith.mulf %251, %252 : vector<16x32xf32>
    %254 = vector.broadcast %235 : vector<1x32xf32> to vector<16x32xf32>
    %255 = arith.addf %253, %254 : vector<16x32xf32>
    %256 = arith.truncf %255 : vector<16x32xf32> to vector<16x32xbf16>
    %c0_103 = arith.constant 0 : index
    %c0_104 = arith.constant 0 : index
    %c0_105 = arith.constant 0 : index
    %257 = vector.load %arg16[%c0_103, %c0_104, %c0_105] : memref<1x32x64xbf16, #tpu.memory_space<vmem>>, vector<1x32x64xbf16>
    %258 = vector.shape_cast %257 : vector<1x32x64xbf16> to vector<32x64xbf16>
    %cst_106 = arith.constant dense<0.000000e+00> : vector<16x64xf32>
    %259 = tpu.matmul %256, %258, %cst_106 {dimension_numbers = #tpu.dot_dimension_numbers<[1], [0], [0], [1], [0, 0, 1, 1], [], []>} : vector<16x32xbf16>, vector<32x64xbf16>, vector<16x64xf32> -> vector<16x64xf32>
    %cst_107 = arith.constant 5.000000e-01 : f32
    %260 = vector.broadcast %cst_107 : f32 to vector<16x64xf32>
    %261 = arith.mulf %260, %259 : vector<16x64xf32>
    %cst_108 = arith.constant 0.707106769 : f32
    %262 = vector.broadcast %cst_108 : f32 to vector<16x64xf32>
    %263 = arith.mulf %259, %262 : vector<16x64xf32>
    %264 = math.absf %263 : vector<16x64xf32>
    %cst_109 = arith.constant 0.327591091 : f32
    %265 = vector.broadcast %cst_109 : f32 to vector<16x64xf32>
    %266 = arith.mulf %265, %264 : vector<16x64xf32>
    %cst_110 = arith.constant 1.000000e+00 : f32
    %267 = vector.broadcast %cst_110 : f32 to vector<16x64xf32>
    %268 = arith.addf %267, %266 : vector<16x64xf32>
    %269 = tpu.reciprocal %268 {approx = true} : vector<16x64xf32> -> vector<16x64xf32>
    %cst_111 = arith.constant 1.06140542 : f32
    %270 = vector.broadcast %cst_111 : f32 to vector<16x64xf32>
    %271 = arith.mulf %270, %269 : vector<16x64xf32>
    %cst_112 = arith.constant -1.45315206 : f32
    %272 = vector.broadcast %cst_112 : f32 to vector<16x64xf32>
    %273 = arith.addf %271, %272 : vector<16x64xf32>
    %274 = arith.mulf %273, %269 : vector<16x64xf32>
    %cst_113 = arith.constant 1.42141378 : f32
    %275 = vector.broadcast %cst_113 : f32 to vector<16x64xf32>
    %276 = arith.addf %274, %275 : vector<16x64xf32>
    %277 = arith.mulf %276, %269 : vector<16x64xf32>
    %cst_114 = arith.constant -0.284496725 : f32
    %278 = vector.broadcast %cst_114 : f32 to vector<16x64xf32>
    %279 = arith.addf %277, %278 : vector<16x64xf32>
    %280 = arith.mulf %279, %269 : vector<16x64xf32>
    %cst_115 = arith.constant 0.254829586 : f32
    %281 = vector.broadcast %cst_115 : f32 to vector<16x64xf32>
    %282 = arith.addf %280, %281 : vector<16x64xf32>
    %283 = arith.mulf %282, %269 : vector<16x64xf32>
    %cst_116 = arith.constant 0.000000e+00 : f32
    %284 = vector.broadcast %cst_116 : f32 to vector<16x64xf32>
    %285 = arith.subf %284, %264 : vector<16x64xf32>
    %286 = arith.mulf %285, %264 : vector<16x64xf32>
    %287 = math.exp %286 : vector<16x64xf32>
    %288 = arith.mulf %283, %287 : vector<16x64xf32>
    %cst_117 = arith.constant 1.000000e+00 : f32
    %289 = vector.broadcast %cst_117 : f32 to vector<16x64xf32>
    %290 = arith.subf %289, %288 : vector<16x64xf32>
    %cst_118 = arith.constant 0.000000e+00 : f32
    %291 = vector.broadcast %cst_118 : f32 to vector<16x64xf32>
    %292 = arith.cmpf oge, %263, %291 : vector<16x64xf32>
    %cst_119 = arith.constant 0.000000e+00 : f32
    %293 = vector.broadcast %cst_119 : f32 to vector<16x64xf32>
    %294 = arith.subf %293, %290 : vector<16x64xf32>
    %295 = arith.select %292, %290, %294 : vector<16x64xi1>, vector<16x64xf32>
    %cst_120 = arith.constant 1.000000e+00 : f32
    %296 = vector.broadcast %cst_120 : f32 to vector<16x64xf32>
    %297 = arith.addf %296, %295 : vector<16x64xf32>
    %298 = arith.mulf %261, %297 : vector<16x64xf32>
    %299 = arith.truncf %298 : vector<16x64xf32> to vector<16x64xbf16>
    %c0_121 = arith.constant 0 : index
    %c0_122 = arith.constant 0 : index
    %c0_123 = arith.constant 0 : index
    %300 = vector.load %arg17[%c0_121, %c0_122, %c0_123] : memref<1x64x32xbf16, #tpu.memory_space<vmem>>, vector<1x64x32xbf16>
    %301 = vector.shape_cast %300 : vector<1x64x32xbf16> to vector<64x32xbf16>
    %cst_124 = arith.constant dense<0.000000e+00> : vector<16x32xf32>
    %302 = tpu.matmul %299, %301, %cst_124 {dimension_numbers = #tpu.dot_dimension_numbers<[1], [0], [0], [1], [0, 0, 1, 1], [], []>} : vector<16x64xbf16>, vector<64x32xbf16>, vector<16x32xf32> -> vector<16x32xf32>
    %303 = arith.addf %302, %231 : vector<16x32xf32>
    %c0_125 = arith.constant 0 : index
    %c0_126 = arith.constant 0 : index
    %304 = vector.load %arg22[%c0_125, %c0_126] : memref<16x32xf32, #tpu.memory_space<vmem>>, vector<16x32xf32>
    tpu.vector_store %arg22[%c0_125, %c0_126], %303 {strides = array<i32>} : memref<16x32xf32, #tpu.memory_space<vmem>>, vector<16x32xf32>,
    %c1_i32 = arith.constant 1 : i32
    %305 = arith.cmpi eq, %arg1, %c1_i32 : i32
    %306 = arith.extui %305 : i1 to i32
    %c0_i32_127 = arith.constant 0 : i32
    %307 = arith.cmpi ne, %306, %c0_i32_127 : i32
    scf.if %307 {
      %c0_128 = arith.constant 0 : index
      %c0_129 = arith.constant 0 : index
      %308 = vector.load %arg18[%c0_128, %c0_129] : memref<1x32xf32, #tpu.memory_space<vmem>>, vector<1x32xf32>
      %c0_130 = arith.constant 0 : index
      %c0_131 = arith.constant 0 : index
      %309 = vector.load %arg19[%c0_130, %c0_131] : memref<1x32xf32, #tpu.memory_space<vmem>>, vector<1x32xf32>
      %cst_132 = arith.constant dense<0.000000e+00> : vector<16xf32>
      %310 = vector.multi_reduction <add>, %303, %cst_132 [1] : vector<16x32xf32> to vector<16xf32>
      %311 = vector.shape_cast %310 : vector<16xf32> to vector<16x1xf32>
      %cst_133 = arith.constant 3.200000e+01 : f32
      %312 = vector.broadcast %cst_133 : f32 to vector<16x1xf32>
      %313 = arith.divf %311, %312 : vector<16x1xf32>
      %314 = vector.broadcast %313 : vector<16x1xf32> to vector<16x32xf32>
      %315 = arith.subf %303, %314 : vector<16x32xf32>
      %316 = arith.mulf %315, %315 : vector<16x32xf32>
      %cst_134 = arith.constant dense<0.000000e+00> : vector<16xf32>
      %317 = vector.multi_reduction <add>, %316, %cst_134 [1] : vector<16x32xf32> to vector<16xf32>
      %318 = vector.shape_cast %317 : vector<16xf32> to vector<16x1xf32>
      %cst_135 = arith.constant 3.200000e+01 : f32
      %319 = vector.broadcast %cst_135 : f32 to vector<16x1xf32>
      %320 = arith.divf %318, %319 : vector<16x1xf32>
      %cst_136 = arith.constant 9.99999974E-6 : f32
      %321 = vector.broadcast %cst_136 : f32 to vector<16x1xf32>
      %322 = arith.addf %320, %321 : vector<16x1xf32>
      %323 = math.rsqrt %322 : vector<16x1xf32>
      %324 = vector.broadcast %323 : vector<16x1xf32> to vector<16x32xf32>
      %325 = arith.mulf %315, %324 : vector<16x32xf32>
      %326 = vector.broadcast %308 : vector<1x32xf32> to vector<16x32xf32>
      %327 = arith.mulf %325, %326 : vector<16x32xf32>
      %328 = vector.broadcast %309 : vector<1x32xf32> to vector<16x32xf32>
      %329 = arith.addf %327, %328 : vector<16x32xf32>
      %330 = vector.extract_strided_slice %329 {offsets = [0, 0], sizes = [8, 32], strides = [1, 1]} : vector<16x32xf32> to vector<8x32xf32>
      %c0_137 = arith.constant 0 : index
      %c0_138 = arith.constant 0 : index
      %c0_139 = arith.constant 0 : index
      %331 = vector.load %arg20[%c0_137, %c0_138, %c0_139] : memref<2x8x32xf32, #tpu.memory_space<vmem>>, vector<1x8x32xf32>
      %332 = vector.shape_cast %331 : vector<1x8x32xf32> to vector<8x32xf32>
      %333 = vector.shape_cast %330 : vector<8x32xf32> to vector<1x8x32xf32>
      tpu.vector_store %arg20[%c0_137, %c0_138, %c0_139], %333 {strides = array<i32>} : memref<2x8x32xf32, #tpu.memory_space<vmem>>, vector<1x8x32xf32>,
      %334 = vector.extract_strided_slice %329 {offsets = [8, 0], sizes = [8, 32], strides = [1, 1]} : vector<16x32xf32> to vector<8x32xf32>
      %c1 = arith.constant 1 : index
      %c0_140 = arith.constant 0 : index
      %c0_141 = arith.constant 0 : index
      %335 = vector.load %arg20[%c1, %c0_140, %c0_141] : memref<2x8x32xf32, #tpu.memory_space<vmem>>, vector<1x8x32xf32>
      %336 = vector.shape_cast %335 : vector<1x8x32xf32> to vector<8x32xf32>
      %337 = vector.shape_cast %334 : vector<8x32xf32> to vector<1x8x32xf32>
      tpu.vector_store %arg20[%c1, %c0_140, %c0_141], %337 {strides = array<i32>} : memref<2x8x32xf32, #tpu.memory_space<vmem>>, vector<1x8x32xf32>,
    } else {
    }
    return
  }
  func.func @transform_0(%arg0: i32, %arg1: i32) -> (i32, i32, i32) {
    %c0_i32 = arith.constant 0 : i32
    %c0_i32_0 = arith.constant 0 : i32
    %c0_i32_1 = arith.constant 0 : i32
    return %arg0, %c0_i32, %c0_i32_0 : i32, i32, i32
  }
  func.func @transform_1(%arg0: i32, %arg1: i32) -> (i32, i32) {
    %c0_i32 = arith.constant 0 : i32
    %c0_i32_0 = arith.constant 0 : i32
    %c0_i32_1 = arith.constant 0 : i32
    return %c0_i32, %c0_i32_0 : i32, i32
  }
  func.func @transform_2(%arg0: i32, %arg1: i32) -> (i32, i32) {
    %c0_i32 = arith.constant 0 : i32
    %c0_i32_0 = arith.constant 0 : i32
    %c0_i32_1 = arith.constant 0 : i32
    return %c0_i32, %c0_i32_0 : i32, i32
  }
  func.func @transform_3(%arg0: i32, %arg1: i32) -> (i32, i32) {
    %c0_i32 = arith.constant 0 : i32
    %c0_i32_0 = arith.constant 0 : i32
    %c0_i32_1 = arith.constant 0 : i32
    return %c0_i32, %c0_i32_0 : i32, i32
  }
  func.func @transform_4(%arg0: i32, %arg1: i32) -> (i32, i32) {
    %c0_i32 = arith.constant 0 : i32
    %c0_i32_0 = arith.constant 0 : i32
    %c0_i32_1 = arith.constant 0 : i32
    return %c0_i32, %c0_i32_0 : i32, i32
  }
  func.func @transform_5(%arg0: i32, %arg1: i32) -> (i32, i32, i32) {
    %c0_i32 = arith.constant 0 : i32
    %c0_i32_0 = arith.constant 0 : i32
    %c0_i32_1 = arith.constant 0 : i32
    return %arg1, %c0_i32, %c0_i32_0 : i32, i32, i32
  }
  func.func @transform_6(%arg0: i32, %arg1: i32) -> (i32, i32, i32) {
    %c0_i32 = arith.constant 0 : i32
    %c0_i32_0 = arith.constant 0 : i32
    %c0_i32_1 = arith.constant 0 : i32
    return %arg1, %c0_i32, %c0_i32_0 : i32, i32, i32
  }
  func.func @transform_7(%arg0: i32, %arg1: i32) -> (i32, i32, i32) {
    %c0_i32 = arith.constant 0 : i32
    %c0_i32_0 = arith.constant 0 : i32
    %c0_i32_1 = arith.constant 0 : i32
    return %arg1, %c0_i32, %c0_i32_0 : i32, i32, i32
  }
  func.func @transform_8(%arg0: i32, %arg1: i32) -> (i32, i32, i32) {
    %c0_i32 = arith.constant 0 : i32
    %c0_i32_0 = arith.constant 0 : i32
    %c0_i32_1 = arith.constant 0 : i32
    return %arg1, %c0_i32, %c0_i32_0 : i32, i32, i32
  }
  func.func @transform_9(%arg0: i32, %arg1: i32) -> (i32, i32, i32) {
    %c0_i32 = arith.constant 0 : i32
    %c0_i32_0 = arith.constant 0 : i32
    %c0_i32_1 = arith.constant 0 : i32
    return %arg1, %c0_i32, %c0_i32_0 : i32, i32, i32
  }
  func.func @transform_10(%arg0: i32, %arg1: i32) -> (i32, i32, i32) {
    %c0_i32 = arith.constant 0 : i32
    %c0_i32_0 = arith.constant 0 : i32
    %c0_i32_1 = arith.constant 0 : i32
    return %arg1, %c0_i32, %c0_i32_0 : i32, i32, i32
  }
  func.func @transform_11(%arg0: i32, %arg1: i32) -> (i32, i32, i32) {
    %c0_i32 = arith.constant 0 : i32
    %c0_i32_0 = arith.constant 0 : i32
    %c0_i32_1 = arith.constant 0 : i32
    return %arg1, %c0_i32, %c0_i32_0 : i32, i32, i32
  }
  func.func @transform_12(%arg0: i32, %arg1: i32) -> (i32, i32, i32) {
    %c0_i32 = arith.constant 0 : i32
    %c0_i32_0 = arith.constant 0 : i32
    %c0_i32_1 = arith.constant 0 : i32
    return %arg1, %c0_i32, %c0_i32_0 : i32, i32, i32
  }
  func.func @transform_13(%arg0: i32, %arg1: i32) -> (i32, i32, i32) {
    %c0_i32 = arith.constant 0 : i32
    %c0_i32_0 = arith.constant 0 : i32
    %c0_i32_1 = arith.constant 0 : i32
    return %arg1, %c0_i32, %c0_i32_0 : i32, i32, i32
  }
  func.func @transform_14(%arg0: i32, %arg1: i32) -> (i32, i32, i32) {
    %c0_i32 = arith.constant 0 : i32
    %c0_i32_0 = arith.constant 0 : i32
    %c0_i32_1 = arith.constant 0 : i32
    return %arg1, %c0_i32, %c0_i32_0 : i32, i32, i32
  }
  func.func @transform_15(%arg0: i32, %arg1: i32) -> (i32, i32, i32) {
    %c0_i32 = arith.constant 0 : i32
    %c0_i32_0 = arith.constant 0 : i32
    %c0_i32_1 = arith.constant 0 : i32
    return %arg1, %c0_i32, %c0_i32_0 : i32, i32, i32
  }
  func.func @transform_16(%arg0: i32, %arg1: i32) -> (i32, i32) {
    %c0_i32 = arith.constant 0 : i32
    %c0_i32_0 = arith.constant 0 : i32
    %c0_i32_1 = arith.constant 0 : i32
    return %c0_i32, %c0_i32_0 : i32, i32
  }
  func.func @transform_17(%arg0: i32, %arg1: i32) -> (i32, i32) {
    %c0_i32 = arith.constant 0 : i32
    %c0_i32_0 = arith.constant 0 : i32
    %c0_i32_1 = arith.constant 0 : i32
    return %c0_i32, %c0_i32_0 : i32, i32
  }
  func.func @transform_18(%arg0: i32, %arg1: i32) -> (i32, i32, i32) {
    %c0_i32 = arith.constant 0 : i32
    %c0_i32_0 = arith.constant 0 : i32
    %c0_i32_1 = arith.constant 0 : i32
    return %arg0, %c0_i32, %c0_i32_0 : i32, i32, i32
  }
}

</mosaic_0001>

<llo_original>
// kernel: tpu_custom_call.1
$region0: #{tpu_custom_call.1}
  #allocation0 [shape = 'u32[]', space=smem, size = 0x4, offset = 0x4, fixed_abs, tag = 'smem constant byte address 0x4 - core index']
  #allocation1 [shape = 'u32[144,128]{1,0:T(1,128)}', space=vmem, size = 0x12000, scoped, tag = 'internal scratch']
  #allocation2 [shape = 'f32[16,32]{1,0:T(8,128)}', space=vmem, size = 0x2000, scoped, tag = 'scratch operand']
  #allocation3 [shape = 'f32[16,32]{1,0:T(8,128)}', space=vmem, size = 0x2000, scoped, tag = 'scratch operand']
  #allocation4 [shape = 'bf16[32,32]{1,0:T(8,128)(2,1)}', space=vmem, size = 0x2000, scoped, tag = 'scratch operand']
  #allocation5 [shape = 'bf16[16,64]{1,0:T(8,128)(2,1)}', space=vmem, size = 0x1000, scoped, tag = 'scratch operand']
  %s0 = inlined_call_operand.vmem [shape: f32[4,8,16], index: 0, kind: input, shape index: {}]
  %s1 = inlined_call_operand.vmem [shape: f32[8,32], index: 1, kind: input, shape index: {}]
  %s2 = inlined_call_operand.vmem [shape: f32[8,32], index: 2, kind: input, shape index: {}]
  %s3 = inlined_call_operand.vmem [shape: bf16[16,32], index: 3, kind: input, shape index: {}]
  %s4 = inlined_call_operand.vmem [shape: f32[1,32], index: 4, kind: input, shape index: {}]
  %s5 = inlined_call_operand.vmem [shape: f32[2,1,32], index: 5, kind: input, shape index: {}]
  %s6 = inlined_call_operand.vmem [shape: f32[2,1,32], index: 6, kind: input, shape index: {}]
  %s7 = inlined_call_operand.vmem [shape: f32[2,1,32], index: 7, kind: input, shape index: {}]
  %s8 = inlined_call_operand.vmem [shape: f32[2,1,32], index: 8, kind: input, shape index: {}]
  %s9 = inlined_call_operand.vmem [shape: bf16[2,32,64], index: 9, kind: input, shape index: {}]
  %s10 = inlined_call_operand.vmem [shape: bf16[2,32,128], index: 10, kind: input, shape index: {}]
  %s11 = inlined_call_operand.vmem [shape: bf16[2,64,32], index: 11, kind: input, shape index: {}]
  %s12 = inlined_call_operand.vmem [shape: f32[2,1,32], index: 12, kind: input, shape index: {}]
  %s13 = inlined_call_operand.vmem [shape: f32[2,1,32], index: 13, kind: input, shape index: {}]
  %s14 = inlined_call_operand.vmem [shape: bf16[2,32,64], index: 14, kind: input, shape index: {}]
  %s15 = inlined_call_operand.vmem [shape: bf16[2,64,32], index: 15, kind: input, shape index: {}]
  %s16 = inlined_call_operand.vmem [shape: f32[1,32], index: 16, kind: input, shape index: {}]
  %s17 = inlined_call_operand.vmem [shape: f32[1,32], index: 17, kind: input, shape index: {}]
  %s18 = inlined_call_operand.hbm [shape: f32[4,8,32], index: 18, kind: output, shape index: {}]
  %s19 = sld [smem:[#allocation0]]
  $region113: #{tpu_custom_call.1} parent=0
    _
  %s21 = ssub.s32 1, %s19
  %s22 = scalar_select 0, %s21, %s19
  $region1: #{tpu_custom_call.1} parent=0
    #allocation6 [shape = 'u8[16384]{0}', space=vmem, size = 0x4000, scoped, tag = 'output window, operand 0']
    #allocation7 [shape = 's32[2]{0}', space=sflag, size = 0x8, scoped, tag = 'scoped memory for tpu_custom_call.1']
    %23 = vsyncpa [#allocation7], 0
    %s24 = scalar_lea.sflag [#allocation7], 1
    %25 = vsyncpa %s24, 0
    loop: start=0, step=1, limit=6
    $region2: #{tpu_custom_call.1} parent=1 // loop_pre_header
      _
    $region3: #{tpu_custom_call.1} parent=1 // loop_header
      %s27 = sphi 0, %s31
      %p28 = scmp.ge.s32.totalorder %s27, 6
      %s34 = sphi 0, %s46
      %s35 = sphi 0, %s42
      %s36 = sphi 0, %s34
      %s37 = sphi 0, %s35
      %s38 = sphi 0, %s36
      %s39 = sphi 0, %s37
      %s49 = sphi 0, %s51
      %s52 = sphi 0, %s49
      %s53 = sphi 0, %s52
      %s69 = sphi 0, %s53
      %s73 = sphi 0, %s73
      %s75 = sphi 0, %s73
      %s76 = sphi 0, %s75
      %s90 = sphi 0, %s76
      %s94 = sphi 0, %s94
      %s96 = sphi 0, %s94
      %s97 = sphi 0, %s96
      %s111 = sphi 0, %s97
      %s115 = sphi 0, %s115
      %s117 = sphi 0, %s115
      %s118 = sphi 0, %s117
      %s132 = sphi 0, %s118
      %s136 = sphi 0, %s136
      %s138 = sphi 0, %s136
      %s139 = sphi 0, %s138
      %s153 = sphi 0, %s139
      %s159 = sphi 0, %s161
      %s162 = sphi 0, %s159
      %s163 = sphi 0, %s162
      %s179 = sphi 0, %s163
      %s185 = sphi 0, %s187
      %s188 = sphi 0, %s185
      %s189 = sphi 0, %s188
      %s205 = sphi 0, %s189
      %s211 = sphi 0, %s213
      %s214 = sphi 0, %s211
      %s215 = sphi 0, %s214
      %s231 = sphi 0, %s215
      %s237 = sphi 0, %s239
      %s240 = sphi 0, %s237
      %s241 = sphi 0, %s240
      %s257 = sphi 0, %s241
      %s263 = sphi 0, %s265
      %s266 = sphi 0, %s263
      %s267 = sphi 0, %s266
      %s283 = sphi 0, %s267
      %s289 = sphi 0, %s291
      %s292 = sphi 0, %s289
      %s293 = sphi 0, %s292
      %s309 = sphi 0, %s293
      %s315 = sphi 0, %s317
      %s318 = sphi 0, %s315
      %s319 = sphi 0, %s318
      %s335 = sphi 0, %s319
      %s341 = sphi 0, %s343
      %s344 = sphi 0, %s341
      %s345 = sphi 0, %s344
      %s361 = sphi 0, %s345
      %s367 = sphi 0, %s369
      %s370 = sphi 0, %s367
      %s371 = sphi 0, %s370
      %s387 = sphi 0, %s371
      %s393 = sphi 0, %s395
      %s396 = sphi 0, %s393
      %s397 = sphi 0, %s396
      %s413 = sphi 0, %s397
      %s419 = sphi 0, %s421
      %s422 = sphi 0, %s419
      %s423 = sphi 0, %s422
      %s439 = sphi 0, %s423
      %s443 = sphi 0, %s443
      %s445 = sphi 0, %s443
      %s446 = sphi 0, %s445
      %s460 = sphi 0, %s446
      %s464 = sphi 0, %s464
      %s466 = sphi 0, %s464
      %s467 = sphi 0, %s466
      %s481 = sphi 0, %s467
      %s487 = sphi 0, %s489
      %s490 = sphi 0, %s487
      %s491 = sphi 0, %s490
      %s507 = sphi 0, %s491
    $region4: #{tpu_custom_call.1} parent=1 // loop_header_branch
      %30 = sbr.rel (%p28) target = $region8
    $region5: #{tpu_custom_call.1} parent=1 // loop_body
      %s32 = ssub.s32 %s27, 1
      %s33 = ssub.s32 %s27, 2
      %s40 = sadd.s32 1, %s35
      %p41 = scmp.ge.s32.totalorder %s40, 2
      %s42 = scalar_select %p41, 0, %s40
      %s43 = sadd.s32 1, %s34
      %s44 = scalar_select %p41, %s43, %s34
      %p45 = scmp.ge.s32.totalorder %s44, 2
      %s46 = scalar_select %p45, 0, %s44
      %s47 = ssub.s32 %s34, %s46
      %p48 = scmp.eq.s32.totalorder %s47, 0
      %s50 = sadd.s32 %s49, 1
      %s51 = scalar_select %p48, %s49, %s50
      %p54 = pneg %p48
      %p55 = scmp.eq.s32.totalorder %s27, 3
      %p56 = por %p54, %p55
      %p57 = scmp.ne.s32.totalorder %s49, %s52
      %p58 = scmp.eq.s32.totalorder %s27, 0
      %p59 = por %p57, %p58
      %p60 = scmp.ne.s32.totalorder %s49, %s52
      %p61 = scmp.eq.s32.totalorder %s32, 3
      %p62 = por %p60, %p61
      %p63 = scmp.ne.s32.totalorder %s52, %s53
      %p64 = scmp.eq.s32.totalorder %s32, 0
      %p65 = por %p63, %p64
      %p66 = scmp.ne.s32.totalorder %s52, %s53
      %p67 = scmp.eq.s32.totalorder %s33, 3
      %p68 = por %p66, %p67
      %p70 = scmp.ne.s32.totalorder %s53, %s69
      %p71 = scmp.eq.s32.totalorder %s33, 0
      %p72 = por %p70, %p71
      %s74 = sadd.s32 %s73, 1
      %p77 = scmp.eq.s32.totalorder %s27, 3
      %p78 = scmp.ne.s32.totalorder %s73, %s75
      %p79 = scmp.eq.s32.totalorder %s27, 0
      %p80 = por %p78, %p79
      %p81 = scmp.ne.s32.totalorder %s73, %s75
      %p82 = scmp.eq.s32.totalorder %s32, 3
      %p83 = por %p81, %p82
      %p84 = scmp.ne.s32.totalorder %s75, %s76
      %p85 = scmp.eq.s32.totalorder %s32, 0
      %p86 = por %p84, %p85
      %p87 = scmp.ne.s32.totalorder %s75, %s76
      %p88 = scmp.eq.s32.totalorder %s33, 3
      %p89 = por %p87, %p88
      %p91 = scmp.ne.s32.totalorder %s76, %s90
      %p92 = scmp.eq.s32.totalorder %s33, 0
      %p93 = por %p91, %p92
      %s95 = sadd.s32 %s94, 1
      %p98 = scmp.eq.s32.totalorder %s27, 3
      %p99 = scmp.ne.s32.totalorder %s94, %s96
      %p100 = scmp.eq.s32.totalorder %s27, 0
      %p101 = por %p99, %p100
      %p102 = scmp.ne.s32.totalorder %s94, %s96
      %p103 = scmp.eq.s32.totalorder %s32, 3
      %p104 = por %p102, %p103
      %p105 = scmp.ne.s32.totalorder %s96, %s97
      %p106 = scmp.eq.s32.totalorder %s32, 0
      %p107 = por %p105, %p106
      %p108 = scmp.ne.s32.totalorder %s96, %s97
      %p109 = scmp.eq.s32.totalorder %s33, 3
      %p110 = por %p108, %p109
      %p112 = scmp.ne.s32.totalorder %s97, %s111
      %p113 = scmp.eq.s32.totalorder %s33, 0
      %p114 = por %p112, %p113
      %s116 = sadd.s32 %s115, 1
      %p119 = scmp.eq.s32.totalorder %s27, 3
      %p120 = scmp.ne.s32.totalorder %s115, %s117
      %p121 = scmp.eq.s32.totalorder %s27, 0
      %p122 = por %p120, %p121
      %p123 = scmp.ne.s32.totalorder %s115, %s117
      %p124 = scmp.eq.s32.totalorder %s32, 3
      %p125 = por %p123, %p124
      %p126 = scmp.ne.s32.totalorder %s117, %s118
      %p127 = scmp.eq.s32.totalorder %s32, 0
      %p128 = por %p126, %p127
      %p129 = scmp.ne.s32.totalorder %s117, %s118
      %p130 = scmp.eq.s32.totalorder %s33, 3
      %p131 = por %p129, %p130
      %p133 = scmp.ne.s32.totalorder %s118, %s132
      %p134 = scmp.eq.s32.totalorder %s33, 0
      %p135 = por %p133, %p134
      %s137 = sadd.s32 %s136, 1
      %p140 = scmp.eq.s32.totalorder %s27, 3
      %p141 = scmp.ne.s32.totalorder %s136, %s138
      %p142 = scmp.eq.s32.totalorder %s27, 0
      %p143 = por %p141, %p142
      %p144 = scmp.ne.s32.totalorder %s136, %s138
      %p145 = scmp.eq.s32.totalorder %s32, 3
      %p146 = por %p144, %p145
      %p147 = scmp.ne.s32.totalorder %s138, %s139
      %p148 = scmp.eq.s32.totalorder %s32, 0
      %p149 = por %p147, %p148
      %p150 = scmp.ne.s32.totalorder %s138, %s139
      %p151 = scmp.eq.s32.totalorder %s33, 3
      %p152 = por %p150, %p151
      %p154 = scmp.ne.s32.totalorder %s139, %s153
      %p155 = scmp.eq.s32.totalorder %s33, 0
      %p156 = por %p154, %p155
      %s157 = ssub.s32 %s35, %s42
      %p158 = scmp.eq.s32.totalorder %s157, 0
      %s160 = sadd.s32 %s159, 1
      %s161 = scalar_select %p158, %s159, %s160
      %p164 = pneg %p158
      %p165 = scmp.eq.s32.totalorder %s27, 3
      %p166 = por %p164, %p165
      %p167 = scmp.ne.s32.totalorder %s159, %s162
      %p168 = scmp.eq.s32.totalorder %s27, 0
      %p169 = por %p167, %p168
      %p170 = scmp.ne.s32.totalorder %s159, %s162
      %p171 = scmp.eq.s32.totalorder %s32, 3
      %p172 = por %p170, %p171
      %p173 = scmp.ne.s32.totalorder %s162, %s163
      %p174 = scmp.eq.s32.totalorder %s32, 0
      %p175 = por %p173, %p174
      %p176 = scmp.ne.s32.totalorder %s162, %s163
      %p177 = scmp.eq.s32.totalorder %s33, 3
      %p178 = por %p176, %p177
      %p180 = scmp.ne.s32.totalorder %s163, %s179
      %p181 = scmp.eq.s32.totalorder %s33, 0
      %p182 = por %p180, %p181
      %s183 = ssub.s32 %s35, %s42
      %p184 = scmp.eq.s32.totalorder %s183, 0
      %s186 = sadd.s32 %s185, 1
      %s187 = scalar_select %p184, %s185, %s186
      %p190 = pneg %p184
      %p191 = scmp.eq.s32.totalorder %s27, 3
      %p192 = por %p190, %p191
      %p193 = scmp.ne.s32.totalorder %s185, %s188
      %p194 = scmp.eq.s32.totalorder %s27, 0
      %p195 = por %p193, %p194
      %p196 = scmp.ne.s32.totalorder %s185, %s188
      %p197 = scmp.eq.s32.totalorder %s32, 3
      %p198 = por %p196, %p197
      %p199 = scmp.ne.s32.totalorder %s188, %s189
      %p200 = scmp.eq.s32.totalorder %s32, 0
      %p201 = por %p199, %p200
      %p202 = scmp.ne.s32.totalorder %s188, %s189
      %p203 = scmp.eq.s32.totalorder %s33, 3
      %p204 = por %p202, %p203
      %p206 = scmp.ne.s32.totalorder %s189, %s205
      %p207 = scmp.eq.s32.totalorder %s33, 0
      %p208 = por %p206, %p207
      %s209 = ssub.s32 %s35, %s42
      %p210 = scmp.eq.s32.totalorder %s209, 0
      %s212 = sadd.s32 %s211, 1
      %s213 = scalar_select %p210, %s211, %s212
      %p216 = pneg %p210
      %p217 = scmp.eq.s32.totalorder %s27, 3
      %p218 = por %p216, %p217
      %p219 = scmp.ne.s32.totalorder %s211, %s214
      %p220 = scmp.eq.s32.totalorder %s27, 0
      %p221 = por %p219, %p220
      %p222 = scmp.ne.s32.totalorder %s211, %s214
      %p223 = scmp.eq.s32.totalorder %s32, 3
      %p224 = por %p222, %p223
      %p225 = scmp.ne.s32.totalorder %s214, %s215
      %p226 = scmp.eq.s32.totalorder %s32, 0
      %p227 = por %p225, %p226
      %p228 = scmp.ne.s32.totalorder %s214, %s215
      %p229 = scmp.eq.s32.totalorder %s33, 3
      %p230 = por %p228, %p229
      %p232 = scmp.ne.s32.totalorder %s215, %s231
      %p233 = scmp.eq.s32.totalorder %s33, 0
      %p234 = por %p232, %p233
      %s235 = ssub.s32 %s35, %s42
      %p236 = scmp.eq.s32.totalorder %s235, 0
      %s238 = sadd.s32 %s237, 1
      %s239 = scalar_select %p236, %s237, %s238
      %p242 = pneg %p236
      %p243 = scmp.eq.s32.totalorder %s27, 3
      %p244 = por %p242, %p243
      %p245 = scmp.ne.s32.totalorder %s237, %s240
      %p246 = scmp.eq.s32.totalorder %s27, 0
      %p247 = por %p245, %p246
      %p248 = scmp.ne.s32.totalorder %s237, %s240
      %p249 = scmp.eq.s32.totalorder %s32, 3
      %p250 = por %p248, %p249
      %p251 = scmp.ne.s32.totalorder %s240, %s241
      %p252 = scmp.eq.s32.totalorder %s32, 0
      %p253 = por %p251, %p252
      %p254 = scmp.ne.s32.totalorder %s240, %s241
      %p255 = scmp.eq.s32.totalorder %s33, 3
      %p256 = por %p254, %p255
      %p258 = scmp.ne.s32.totalorder %s241, %s257
      %p259 = scmp.eq.s32.totalorder %s33, 0
      %p260 = por %p258, %p259
      %s261 = ssub.s32 %s35, %s42
      %p262 = scmp.eq.s32.totalorder %s261, 0
      %s264 = sadd.s32 %s263, 1
      %s265 = scalar_select %p262, %s263, %s264
      %p268 = pneg %p262
      %p269 = scmp.eq.s32.totalorder %s27, 3
      %p270 = por %p268, %p269
      %p271 = scmp.ne.s32.totalorder %s263, %s266
      %p272 = scmp.eq.s32.totalorder %s27, 0
      %p273 = por %p271, %p272
      %p274 = scmp.ne.s32.totalorder %s263, %s266
      %p275 = scmp.eq.s32.totalorder %s32, 3
      %p276 = por %p274, %p275
      %p277 = scmp.ne.s32.totalorder %s266, %s267
      %p278 = scmp.eq.s32.totalorder %s32, 0
      %p279 = por %p277, %p278
      %p280 = scmp.ne.s32.totalorder %s266, %s267
      %p281 = scmp.eq.s32.totalorder %s33, 3
      %p282 = por %p280, %p281
      %p284 = scmp.ne.s32.totalorder %s267, %s283
      %p285 = scmp.eq.s32.totalorder %s33, 0
      %p286 = por %p284, %p285
      %s287 = ssub.s32 %s35, %s42
      %p288 = scmp.eq.s32.totalorder %s287, 0
      %s290 = sadd.s32 %s289, 1
      %s291 = scalar_select %p288, %s289, %s290
      %p294 = pneg %p288
      %p295 = scmp.eq.s32.totalorder %s27, 3
      %p296 = por %p294, %p295
      %p297 = scmp.ne.s32.totalorder %s289, %s292
      %p298 = scmp.eq.s32.totalorder %s27, 0
      %p299 = por %p297, %p298
      %p300 = scmp.ne.s32.totalorder %s289, %s292
      %p301 = scmp.eq.s32.totalorder %s32, 3
      %p302 = por %p300, %p301
      %p303 = scmp.ne.s32.totalorder %s292, %s293
      %p304 = scmp.eq.s32.totalorder %s32, 0
      %p305 = por %p303, %p304
      %p306 = scmp.ne.s32.totalorder %s292, %s293
      %p307 = scmp.eq.s32.totalorder %s33, 3
      %p308 = por %p306, %p307
      %p310 = scmp.ne.s32.totalorder %s293, %s309
      %p311 = scmp.eq.s32.totalorder %s33, 0
      %p312 = por %p310, %p311
      %s313 = ssub.s32 %s35, %s42
      %p314 = scmp.eq.s32.totalorder %s313, 0
      %s316 = sadd.s32 %s315, 1
      %s317 = scalar_select %p314, %s315, %s316
      %p320 = pneg %p314
      %p321 = scmp.eq.s32.totalorder %s27, 3
      %p322 = por %p320, %p321
      %p323 = scmp.ne.s32.totalorder %s315, %s318
      %p324 = scmp.eq.s32.totalorder %s27, 0
      %p325 = por %p323, %p324
      %p326 = scmp.ne.s32.totalorder %s315, %s318
      %p327 = scmp.eq.s32.totalorder %s32, 3
      %p328 = por %p326, %p327
      %p329 = scmp.ne.s32.totalorder %s318, %s319
      %p330 = scmp.eq.s32.totalorder %s32, 0
      %p331 = por %p329, %p330
      %p332 = scmp.ne.s32.totalorder %s318, %s319
      %p333 = scmp.eq.s32.totalorder %s33, 3
      %p334 = por %p332, %p333
      %p336 = scmp.ne.s32.totalorder %s319, %s335
      %p337 = scmp.eq.s32.totalorder %s33, 0
      %p338 = por %p336, %p337
      %s339 = ssub.s32 %s35, %s42
      %p340 = scmp.eq.s32.totalorder %s339, 0
      %s342 = sadd.s32 %s341, 1
      %s343 = scalar_select %p340, %s341, %s342
      %p346 = pneg %p340
      %p347 = scmp.eq.s32.totalorder %s27, 3
      %p348 = por %p346, %p347
      %p349 = scmp.ne.s32.totalorder %s341, %s344
      %p350 = scmp.eq.s32.totalorder %s27, 0
      %p351 = por %p349, %p350
      %p352 = scmp.ne.s32.totalorder %s341, %s344
      %p353 = scmp.eq.s32.totalorder %s32, 3
      %p354 = por %p352, %p353
      %p355 = scmp.ne.s32.totalorder %s344, %s345
      %p356 = scmp.eq.s32.totalorder %s32, 0
      %p357 = por %p355, %p356
      %p358 = scmp.ne.s32.totalorder %s344, %s345
      %p359 = scmp.eq.s32.totalorder %s33, 3
      %p360 = por %p358, %p359
      %p362 = scmp.ne.s32.totalorder %s345, %s361
      %p363 = scmp.eq.s32.totalorder %s33, 0
      %p364 = por %p362, %p363
      %s365 = ssub.s32 %s35, %s42
      %p366 = scmp.eq.s32.totalorder %s365, 0
      %s368 = sadd.s32 %s367, 1
      %s369 = scalar_select %p366, %s367, %s368
      %p372 = pneg %p366
      %p373 = scmp.eq.s32.totalorder %s27, 3
      %p374 = por %p372, %p373
      %p375 = scmp.ne.s32.totalorder %s367, %s370
      %p376 = scmp.eq.s32.totalorder %s27, 0
      %p377 = por %p375, %p376
      %p378 = scmp.ne.s32.totalorder %s367, %s370
      %p379 = scmp.eq.s32.totalorder %s32, 3
      %p380 = por %p378, %p379
      %p381 = scmp.ne.s32.totalorder %s370, %s371
      %p382 = scmp.eq.s32.totalorder %s32, 0
      %p383 = por %p381, %p382
      %p384 = scmp.ne.s32.totalorder %s370, %s371
      %p385 = scmp.eq.s32.totalorder %s33, 3
      %p386 = por %p384, %p385
      %p388 = scmp.ne.s32.totalorder %s371, %s387
      %p389 = scmp.eq.s32.totalorder %s33, 0
      %p390 = por %p388, %p389
      %s391 = ssub.s32 %s35, %s42
      %p392 = scmp.eq.s32.totalorder %s391, 0
      %s394 = sadd.s32 %s393, 1
      %s395 = scalar_select %p392, %s393, %s394
      %p398 = pneg %p392
      %p399 = scmp.eq.s32.totalorder %s27, 3
      %p400 = por %p398, %p399
      %p401 = scmp.ne.s32.totalorder %s393, %s396
      %p402 = scmp.eq.s32.totalorder %s27, 0
      %p403 = por %p401, %p402
      %p404 = scmp.ne.s32.totalorder %s393, %s396
      %p405 = scmp.eq.s32.totalorder %s32, 3
      %p406 = por %p404, %p405
      %p407 = scmp.ne.s32.totalorder %s396, %s397
      %p408 = scmp.eq.s32.totalorder %s32, 0
      %p409 = por %p407, %p408
      %p410 = scmp.ne.s32.totalorder %s396, %s397
      %p411 = scmp.eq.s32.totalorder %s33, 3
      %p412 = por %p410, %p411
      %p414 = scmp.ne.s32.totalorder %s397, %s413
      %p415 = scmp.eq.s32.totalorder %s33, 0
      %p416 = por %p414, %p415
      %s417 = ssub.s32 %s35, %s42
      %p418 = scmp.eq.s32.totalorder %s417, 0
      %s420 = sadd.s32 %s419, 1
      %s421 = scalar_select %p418, %s419, %s420
      %p424 = pneg %p418
      %p425 = scmp.eq.s32.totalorder %s27, 3
      %p426 = por %p424, %p425
      %p427 = scmp.ne.s32.totalorder %s419, %s422
      %p428 = scmp.eq.s32.totalorder %s27, 0
      %p429 = por %p427, %p428
      %p430 = scmp.ne.s32.totalorder %s419, %s422
      %p431 = scmp.eq.s32.totalorder %s32, 3
      %p432 = por %p430, %p431
      %p433 = scmp.ne.s32.totalorder %s422, %s423
      %p434 = scmp.eq.s32.totalorder %s32, 0
      %p435 = por %p433, %p434
      %p436 = scmp.ne.s32.totalorder %s422, %s423
      %p437 = scmp.eq.s32.totalorder %s33, 3
      %p438 = por %p436, %p437
      %p440 = scmp.ne.s32.totalorder %s423, %s439
      %p441 = scmp.eq.s32.totalorder %s33, 0
      %p442 = por %p440, %p441
      %s444 = sadd.s32 %s443, 1
      %p447 = scmp.eq.s32.totalorder %s27, 3
      %p448 = scmp.ne.s32.totalorder %s443, %s445
      %p449 = scmp.eq.s32.totalorder %s27, 0
      %p450 = por %p448, %p449
      %p451 = scmp.ne.s32.totalorder %s443, %s445
      %p452 = scmp.eq.s32.totalorder %s32, 3
      %p453 = por %p451, %p452
      %p454 = scmp.ne.s32.totalorder %s445, %s446
      %p455 = scmp.eq.s32.totalorder %s32, 0
      %p456 = por %p454, %p455
      %p457 = scmp.ne.s32.totalorder %s445, %s446
      %p458 = scmp.eq.s32.totalorder %s33, 3
      %p459 = por %p457, %p458
      %p461 = scmp.ne.s32.totalorder %s446, %s460
      %p462 = scmp.eq.s32.totalorder %s33, 0
      %p463 = por %p461, %p462
      %s465 = sadd.s32 %s464, 1
      %p468 = scmp.eq.s32.totalorder %s27, 3
      %p469 = scmp.ne.s32.totalorder %s464, %s466
      %p470 = scmp.eq.s32.totalorder %s27, 0
      %p471 = por %p469, %p470
      %p472 = scmp.ne.s32.totalorder %s464, %s466
      %p473 = scmp.eq.s32.totalorder %s32, 3
      %p474 = por %p472, %p473
      %p475 = scmp.ne.s32.totalorder %s466, %s467
      %p476 = scmp.eq.s32.totalorder %s32, 0
      %p477 = por %p475, %p476
      %p478 = scmp.ne.s32.totalorder %s466, %s467
      %p479 = scmp.eq.s32.totalorder %s33, 3
      %p480 = por %p478, %p479
      %p482 = scmp.ne.s32.totalorder %s467, %s481
      %p483 = scmp.eq.s32.totalorder %s33, 0
      %p484 = por %p482, %p483
      %s485 = ssub.s32 %s34, %s46
      %p486 = scmp.eq.s32.totalorder %s485, 0
      %s488 = sadd.s32 %s487, 1
      %s489 = scalar_select %p486, %s487, %s488
      %p492 = pneg %p486
      %p493 = scmp.eq.s32.totalorder %s27, 3
      %p494 = por %p492, %p493
      %p495 = scmp.ne.s32.totalorder %s487, %s490
      %p496 = scmp.eq.s32.totalorder %s27, 0
      %p497 = por %p495, %p496
      %p498 = scmp.ne.s32.totalorder %s487, %s490
      %p499 = scmp.eq.s32.totalorder %s32, 3
      %p500 = por %p498, %p499
      %p501 = scmp.ne.s32.totalorder %s490, %s491
      %p502 = scmp.eq.s32.totalorder %s32, 0
      %p503 = por %p501, %p502
      %p504 = scmp.ne.s32.totalorder %s490, %s491
      %p505 = scmp.eq.s32.totalorder %s33, 3
      %p506 = por %p504, %p505
      %p508 = scmp.ne.s32.totalorder %s491, %s507
      %p509 = scmp.eq.s32.totalorder %s33, 0
      %p510 = por %p508, %p509
      %p511 = scmp.le.s32.totalorder 1, %s27
      %p512 = scmp.lt.s32.totalorder %s27, 5
      %p513 = pnand %p511, %p512
      %p514 = pneg %p513
      // Predicated region
      $region9: #{tpu_custom_call.1} parent=5 // pred_check
        _
      $region10: #{tpu_custom_call.1} parent=5 // pred_check_branch
        %516 = sbr.rel (%p513) target = $region12
      $region11: #{tpu_custom_call.1} parent=5 // pred_region
        %s517 = ssub.s32 %s27, 1
        // Predicated region
        $region13: #{tpu_custom_call.1} parent=11 // pred_check
          %p518 = pneg %p86
        $region14: #{tpu_custom_call.1} parent=11 // pred_check_branch
          %520 = sbr.rel (%p518) target = $region16
        $region15: #{tpu_custom_call.1} parent=11 // pred_region
          _
        $region16: #{tpu_custom_call.1} parent=11 // pred_fallthru
          _
        // Predicated region
        $region17: #{tpu_custom_call.1} parent=11 // pred_check
          %p521 = pneg %p107
        $region18: #{tpu_custom_call.1} parent=11 // pred_check_branch
          %523 = sbr.rel (%p521) target = $region20
        $region19: #{tpu_custom_call.1} parent=11 // pred_region
          _
        $region20: #{tpu_custom_call.1} parent=11 // pred_fallthru
          _
        // Predicated region
        $region21: #{tpu_custom_call.1} parent=11 // pred_check
          %p524 = pneg %p128
        $region22: #{tpu_custom_call.1} parent=11 // pred_check_branch
          %526 = sbr.rel (%p524) target = $region24
        $region23: #{tpu_custom_call.1} parent=11 // pred_region
          _
        $region24: #{tpu_custom_call.1} parent=11 // pred_fallthru
          _
        // Predicated region
        $region25: #{tpu_custom_call.1} parent=11 // pred_check
          %p527 = pneg %p149
        $region26: #{tpu_custom_call.1} parent=11 // pred_check_branch
          %529 = sbr.rel (%p527) target = $region28
        $region27: #{tpu_custom_call.1} parent=11 // pred_region
          _
        $region28: #{tpu_custom_call.1} parent=11 // pred_fallthru
          _
        // Predicated region
        $region29: #{tpu_custom_call.1} parent=11 // pred_check
          %p530 = pneg %p456
        $region30: #{tpu_custom_call.1} parent=11 // pred_check_branch
          %532 = sbr.rel (%p530) target = $region32
        $region31: #{tpu_custom_call.1} parent=11 // pred_region
          _
        $region32: #{tpu_custom_call.1} parent=11 // pred_fallthru
          _
        // Predicated region
        $region33: #{tpu_custom_call.1} parent=11 // pred_check
          %p533 = pneg %p477
        $region34: #{tpu_custom_call.1} parent=11 // pred_check_branch
          %535 = sbr.rel (%p533) target = $region36
        $region35: #{tpu_custom_call.1} parent=11 // pred_region
          _
        $region36: #{tpu_custom_call.1} parent=11 // pred_fallthru
          _
      $region12: #{tpu_custom_call.1} parent=5 // pred_fallthru
        _
      %p536 = scmp.lt.s32.totalorder %s27, 4
      // Predicated region
      $region37: #{tpu_custom_call.1} parent=5 // pred_check
        %p537 = pneg %p536
      $region38: #{tpu_custom_call.1} parent=5 // pred_check_branch
        %539 = sbr.rel (%p537) target = $region40
      $region39: #{tpu_custom_call.1} parent=5 // pred_region
        // Predicated region
        $region41: #{tpu_custom_call.1} parent=39 // pred_check
          %p540 = pneg %p59
        $region42: #{tpu_custom_call.1} parent=39 // pred_check_branch
          %542 = sbr.rel (%p540) target = $region44
        $region43: #{tpu_custom_call.1} parent=39 // pred_region
          %s543 = smul.u32 2, %s34
          %p544 = scmp.lt.s32.totalorder %s543, 3
          %s545 = scalar_select %p544, %s543, 3
          %s546 = smul.addr %s545, 8
          %s547 = scalar_lea.vmem %s0, %s546
          %s548 = smul.u32 2, %s34
        $region44: #{tpu_custom_call.1} parent=39 // pred_fallthru
          _
        // Predicated region
        $region45: #{tpu_custom_call.1} parent=39 // pred_check
          %p549 = pneg %p169
        $region46: #{tpu_custom_call.1} parent=39 // pred_check_branch
          %551 = sbr.rel (%p549) target = $region48
        $region47: #{tpu_custom_call.1} parent=39 // pred_region
          %p552 = scmp.lt.s32.totalorder %s35, 1
          %s553 = scalar_select %p552, %s35, 1
          %s554 = scalar_lea.vmem %s5, %s553
        $region48: #{tpu_custom_call.1} parent=39 // pred_fallthru
          _
        // Predicated region
        $region49: #{tpu_custom_call.1} parent=39 // pred_check
          %p555 = pneg %p195
        $region50: #{tpu_custom_call.1} parent=39 // pred_check_branch
          %557 = sbr.rel (%p555) target = $region52
        $region51: #{tpu_custom_call.1} parent=39 // pred_region
          %p558 = scmp.lt.s32.totalorder %s35, 1
          %s559 = scalar_select %p558, %s35, 1
          %s560 = scalar_lea.vmem %s6, %s559
        $region52: #{tpu_custom_call.1} parent=39 // pred_fallthru
          _
        // Predicated region
        $region53: #{tpu_custom_call.1} parent=39 // pred_check
          %p561 = pneg %p221
        $region54: #{tpu_custom_call.1} parent=39 // pred_check_branch
          %563 = sbr.rel (%p561) target = $region56
        $region55: #{tpu_custom_call.1} parent=39 // pred_region
          %p564 = scmp.lt.s32.totalorder %s35, 1
          %s565 = scalar_select %p564, %s35, 1
          %s566 = scalar_lea.vmem %s7, %s565
        $region56: #{tpu_custom_call.1} parent=39 // pred_fallthru
          _
        // Predicated region
        $region57: #{tpu_custom_call.1} parent=39 // pred_check
          %p567 = pneg %p247
        $region58: #{tpu_custom_call.1} parent=39 // pred_check_branch
          %569 = sbr.rel (%p567) target = $region60
        $region59: #{tpu_custom_call.1} parent=39 // pred_region
          %p570 = scmp.lt.s32.totalorder %s35, 1
          %s571 = scalar_select %p570, %s35, 1
          %s572 = scalar_lea.vmem %s8, %s571
        $region60: #{tpu_custom_call.1} parent=39 // pred_fallthru
          _
        // Predicated region
        $region61: #{tpu_custom_call.1} parent=39 // pred_check
          %p573 = pneg %p273
        $region62: #{tpu_custom_call.1} parent=39 // pred_check_branch
          %575 = sbr.rel (%p573) target = $region64
        $region63: #{tpu_custom_call.1} parent=39 // pred_region
          %p576 = scmp.lt.s32.totalorder %s35, 1
          %s577 = scalar_select %p576, %s35, 1
          %s578 = smul.addr %s577, 4
          %s579 = smul.addr %s578, 4
          %s580 = scalar_lea.vmem %s9, %s579
        $region64: #{tpu_custom_call.1} parent=39 // pred_fallthru
          _
        // Predicated region
        $region65: #{tpu_custom_call.1} parent=39 // pred_check
          %p581 = pneg %p299
        $region66: #{tpu_custom_call.1} parent=39 // pred_check_branch
          %583 = sbr.rel (%p581) target = $region68
        $region67: #{tpu_custom_call.1} parent=39 // pred_region
          %p584 = scmp.lt.s32.totalorder %s35, 1
          %s585 = scalar_select %p584, %s35, 1
          %s586 = smul.addr %s585, 4
          %s587 = smul.addr %s586, 4
          %s588 = scalar_lea.vmem %s10, %s587
        $region68: #{tpu_custom_call.1} parent=39 // pred_fallthru
          _
        // Predicated region
        $region69: #{tpu_custom_call.1} parent=39 // pred_check
          %p589 = pneg %p325
        $region70: #{tpu_custom_call.1} parent=39 // pred_check_branch
          %591 = sbr.rel (%p589) target = $region72
        $region71: #{tpu_custom_call.1} parent=39 // pred_region
          %p592 = scmp.lt.s32.totalorder %s35, 1
          %s593 = scalar_select %p592, %s35, 1
          %s594 = smul.addr %s593, 8
          %s595 = smul.addr %s594, 4
          %s596 = scalar_lea.vmem %s11, %s595
        $region72: #{tpu_custom_call.1} parent=39 // pred_fallthru
          _
        // Predicated region
        $region73: #{tpu_custom_call.1} parent=39 // pred_check
          %p597 = pneg %p351
        $region74: #{tpu_custom_call.1} parent=39 // pred_check_branch
          %599 = sbr.rel (%p597) target = $region76
        $region75: #{tpu_custom_call.1} parent=39 // pred_region
          %p600 = scmp.lt.s32.totalorder %s35, 1
          %s601 = scalar_select %p600, %s35, 1
          %s602 = scalar_lea.vmem %s12, %s601
        $region76: #{tpu_custom_call.1} parent=39 // pred_fallthru
          _
        // Predicated region
        $region77: #{tpu_custom_call.1} parent=39 // pred_check
          %p603 = pneg %p377
        $region78: #{tpu_custom_call.1} parent=39 // pred_check_branch
          %605 = sbr.rel (%p603) target = $region80
        $region79: #{tpu_custom_call.1} parent=39 // pred_region
          %p606 = scmp.lt.s32.totalorder %s35, 1
          %s607 = scalar_select %p606, %s35, 1
          %s608 = scalar_lea.vmem %s13, %s607
        $region80: #{tpu_custom_call.1} parent=39 // pred_fallthru
          _
        // Predicated region
        $region81: #{tpu_custom_call.1} parent=39 // pred_check
          %p609 = pneg %p403
        $region82: #{tpu_custom_call.1} parent=39 // pred_check_branch
          %611 = sbr.rel (%p609) target = $region84
        $region83: #{tpu_custom_call.1} parent=39 // pred_region
          %p612 = scmp.lt.s32.totalorder %s35, 1
          %s613 = scalar_select %p612, %s35, 1
          %s614 = smul.addr %s613, 4
          %s615 = smul.addr %s614, 4
          %s616 = scalar_lea.vmem %s14, %s615
        $region84: #{tpu_custom_call.1} parent=39 // pred_fallthru
          _
        // Predicated region
        $region85: #{tpu_custom_call.1} parent=39 // pred_check
          %p617 = pneg %p429
        $region86: #{tpu_custom_call.1} parent=39 // pred_check_branch
          %619 = sbr.rel (%p617) target = $region88
        $region87: #{tpu_custom_call.1} parent=39 // pred_region
          %p620 = scmp.lt.s32.totalorder %s35, 1
          %s621 = scalar_select %p620, %s35, 1
          %s622 = smul.addr %s621, 8
          %s623 = smul.addr %s622, 4
          %s624 = scalar_lea.vmem %s15, %s623
        $region88: #{tpu_custom_call.1} parent=39 // pred_fallthru
          _
      $region40: #{tpu_custom_call.1} parent=5 // pred_fallthru
        _
      %p625 = scmp.le.s32.totalorder 1, %s27
      %p626 = scmp.lt.s32.totalorder %s27, 5
      %p627 = pnand %p625, %p626
      %p628 = pneg %p627
      // Predicated region
      $region89: #{tpu_custom_call.1} parent=5 // pred_check
        _
      $region90: #{tpu_custom_call.1} parent=5 // pred_check_branch
        %630 = sbr.rel (%p627) target = $region92
      $region91: #{tpu_custom_call.1} parent=5 // pred_region
        %s631 = ssub.s32 %s27, 1
        %s632 = smul.u32 2, %s36
        %p633 = scmp.lt.s32.totalorder %s632, 3
        %s634 = scalar_select %p633, %s632, 3
        %s635 = smul.addr %s634, 8
        %s636 = scalar_lea.vmem %s0, %s635
        %p637 = pneg %p65
        %p638 = pneg %p62
        %p639 = pneg %p86
        %p640 = pneg %p83
        %p641 = pneg %p107
        %p642 = pneg %p104
        %p643 = pneg %p128
        %p644 = pneg %p125
        %p645 = pneg %p149
        %p646 = pneg %p146
        %p647 = scmp.lt.s32.totalorder %s37, 1
        %s648 = scalar_select %p647, %s37, 1
        %s649 = scalar_lea.vmem %s5, %s648
        %p650 = pneg %p175
        %p651 = pneg %p172
        %p652 = scmp.lt.s32.totalorder %s37, 1
        %s653 = scalar_select %p652, %s37, 1
        %s654 = scalar_lea.vmem %s6, %s653
        %p655 = pneg %p201
        %p656 = pneg %p198
        %p657 = scmp.lt.s32.totalorder %s37, 1
        %s658 = scalar_select %p657, %s37, 1
        %s659 = scalar_lea.vmem %s7, %s658
        %p660 = pneg %p227
        %p661 = pneg %p224
        %p662 = scmp.lt.s32.totalorder %s37, 1
        %s663 = scalar_select %p662, %s37, 1
        %s664 = scalar_lea.vmem %s8, %s663
        %p665 = pneg %p253
        %p666 = pneg %p250
        %p667 = scmp.lt.s32.totalorder %s37, 1
        %s668 = scalar_select %p667, %s37, 1
        %s669 = smul.addr %s668, 4
        %s670 = smul.addr %s669, 4
        %s671 = scalar_lea.vmem %s9, %s670
        %p672 = pneg %p279
        %p673 = pneg %p276
        %p674 = scmp.lt.s32.totalorder %s37, 1
        %s675 = scalar_select %p674, %s37, 1
        %s676 = smul.addr %s675, 4
        %s677 = smul.addr %s676, 4
        %s678 = scalar_lea.vmem %s10, %s677
        %p679 = pneg %p305
        %p680 = pneg %p302
        %p681 = scmp.lt.s32.totalorder %s37, 1
        %s682 = scalar_select %p681, %s37, 1
        %s683 = smul.addr %s682, 8
        %s684 = smul.addr %s683, 4
        %s685 = scalar_lea.vmem %s11, %s684
        %p686 = pneg %p331
        %p687 = pneg %p328
        %p688 = scmp.lt.s32.totalorder %s37, 1
        %s689 = scalar_select %p688, %s37, 1
        %s690 = scalar_lea.vmem %s12, %s689
        %p691 = pneg %p357
        %p692 = pneg %p354
        %p693 = scmp.lt.s32.totalorder %s37, 1
        %s694 = scalar_select %p693, %s37, 1
        %s695 = scalar_lea.vmem %s13, %s694
        %p696 = pneg %p383
        %p697 = pneg %p380
        %p698 = scmp.lt.s32.totalorder %s37, 1
        %s699 = scalar_select %p698, %s37, 1
        %s700 = smul.addr %s699, 4
        %s701 = smul.addr %s700, 4
        %s702 = scalar_lea.vmem %s14, %s701
        %p703 = pneg %p409
        %p704 = pneg %p406
        %p705 = scmp.lt.s32.totalorder %s37, 1
        %s706 = scalar_select %p705, %s37, 1
        %s707 = smul.addr %s706, 8
        %s708 = smul.addr %s707, 4
        %s709 = scalar_lea.vmem %s15, %s708
        %p710 = pneg %p435
        %p711 = pneg %p432
        %p712 = pneg %p456
        %p713 = pneg %p453
        %p714 = pneg %p477
        %p715 = pneg %p474
        %p716 = pneg %p503
        %p717 = pneg %p500
        %s718 = sand.u32 %s490, 1
        %s719 = scalar_lea.sflag [#allocation7], %s718
        %s720 = sand.u32 %s490, 1
        %s721 = smul.addr %s720, 16
        %s722 = scalar_lea.vmem [#allocation6], %s721
        %s723 = smul.u32 2, %s36
        %p724 = scmp.lt.s32.totalorder %s723, 3
        %s725 = scalar_select %p724, %s723, 3
        %s726 = smul.addr %s725, 8
        %s727 = scalar_lea.vmem %s0, %s726
        %s728 = smul.u32 2, %s36
        %p729 = scmp.lt.s32.totalorder %s37, 1
        %s730 = scalar_select %p729, %s37, 1
        %s731 = scalar_lea.vmem %s5, %s730
        %p732 = scmp.lt.s32.totalorder %s37, 1
        %s733 = scalar_select %p732, %s37, 1
        %s734 = scalar_lea.vmem %s6, %s733
        %p735 = scmp.lt.s32.totalorder %s37, 1
        %s736 = scalar_select %p735, %s37, 1
        %s737 = scalar_lea.vmem %s7, %s736
        %p738 = scmp.lt.s32.totalorder %s37, 1
        %s739 = scalar_select %p738, %s37, 1
        %s740 = scalar_lea.vmem %s8, %s739
        %p741 = scmp.lt.s32.totalorder %s37, 1
        %s742 = scalar_select %p741, %s37, 1
        %s743 = smul.addr %s742, 4
        %s744 = smul.addr %s743, 4
        %s745 = scalar_lea.vmem %s9, %s744
        %p746 = scmp.lt.s32.totalorder %s37, 1
        %s747 = scalar_select %p746, %s37, 1
        %s748 = smul.addr %s747, 4
        %s749 = smul.addr %s748, 4
        %s750 = scalar_lea.vmem %s10, %s749
        %p751 = scmp.lt.s32.totalorder %s37, 1
        %s752 = scalar_select %p751, %s37, 1
        %s753 = smul.addr %s752, 8
        %s754 = smul.addr %s753, 4
        %s755 = scalar_lea.vmem %s11, %s754
        %p756 = scmp.lt.s32.totalorder %s37, 1
        %s757 = scalar_select %p756, %s37, 1
        %s758 = scalar_lea.vmem %s12, %s757
        %p759 = scmp.lt.s32.totalorder %s37, 1
        %s760 = scalar_select %p759, %s37, 1
        %s761 = scalar_lea.vmem %s13, %s760
        %p762 = scmp.lt.s32.totalorder %s37, 1
        %s763 = scalar_select %p762, %s37, 1
        %s764 = smul.addr %s763, 4
        %s765 = smul.addr %s764, 4
        %s766 = scalar_lea.vmem %s14, %s765
        %p767 = scmp.lt.s32.totalorder %s37, 1
        %s768 = scalar_select %p767, %s37, 1
        %s769 = smul.addr %s768, 8
        %s770 = smul.addr %s769, 4
        %s771 = scalar_lea.vmem %s15, %s770
        %s772 = smul.u32 2, %s36
        %p774 = scmp.eq.s32.totalorder %s37, 0
        // Predicated region
        $region93: #{tpu_custom_call.1} parent=91 // pred_check
          %p775 = pneg %p774
        $region94: #{tpu_custom_call.1} parent=91 // pred_check_branch
          %777 = sbr.rel (%p775) target = $region96
        $region95: #{tpu_custom_call.1} parent=91 // pred_region
          %v778 = vld [vmem:[%s727] sm:$0xff]
          %v779 = vld [vmem:[%s727 + $0x8] sm:$0xff]
          %v780 = vpack.c.bf16 %v779, %v778
          %v781 = vld [vmem:[%s3] sm:$0xf]
          %v782 = vld [vmem:[%s3 + $0x4] sm:$0xf]
          %v783 = vld [vmem:[%s4] sm:$0x1]
          %v785 = vlaneseq
          %v786 = vshrl.u32 %v785, 7
          %v787 = vsub.s32 0, %v786
          %v788 = vrot.slane %v783, %v787
          %v792 = vunpack.c.l.b16 %v781
          %v793 = vunpack.c.l.b16 %v782
          %v794 = vpack.c.b16 %v793, %v792
          %vm796 = vcmask 130048
          %v798 = vsel %vm796, %v780, 0
          %800 = vmatprep.subr.bf16.mxu0 0
          %801 = vmatpush1.bf16.msra.mxu0 0
          %802 = vmatprep.subr.bf16.mxu0 0
          %803 = vmatpush1.bf16.msra.mxu0 0
          %804 = vmatprep.subr.bf16.mxu0 0
          %805 = vmatpush1.bf16.msra.mxu0 0
          %806 = vmatprep.subr.bf16.mxu0 0
          %807 = vmatpush1.bf16.msra.mxu0 0
          %808 = vmatprep.subr.bf16.mxu0 0
          %809 = vmatpush1.bf16.msra.mxu0 0
          %810 = vmatprep.subr.bf16.mxu0 0
          %811 = vmatpush1.bf16.msra.mxu0 0
          %812 = vmatprep.subr.bf16.mxu0 0
          %813 = vmatpush1.bf16.msra.mxu0 0
          %814 = vmatprep.subr.bf16.mxu0 0
          %815 = vmatpush1.bf16.msra.mxu0 %v794
          %816 = vmatprep.subr.bf16.mxu0 0
          %817 = vmatpush2.bf16.msra.mxu0 0
          %818 = vmatprep.subr.bf16.mxu0 0
          %819 = vmatpush2.bf16.msra.mxu0 0
          %820 = vmatprep.subr.bf16.mxu0 0
          %821 = vmatpush2.bf16.msra.mxu0 0
          %822 = vmatprep.subr.bf16.mxu0 0
          %823 = vmatpush2.bf16.msra.mxu0 0
          %824 = vmatprep.subr.bf16.mxu0 0
          %825 = vmatpush2.bf16.msra.mxu0 0
          %826 = vmatprep.subr.bf16.mxu0 0
          %827 = vmatpush2.bf16.msra.mxu0 0
          %828 = vmatprep.subr.bf16.mxu0 0
          %829 = vmatpush2.bf16.msra.mxu0 0
          %830 = vmatprep.subr.bf16.mxu0 0
          %831 = vmatpush2.bf16.msra.mxu0 0
          %832 = vmatprep.mubr.bf16.mxu0 0
          %833 = vmatmul.mubr.bf16.gmra.mxu0 %v798
          %v834 = vpop.f32.mrf.mxu0
          %v835 = vadd.f32 %v788, %v834
          %v836 = vpop.f32.mrf.mxu0
          %v837 = vpop.f32.mrf.mxu0
          %v838 = vadd.f32 %v788, %v837
          %v839 = vpop.f32.mrf.mxu0
          %840 = vdwg.mxu0
          %v841 = vld [vmem:[%s2] sm:$0xff]
          %v842 = vld [vmem:[%s1] sm:$0xff]
          %v843 = vadd.f32 %v835, %v841
          %vm844 = vcmask 261120
          %845 = vst.msk [vmem:[#allocation2] sm:$0xff] %vm844, %v843
          %846 = vst.msk [vmem:[#allocation3] sm:$0xff] %vm844, %v842
          %v847 = vadd.f32 %v838, %v841
          %848 = vst.msk [vmem:[#allocation2 + $0x8] sm:$0xff] %vm844, %v847
          %849 = vst.msk [vmem:[#allocation3 + $0x8] sm:$0xff] %vm844, %v842
        $region96: #{tpu_custom_call.1} parent=91 // pred_fallthru
          _
        %v850 = vld [vmem:[#allocation2] sm:$0xff]
        %v851 = vld [vmem:[#allocation2 + $0x8] sm:$0xff]
        %v852 = vld [vmem:[#allocation3] sm:$0xff]
        %v853 = vld [vmem:[#allocation3 + $0x8] sm:$0xff]
        %v854 = vld [vmem:[%s731] sm:$0x1]
        %v855 = vld [vmem:[%s734] sm:$0x1]
        %vm856 = vcmask 261120
        %v857 = vsel %vm856, %v850, 0.0
        %858 = vadd.xlane.f32.xlu0 %v857
        %v859 = vpop.xlane.xlu0 %858
        %v860 = vsel %vm856, %v851, 0.0
        %861 = vadd.xlane.f32.xlu0 %v860
        %v862 = vpop.xlane.xlu0 %861
        %v863 = vrcp.pop 32.0
        %v864 = vmul.f32 %v859, %v863
        %v865 = vmul.f32 %v862, %v863
        %v866 = vsub.f32 %v850, %v864
        %v867 = vsub.f32 %v851, %v865
        %v868 = vmul.f32 %v866, %v866
        %v869 = vmul.f32 %v867, %v867
        %v870 = vsel %vm856, %v868, 0.0
        %871 = vadd.xlane.f32.xlu0 %v870
        %v872 = vpop.xlane.xlu0 %871
        %v873 = vsel %vm856, %v869, 0.0
        %874 = vadd.xlane.f32.xlu0 %v873
        %v875 = vpop.xlane.xlu0 %874
        %v876 = vmul.f32 %v872, %v863
        %v877 = vmul.f32 %v875, %v863
        %v878 = vadd.f32 %v876, 1e-05
        %v879 = vadd.f32 %v877, 1e-05
        %v880 = vrsqrt.pop %v878
        %v881 = vrsqrt.pop %v879
        %v882 = vmul.f32 %v866, %v880
        %v883 = vmul.f32 %v867, %v881
        %v885 = vlaneseq
        %v886 = vshrl.u32 %v885, 7
        %v887 = vsub.s32 0, %v886
        %v888 = vrot.slane %v854, %v887
        %v890 = vmul.f32 %v882, %v888
        %v891 = vmul.f32 %v883, %v888
        %v893 = vlaneseq
        %v894 = vshrl.u32 %v893, 7
        %v895 = vsub.s32 0, %v894
        %v896 = vrot.slane %v855, %v895
        %v898 = vadd.f32 %v890, %v896
        %v899 = vadd.f32 %v891, %v896
        %v900 = vld [vmem:[%s737] sm:$0x1]
        %v901 = vld [vmem:[%s740] sm:$0x1]
        %v902 = vsel %vm856, %v852, 0.0
        %903 = vadd.xlane.f32.xlu0 %v902
        %v904 = vpop.xlane.xlu0 %903
        %v905 = vsel %vm856, %v853, 0.0
        %906 = vadd.xlane.f32.xlu0 %v905
        %v907 = vpop.xlane.xlu0 %906
        %v908 = vmul.f32 %v904, %v863
        %v909 = vmul.f32 %v907, %v863
        %v910 = vsub.f32 %v852, %v908
        %v911 = vsub.f32 %v853, %v909
        %v912 = vmul.f32 %v910, %v910
        %v913 = vmul.f32 %v911, %v911
        %v914 = vsel %vm856, %v912, 0.0
        %915 = vadd.xlane.f32.xlu0 %v914
        %v916 = vpop.xlane.xlu0 %915
        %v917 = vsel %vm856, %v913, 0.0
        %918 = vadd.xlane.f32.xlu0 %v917
        %v919 = vpop.xlane.xlu0 %918
        %v920 = vmul.f32 %v916, %v863
        %v921 = vmul.f32 %v919, %v863
        %v922 = vadd.f32 %v920, 1e-05
        %v923 = vadd.f32 %v921, 1e-05
        %v924 = vrsqrt.pop %v922
        %v925 = vrsqrt.pop %v923
        %v926 = vmul.f32 %v910, %v924
        %v927 = vmul.f32 %v911, %v925
        %v929 = vlaneseq
        %v930 = vshrl.u32 %v929, 7
        %v931 = vsub.s32 0, %v930
        %v932 = vrot.slane %v900, %v931
        %v934 = vmul.f32 %v926, %v932
        %v935 = vmul.f32 %v927, %v932
        %v937 = vlaneseq
        %v938 = vshrl.u32 %v937, 7
        %v939 = vsub.s32 0, %v938
        %v940 = vrot.slane %v901, %v939
        %v942 = vadd.f32 %v934, %v940
        %v943 = vadd.f32 %v935, %v940
        %v944 = vpack.c.bf16 %v898, %v898
        %vm945 = vcmask 257024
        %946 = vst.msk [vmem:[#allocation4] sm:$0xf] %vm945, %v944
        %v947 = vpack.c.bf16 %v942, %v942
        %948 = vst.msk [vmem:[#allocation4 + $0x4] sm:$0xf] %vm945, %v947
        %v949 = vpack.c.bf16 %v899, %v899
        %950 = vst.msk [vmem:[#allocation4 + $0x8] sm:$0xf] %vm945, %v949
        %v951 = vpack.c.bf16 %v943, %v943
        %952 = vst.msk [vmem:[#allocation4 + $0xc] sm:$0xf] %vm945, %v951
        %v953 = vpack.c.bf16 %v943, %v942
        %v954 = vld [vmem:[%s745] sm:$0xf]
        %v955 = vld [vmem:[%s745 + $0x4] sm:$0xf]
        %v956 = vld [vmem:[%s745 + $0x8] sm:$0xf]
        %v957 = vld [vmem:[%s745 + $0xc] sm:$0xf]
        %v962 = vunpack.c.l.b16 %v954
        %v963 = vunpack.c.l.b16 %v955
        %v964 = vunpack.c.l.b16 %v956
        %v965 = vunpack.c.l.b16 %v957
        %v966 = vpack.c.b16 %v963, %v962
        %v967 = vpack.c.b16 %v965, %v964
        %v971 = vsel %vm856, %v953, 0
        %973 = vmatprep.subr.bf16.mxu0 0
        %974 = vmatpush1.bf16.msra.mxu0 0
        %975 = vmatprep.subr.bf16.mxu0 0
        %976 = vmatpush1.bf16.msra.mxu0 0
        %977 = vmatprep.subr.bf16.mxu0 0
        %978 = vmatpush1.bf16.msra.mxu0 0
        %979 = vmatprep.subr.bf16.mxu0 0
        %980 = vmatpush1.bf16.msra.mxu0 0
        %981 = vmatprep.subr.bf16.mxu0 0
        %982 = vmatpush1.bf16.msra.mxu0 0
        %983 = vmatprep.subr.bf16.mxu0 0
        %984 = vmatpush1.bf16.msra.mxu0 0
        %985 = vmatprep.subr.bf16.mxu0 0
        %986 = vmatpush1.bf16.msra.mxu0 %v967
        %987 = vmatprep.subr.bf16.mxu0 0
        %988 = vmatpush1.bf16.msra.mxu0 %v966
        %989 = vmatprep.subr.bf16.mxu0 0
        %990 = vmatpush2.bf16.msra.mxu0 0
        %991 = vmatprep.subr.bf16.mxu0 0
        %992 = vmatpush2.bf16.msra.mxu0 0
        %993 = vmatprep.subr.bf16.mxu0 0
        %994 = vmatpush2.bf16.msra.mxu0 0
        %995 = vmatprep.subr.bf16.mxu0 0
        %996 = vmatpush2.bf16.msra.mxu0 0
        %997 = vmatprep.subr.bf16.mxu0 0
        %998 = vmatpush2.bf16.msra.mxu0 0
        %999 = vmatprep.subr.bf16.mxu0 0
        %1000 = vmatpush2.bf16.msra.mxu0 0
        %1001 = vmatprep.subr.bf16.mxu0 0
        %1002 = vmatpush2.bf16.msra.mxu0 0
        %1003 = vmatprep.subr.bf16.mxu0 0
        %1004 = vmatpush2.bf16.msra.mxu0 0
        %1005 = vmatprep.mubr.bf16.mxu0 0
        %1006 = vmatmul.mubr.bf16.gmra.mxu0 %v971
        %v1007 = vpop.f32.mrf.mxu0
        %v1008 = vadd.f32 0.0, %v1007
        %v1009 = vpop.f32.mrf.mxu0
        %v1010 = vpop.f32.mrf.mxu0
        %v1011 = vadd.f32 0.0, %v1010
        %v1012 = vpop.f32.mrf.mxu0
        %1013 = vdwg.mxu0
        %v1014 = vpack.c.bf16 %v1011, %v1008
        %v1015 = vld [vmem:[#allocation4] sm:$0xf]
        %v1016 = vld [vmem:[#allocation4 + $0x4] sm:$0xf]
        %v1017 = vld [vmem:[#allocation4 + $0x8] sm:$0xf]
        %v1018 = vld [vmem:[#allocation4 + $0xc] sm:$0xf]
        %v1019 = vld [vmem:[%s750] sm:$0xf]
        %v1020 = vld [vmem:[%s750 + $0x4] sm:$0xf]
        %v1021 = vld [vmem:[%s750 + $0x8] sm:$0xf]
        %v1022 = vld [vmem:[%s750 + $0xc] sm:$0xf]
        %v1027 = vunpack.c.l.b16 %v1015
        %v1028 = vunpack.c.l.b16 %v1016
        %v1029 = vunpack.c.l.b16 %v1017
        %v1030 = vunpack.c.l.b16 %v1018
        %v1031 = vpack.c.b16 %v1028, %v1027
        %v1032 = vpack.c.b16 %v1030, %v1029
        %v1037 = vunpack.c.l.b16 %v1019
        %v1038 = vunpack.c.l.b16 %v1020
        %v1039 = vunpack.c.l.b16 %v1021
        %v1040 = vunpack.c.l.b16 %v1022
        %v1041 = vpack.c.b16 %v1038, %v1037
        %v1042 = vpack.c.b16 %v1040, %v1039
        %v1046 = vsel %vm856, %v1031, 0
        %v1049 = vsel %vm856, %v1032, 0
        %1051 = vmatprep.subr.bf16.mxu0 0
        %1052 = vmatpush1.bf16.msra.mxu0 0
        %1053 = vmatprep.subr.bf16.mxu0 0
        %1054 = vmatpush1.bf16.msra.mxu0 0
        %1055 = vmatprep.subr.bf16.mxu0 0
        %1056 = vmatpush1.bf16.msra.mxu0 0
        %1057 = vmatprep.subr.bf16.mxu0 0
        %1058 = vmatpush1.bf16.msra.mxu0 0
        %1059 = vmatprep.subr.bf16.mxu0 0
        %1060 = vmatpush1.bf16.msra.mxu0 0
        %1061 = vmatprep.subr.bf16.mxu0 0
        %1062 = vmatpush1.bf16.msra.mxu0 0
        %1063 = vmatprep.subr.bf16.mxu0 0
        %1064 = vmatpush1.bf16.msra.mxu0 %v1042
        %1065 = vmatprep.subr.bf16.mxu0 0
        %1066 = vmatpush1.bf16.msra.mxu0 %v1041
        %1067 = vmatprep.subr.bf16.mxu0 0
        %1068 = vmatpush2.bf16.msra.mxu0 0
        %1069 = vmatprep.subr.bf16.mxu0 0
        %1070 = vmatpush2.bf16.msra.mxu0 0
        %1071 = vmatprep.subr.bf16.mxu0 0
        %1072 = vmatpush2.bf16.msra.mxu0 0
        %1073 = vmatprep.subr.bf16.mxu0 0
        %1074 = vmatpush2.bf16.msra.mxu0 0
        %1075 = vmatprep.subr.bf16.mxu0 0
        %1076 = vmatpush2.bf16.msra.mxu0 0
        %1077 = vmatprep.subr.bf16.mxu0 0
        %1078 = vmatpush2.bf16.msra.mxu0 0
        %1079 = vmatprep.subr.bf16.mxu0 0
        %1080 = vmatpush2.bf16.msra.mxu0 0
        %1081 = vmatprep.subr.bf16.mxu0 0
        %1082 = vmatpush2.bf16.msra.mxu0 0
        %1083 = vmatprep.mubr.bf16.mxu0 0
        %1084 = vmatmul.mubr.bf16.gmra.mxu0 %v1046
        %v1085 = vpop.f32.mrf.mxu0
        %v1086 = vadd.f32 0.0, %v1085
        %v1087 = vpop.f32.mrf.mxu0
        %v1088 = vpop.f32.mrf.mxu0
        %v1089 = vadd.f32 0.0, %v1088
        %v1090 = vpop.f32.mrf.mxu0
        %1091 = vmatprep.mubr.bf16.mxu0 0
        %1092 = vmatmul.mubr.bf16.gmra.mxu0 %v1049
        %v1093 = vpop.f32.mrf.mxu0
        %v1094 = vadd.f32 0.0, %v1093
        %v1095 = vpop.f32.mrf.mxu0
        %v1096 = vpop.f32.mrf.mxu0
        %v1097 = vadd.f32 0.0, %v1096
        %v1098 = vpop.f32.mrf.mxu0
        %1099 = vdwg.mxu0
        %v1100 = vpack.c.bf16 %v1089, %v1086
        %v1101 = vpack.c.bf16 %v1097, %v1094
        %vm1102 = vcmask 130048
        %v1104 = vsel %vm1102, %v1014, 0
        %v1107 = vsel %vm1102, %v1100, 0
        %1109 = vmatprep.subr.bf16.mxu0 0
        %1110 = vmatpush1.bf16.xpose.msra.mxu0 0
        %1111 = vmatprep.subr.bf16.mxu0 0
        %1112 = vmatpush1.bf16.xpose.msra.mxu0 0
        %1113 = vmatprep.subr.bf16.mxu0 0
        %1114 = vmatpush1.bf16.xpose.msra.mxu0 0
        %1115 = vmatprep.subr.bf16.mxu0 0
        %1116 = vmatpush1.bf16.xpose.msra.mxu0 0
        %1117 = vmatprep.subr.bf16.mxu0 0
        %1118 = vmatpush1.bf16.xpose.msra.mxu0 0
        %1119 = vmatprep.subr.bf16.mxu0 0
        %1120 = vmatpush1.bf16.xpose.msra.mxu0 0
        %1121 = vmatprep.subr.bf16.mxu0 0
        %1122 = vmatpush1.bf16.xpose.msra.mxu0 0
        %1123 = vmatprep.subr.bf16.mxu0 0
        %1124 = vmatpush1.bf16.xpose.msra.mxu0 %v1107
        %1125 = vmatprep.subr.bf16.mxu0 0
        %1126 = vmatpush2.bf16.xpose.msra.mxu0 0
        %1127 = vmatprep.subr.bf16.mxu0 0
        %1128 = vmatpush2.bf16.xpose.msra.mxu0 0
        %1129 = vmatprep.subr.bf16.mxu0 0
        %1130 = vmatpush2.bf16.xpose.msra.mxu0 0
        %1131 = vmatprep.subr.bf16.mxu0 0
        %1132 = vmatpush2.bf16.xpose.msra.mxu0 0
        %1133 = vmatprep.subr.bf16.mxu0 0
        %1134 = vmatpush2.bf16.xpose.msra.mxu0 0
        %1135 = vmatprep.subr.bf16.mxu0 0
        %1136 = vmatpush2.bf16.xpose.msra.mxu0 0
        %1137 = vmatprep.subr.bf16.mxu0 0
        %1138 = vmatpush2.bf16.xpose.msra.mxu0 0
        %1139 = vmatprep.subr.bf16.mxu0 0
        %1140 = vmatpush2.bf16.xpose.msra.mxu0 0
        %1141 = vmatprep.mubr.bf16.mxu0 0
        %1142 = vmatmul.mubr.bf16.gmra.mxu0 %v1104
        %v1143 = vpop.f32.mrf.mxu0
        %v1144 = vadd.f32 0.0, %v1143
        %v1145 = vpop.f32.mrf.mxu0
        %v1146 = vpop.f32.mrf.mxu0
        %v1147 = vpop.f32.mrf.mxu0
        %1148 = vdwg.mxu0
        %v1149 = vsel %vm1102, %v1144, -inf
        %1150 = vmax.xlane.f32.xlu0 %v1149
        %v1151 = vpop.xlane.xlu0 %1150
        %v1152 = vsub.f32 %v1144, %v1151
        %v1153 = vmul.f32 %v1152, 1.442695
        %v1154 = vpow.pop %v1153
        %v1155 = vsel %vm1102, %v1154, 0.0
        %1156 = vadd.xlane.f32.xlu0 %v1155
        %v1157 = vpop.xlane.xlu0 %1156
        %v1158 = vrcp.pop %v1157
        %v1159 = vmul.f32 %v1154, %v1158
        %v1160 = vpack.c.bf16 %v1159, %v1159
        %1162 = vrot.lane.b32.xlu0 %v1100, 64
        %v1163 = vpop.permute.xlu0 %1162
        %v1166 = vsel %vm1102, %v1160, 0
        %1168 = vmatprep.subr.bf16.mxu0 0
        %1169 = vmatpush1.bf16.msra.mxu0 0
        %1170 = vmatprep.subr.bf16.mxu0 0
        %1171 = vmatpush1.bf16.msra.mxu0 0
        %1172 = vmatprep.subr.bf16.mxu0 0
        %1173 = vmatpush1.bf16.msra.mxu0 0
        %1174 = vmatprep.subr.bf16.mxu0 0
        %1175 = vmatpush1.bf16.msra.mxu0 0
        %1176 = vmatprep.subr.bf16.mxu0 0
        %1177 = vmatpush1.bf16.msra.mxu0 0
        %1178 = vmatprep.subr.bf16.mxu0 0
        %1179 = vmatpush1.bf16.msra.mxu0 0
        %1180 = vmatprep.subr.bf16.mxu0 0
        %1181 = vmatpush1.bf16.msra.mxu0 0
        %1182 = vmatprep.subr.bf16.mxu0 0
        %1183 = vmatpush1.bf16.msra.mxu0 %v1163
        %1184 = vmatprep.subr.bf16.mxu0 0
        %1185 = vmatpush2.bf16.msra.mxu0 0
        %1186 = vmatprep.subr.bf16.mxu0 0
        %1187 = vmatpush2.bf16.msra.mxu0 0
        %1188 = vmatprep.subr.bf16.mxu0 0
        %1189 = vmatpush2.bf16.msra.mxu0 0
        %1190 = vmatprep.subr.bf16.mxu0 0
        %1191 = vmatpush2.bf16.msra.mxu0 0
        %1192 = vmatprep.subr.bf16.mxu0 0
        %1193 = vmatpush2.bf16.msra.mxu0 0
        %1194 = vmatprep.subr.bf16.mxu0 0
        %1195 = vmatpush2.bf16.msra.mxu0 0
        %1196 = vmatprep.subr.bf16.mxu0 0
        %1197 = vmatpush2.bf16.msra.mxu0 0
        %1198 = vmatprep.subr.bf16.mxu0 0
        %1199 = vmatpush2.bf16.msra.mxu0 0
        %1200 = vmatprep.mubr.bf16.mxu0 0
        %1201 = vmatmul.mubr.bf16.gmra.mxu0 %v1166
        %v1202 = vpop.f32.mrf.mxu0
        %v1203 = vadd.f32 0.0, %v1202
        %v1204 = vpop.f32.mrf.mxu0
        %v1205 = vpop.f32.mrf.mxu0
        %v1206 = vpop.f32.mrf.mxu0
        %1207 = vdwg.mxu0
        %v1208 = vpack.c.bf16 %v1203, %v1203
        %vm1209 = vcmask 125952
        %1210 = vst.msk [vmem:[#allocation5] sm:$0xf] %vm1209, %v1208
        %1212 = vrot.lane.b32.xlu0 %v1014, 112
        %v1213 = vpop.permute.xlu0 %1212
        %1214 = vrot.lane.b32.xlu0 %v1100, 112
        %v1215 = vpop.permute.xlu0 %1214
        %v1217 = vsel %vm1102, %v1213, 0
        %v1220 = vsel %vm1102, %v1215, 0
        %1222 = vmatprep.subr.bf16.mxu0 0
        %1223 = vmatpush1.bf16.xpose.msra.mxu0 0
        %1224 = vmatprep.subr.bf16.mxu0 0
        %1225 = vmatpush1.bf16.xpose.msra.mxu0 0
        %1226 = vmatprep.subr.bf16.mxu0 0
        %1227 = vmatpush1.bf16.xpose.msra.mxu0 0
        %1228 = vmatprep.subr.bf16.mxu0 0
        %1229 = vmatpush1.bf16.xpose.msra.mxu0 0
        %1230 = vmatprep.subr.bf16.mxu0 0
        %1231 = vmatpush1.bf16.xpose.msra.mxu0 0
        %1232 = vmatprep.subr.bf16.mxu0 0
        %1233 = vmatpush1.bf16.xpose.msra.mxu0 0
        %1234 = vmatprep.subr.bf16.mxu0 0
        %1235 = vmatpush1.bf16.xpose.msra.mxu0 0
        %1236 = vmatprep.subr.bf16.mxu0 0
        %1237 = vmatpush1.bf16.xpose.msra.mxu0 %v1220
        %1238 = vmatprep.subr.bf16.mxu0 0
        %1239 = vmatpush2.bf16.xpose.msra.mxu0 0
        %1240 = vmatprep.subr.bf16.mxu0 0
        %1241 = vmatpush2.bf16.xpose.msra.mxu0 0
        %1242 = vmatprep.subr.bf16.mxu0 0
        %1243 = vmatpush2.bf16.xpose.msra.mxu0 0
        %1244 = vmatprep.subr.bf16.mxu0 0
        %1245 = vmatpush2.bf16.xpose.msra.mxu0 0
        %1246 = vmatprep.subr.bf16.mxu0 0
        %1247 = vmatpush2.bf16.xpose.msra.mxu0 0
        %1248 = vmatprep.subr.bf16.mxu0 0
        %1249 = vmatpush2.bf16.xpose.msra.mxu0 0
        %1250 = vmatprep.subr.bf16.mxu0 0
        %1251 = vmatpush2.bf16.xpose.msra.mxu0 0
        %1252 = vmatprep.subr.bf16.mxu0 0
        %1253 = vmatpush2.bf16.xpose.msra.mxu0 0
        %1254 = vmatprep.mubr.bf16.mxu0 0
        %1255 = vmatmul.mubr.bf16.gmra.mxu0 %v1217
        %v1256 = vpop.f32.mrf.mxu0
        %v1257 = vadd.f32 0.0, %v1256
        %v1258 = vpop.f32.mrf.mxu0
        %v1259 = vpop.f32.mrf.mxu0
        %v1260 = vpop.f32.mrf.mxu0
        %1261 = vdwg.mxu0
        %v1262 = vsel %vm1102, %v1257, -inf
        %1263 = vmax.xlane.f32.xlu0 %v1262
        %v1264 = vpop.xlane.xlu0 %1263
        %v1265 = vsub.f32 %v1257, %v1264
        %v1266 = vmul.f32 %v1265, 1.442695
        %v1267 = vpow.pop %v1266
        %v1268 = vsel %vm1102, %v1267, 0.0
        %1269 = vadd.xlane.f32.xlu0 %v1268
        %v1270 = vpop.xlane.xlu0 %1269
        %v1271 = vrcp.pop %v1270
        %v1272 = vmul.f32 %v1267, %v1271
        %v1273 = vpack.c.bf16 %v1272, %v1272
        %1274 = vrot.lane.b32.xlu0 %v1100, 48
        %v1275 = vpop.permute.xlu0 %1274
        %v1278 = vsel %vm1102, %v1273, 0
        %1280 = vmatprep.subr.bf16.mxu0 0
        %1281 = vmatpush1.bf16.msra.mxu0 0
        %1282 = vmatprep.subr.bf16.mxu0 0
        %1283 = vmatpush1.bf16.msra.mxu0 0
        %1284 = vmatprep.subr.bf16.mxu0 0
        %1285 = vmatpush1.bf16.msra.mxu0 0
        %1286 = vmatprep.subr.bf16.mxu0 0
        %1287 = vmatpush1.bf16.msra.mxu0 0
        %1288 = vmatprep.subr.bf16.mxu0 0
        %1289 = vmatpush1.bf16.msra.mxu0 0
        %1290 = vmatprep.subr.bf16.mxu0 0
        %1291 = vmatpush1.bf16.msra.mxu0 0
        %1292 = vmatprep.subr.bf16.mxu0 0
        %1293 = vmatpush1.bf16.msra.mxu0 0
        %1294 = vmatprep.subr.bf16.mxu0 0
        %1295 = vmatpush1.bf16.msra.mxu0 %v1275
        %1296 = vmatprep.subr.bf16.mxu0 0
        %1297 = vmatpush2.bf16.msra.mxu0 0
        %1298 = vmatprep.subr.bf16.mxu0 0
        %1299 = vmatpush2.bf16.msra.mxu0 0
        %1300 = vmatprep.subr.bf16.mxu0 0
        %1301 = vmatpush2.bf16.msra.mxu0 0
        %1302 = vmatprep.subr.bf16.mxu0 0
        %1303 = vmatpush2.bf16.msra.mxu0 0
        %1304 = vmatprep.subr.bf16.mxu0 0
        %1305 = vmatpush2.bf16.msra.mxu0 0
        %1306 = vmatprep.subr.bf16.mxu0 0
        %1307 = vmatpush2.bf16.msra.mxu0 0
        %1308 = vmatprep.subr.bf16.mxu0 0
        %1309 = vmatpush2.bf16.msra.mxu0 0
        %1310 = vmatprep.subr.bf16.mxu0 0
        %1311 = vmatpush2.bf16.msra.mxu0 0
        %1312 = vmatprep.mubr.bf16.mxu0 0
        %1313 = vmatmul.mubr.bf16.gmra.mxu0 %v1278
        %v1314 = vpop.f32.mrf.mxu0
        %v1315 = vadd.f32 0.0, %v1314
        %v1316 = vpop.f32.mrf.mxu0
        %v1317 = vpop.f32.mrf.mxu0
        %v1318 = vpop.f32.mrf.mxu0
        %1319 = vdwg.mxu0
        %v1320 = vpack.c.bf16 %v1315, %v1315
        %v1322 = vunpack.c.l.b16 %v1320
        %v1323 = vpack.c.b16 %v1322, %v1322
        %1324 = vrot.lane.b32.xlu0 %v1323, 16
        %v1325 = vpop.permute.xlu0 %1324
        %vm1327 = vcmask 257152
        %1328 = vst.msk [vmem:[#allocation5] sm:$0xf] %vm1327, %v1325
        %1329 = vrot.lane.b32.xlu0 %v1014, 96
        %v1330 = vpop.permute.xlu0 %1329
        %1331 = vrot.lane.b32.xlu0 %v1100, 96
        %v1332 = vpop.permute.xlu0 %1331
        %v1334 = vsel %vm1102, %v1330, 0
        %v1337 = vsel %vm1102, %v1332, 0
        %1339 = vmatprep.subr.bf16.mxu0 0
        %1340 = vmatpush1.bf16.xpose.msra.mxu0 0
        %1341 = vmatprep.subr.bf16.mxu0 0
        %1342 = vmatpush1.bf16.xpose.msra.mxu0 0
        %1343 = vmatprep.subr.bf16.mxu0 0
        %1344 = vmatpush1.bf16.xpose.msra.mxu0 0
        %1345 = vmatprep.subr.bf16.mxu0 0
        %1346 = vmatpush1.bf16.xpose.msra.mxu0 0
        %1347 = vmatprep.subr.bf16.mxu0 0
        %1348 = vmatpush1.bf16.xpose.msra.mxu0 0
        %1349 = vmatprep.subr.bf16.mxu0 0
        %1350 = vmatpush1.bf16.xpose.msra.mxu0 0
        %1351 = vmatprep.subr.bf16.mxu0 0
        %1352 = vmatpush1.bf16.xpose.msra.mxu0 0
        %1353 = vmatprep.subr.bf16.mxu0 0
        %1354 = vmatpush1.bf16.xpose.msra.mxu0 %v1337
        %1355 = vmatprep.subr.bf16.mxu0 0
        %1356 = vmatpush2.bf16.xpose.msra.mxu0 0
        %1357 = vmatprep.subr.bf16.mxu0 0
        %1358 = vmatpush2.bf16.xpose.msra.mxu0 0
        %1359 = vmatprep.subr.bf16.mxu0 0
        %1360 = vmatpush2.bf16.xpose.msra.mxu0 0
        %1361 = vmatprep.subr.bf16.mxu0 0
        %1362 = vmatpush2.bf16.xpose.msra.mxu0 0
        %1363 = vmatprep.subr.bf16.mxu0 0
        %1364 = vmatpush2.bf16.xpose.msra.mxu0 0
        %1365 = vmatprep.subr.bf16.mxu0 0
        %1366 = vmatpush2.bf16.xpose.msra.mxu0 0
        %1367 = vmatprep.subr.bf16.mxu0 0
        %1368 = vmatpush2.bf16.xpose.msra.mxu0 0
        %1369 = vmatprep.subr.bf16.mxu0 0
        %1370 = vmatpush2.bf16.xpose.msra.mxu0 0
        %1371 = vmatprep.mubr.bf16.mxu0 0
        %1372 = vmatmul.mubr.bf16.gmra.mxu0 %v1334
        %v1373 = vpop.f32.mrf.mxu0
        %v1374 = vadd.f32 0.0, %v1373
        %v1375 = vpop.f32.mrf.mxu0
        %v1376 = vpop.f32.mrf.mxu0
        %v1377 = vpop.f32.mrf.mxu0
        %1378 = vdwg.mxu0
        %v1379 = vsel %vm1102, %v1374, -inf
        %1380 = vmax.xlane.f32.xlu0 %v1379
        %v1381 = vpop.xlane.xlu0 %1380
        %v1382 = vsub.f32 %v1374, %v1381
        %v1383 = vmul.f32 %v1382, 1.442695
        %v1384 = vpow.pop %v1383
        %v1385 = vsel %vm1102, %v1384, 0.0
        %1386 = vadd.xlane.f32.xlu0 %v1385
        %v1387 = vpop.xlane.xlu0 %1386
        %v1388 = vrcp.pop %v1387
        %v1389 = vmul.f32 %v1384, %v1388
        %v1390 = vpack.c.bf16 %v1389, %v1389
        %1391 = vrot.lane.b32.xlu0 %v1100, 32
        %v1392 = vpop.permute.xlu0 %1391
        %v1395 = vsel %vm1102, %v1390, 0
        %1397 = vmatprep.subr.bf16.mxu0 0
        %1398 = vmatpush1.bf16.msra.mxu0 0
        %1399 = vmatprep.subr.bf16.mxu0 0
        %1400 = vmatpush1.bf16.msra.mxu0 0
        %1401 = vmatprep.subr.bf16.mxu0 0
        %1402 = vmatpush1.bf16.msra.mxu0 0
        %1403 = vmatprep.subr.bf16.mxu0 0
        %1404 = vmatpush1.bf16.msra.mxu0 0
        %1405 = vmatprep.subr.bf16.mxu0 0
        %1406 = vmatpush1.bf16.msra.mxu0 0
        %1407 = vmatprep.subr.bf16.mxu0 0
        %1408 = vmatpush1.bf16.msra.mxu0 0
        %1409 = vmatprep.subr.bf16.mxu0 0
        %1410 = vmatpush1.bf16.msra.mxu0 0
        %1411 = vmatprep.subr.bf16.mxu0 0
        %1412 = vmatpush1.bf16.msra.mxu0 %v1392
        %1413 = vmatprep.subr.bf16.mxu0 0
        %1414 = vmatpush2.bf16.msra.mxu0 0
        %1415 = vmatprep.subr.bf16.mxu0 0
        %1416 = vmatpush2.bf16.msra.mxu0 0
        %1417 = vmatprep.subr.bf16.mxu0 0
        %1418 = vmatpush2.bf16.msra.mxu0 0
        %1419 = vmatprep.subr.bf16.mxu0 0
        %1420 = vmatpush2.bf16.msra.mxu0 0
        %1421 = vmatprep.subr.bf16.mxu0 0
        %1422 = vmatpush2.bf16.msra.mxu0 0
        %1423 = vmatprep.subr.bf16.mxu0 0
        %1424 = vmatpush2.bf16.msra.mxu0 0
        %1425 = vmatprep.subr.bf16.mxu0 0
        %1426 = vmatpush2.bf16.msra.mxu0 0
        %1427 = vmatprep.subr.bf16.mxu0 0
        %1428 = vmatpush2.bf16.msra.mxu0 0
        %1429 = vmatprep.mubr.bf16.mxu0 0
        %1430 = vmatmul.mubr.bf16.gmra.mxu0 %v1395
        %v1431 = vpop.f32.mrf.mxu0
        %v1432 = vadd.f32 0.0, %v1431
        %v1433 = vpop.f32.mrf.mxu0
        %v1434 = vpop.f32.mrf.mxu0
        %v1435 = vpop.f32.mrf.mxu0
        %1436 = vdwg.mxu0
        %v1437 = vpack.c.bf16 %v1432, %v1432
        %v1439 = vunpack.c.l.b16 %v1437
        %v1440 = vpack.c.b16 %v1439, %v1439
        %1441 = vrot.lane.b32.xlu0 %v1440, 32
        %v1442 = vpop.permute.xlu0 %1441
        %vm1444 = vcmask 388352
        %1445 = vst.msk [vmem:[#allocation5] sm:$0xf] %vm1444, %v1442
        %1446 = vrot.lane.b32.xlu0 %v1014, 80
        %v1447 = vpop.permute.xlu0 %1446
        %1448 = vrot.lane.b32.xlu0 %v1100, 80
        %v1449 = vpop.permute.xlu0 %1448
        %v1451 = vsel %vm1102, %v1447, 0
        %v1454 = vsel %vm1102, %v1449, 0
        %1456 = vmatprep.subr.bf16.mxu0 0
        %1457 = vmatpush1.bf16.xpose.msra.mxu0 0
        %1458 = vmatprep.subr.bf16.mxu0 0
        %1459 = vmatpush1.bf16.xpose.msra.mxu0 0
        %1460 = vmatprep.subr.bf16.mxu0 0
        %1461 = vmatpush1.bf16.xpose.msra.mxu0 0
        %1462 = vmatprep.subr.bf16.mxu0 0
        %1463 = vmatpush1.bf16.xpose.msra.mxu0 0
        %1464 = vmatprep.subr.bf16.mxu0 0
        %1465 = vmatpush1.bf16.xpose.msra.mxu0 0
        %1466 = vmatprep.subr.bf16.mxu0 0
        %1467 = vmatpush1.bf16.xpose.msra.mxu0 0
        %1468 = vmatprep.subr.bf16.mxu0 0
        %1469 = vmatpush1.bf16.xpose.msra.mxu0 0
        %1470 = vmatprep.subr.bf16.mxu0 0
        %1471 = vmatpush1.bf16.xpose.msra.mxu0 %v1454
        %1472 = vmatprep.subr.bf16.mxu0 0
        %1473 = vmatpush2.bf16.xpose.msra.mxu0 0
        %1474 = vmatprep.subr.bf16.mxu0 0
        %1475 = vmatpush2.bf16.xpose.msra.mxu0 0
        %1476 = vmatprep.subr.bf16.mxu0 0
        %1477 = vmatpush2.bf16.xpose.msra.mxu0 0
        %1478 = vmatprep.subr.bf16.mxu0 0
        %1479 = vmatpush2.bf16.xpose.msra.mxu0 0
        %1480 = vmatprep.subr.bf16.mxu0 0
        %1481 = vmatpush2.bf16.xpose.msra.mxu0 0
        %1482 = vmatprep.subr.bf16.mxu0 0
        %1483 = vmatpush2.bf16.xpose.msra.mxu0 0
        %1484 = vmatprep.subr.bf16.mxu0 0
        %1485 = vmatpush2.bf16.xpose.msra.mxu0 0
        %1486 = vmatprep.subr.bf16.mxu0 0
        %1487 = vmatpush2.bf16.xpose.msra.mxu0 0
        %1488 = vmatprep.mubr.bf16.mxu0 0
        %1489 = vmatmul.mubr.bf16.gmra.mxu0 %v1451
        %v1490 = vpop.f32.mrf.mxu0
        %v1491 = vadd.f32 0.0, %v1490
        %v1492 = vpop.f32.mrf.mxu0
        %v1493 = vpop.f32.mrf.mxu0
        %v1494 = vpop.f32.mrf.mxu0
        %1495 = vdwg.mxu0
        %v1496 = vsel %vm1102, %v1491, -inf
        %1497 = vmax.xlane.f32.xlu0 %v1496
        %v1498 = vpop.xlane.xlu0 %1497
        %v1499 = vsub.f32 %v1491, %v1498
        %v1500 = vmul.f32 %v1499, 1.442695
        %v1501 = vpow.pop %v1500
        %v1502 = vsel %vm1102, %v1501, 0.0
        %1503 = vadd.xlane.f32.xlu0 %v1502
        %v1504 = vpop.xlane.xlu0 %1503
        %v1505 = vrcp.pop %v1504
        %v1506 = vmul.f32 %v1501, %v1505
        %v1507 = vpack.c.bf16 %v1506, %v1506
        %1508 = vrot.lane.b32.xlu0 %v1100, 16
        %v1509 = vpop.permute.xlu0 %1508
        %v1512 = vsel %vm1102, %v1507, 0
        %1514 = vmatprep.subr.bf16.mxu0 0
        %1515 = vmatpush1.bf16.msra.mxu0 0
        %1516 = vmatprep.subr.bf16.mxu0 0
        %1517 = vmatpush1.bf16.msra.mxu0 0
        %1518 = vmatprep.subr.bf16.mxu0 0
        %1519 = vmatpush1.bf16.msra.mxu0 0
        %1520 = vmatprep.subr.bf16.mxu0 0
        %1521 = vmatpush1.bf16.msra.mxu0 0
        %1522 = vmatprep.subr.bf16.mxu0 0
        %1523 = vmatpush1.bf16.msra.mxu0 0
        %1524 = vmatprep.subr.bf16.mxu0 0
        %1525 = vmatpush1.bf16.msra.mxu0 0
        %1526 = vmatprep.subr.bf16.mxu0 0
        %1527 = vmatpush1.bf16.msra.mxu0 0
        %1528 = vmatprep.subr.bf16.mxu0 0
        %1529 = vmatpush1.bf16.msra.mxu0 %v1509
        %1530 = vmatprep.subr.bf16.mxu0 0
        %1531 = vmatpush2.bf16.msra.mxu0 0
        %1532 = vmatprep.subr.bf16.mxu0 0
        %1533 = vmatpush2.bf16.msra.mxu0 0
        %1534 = vmatprep.subr.bf16.mxu0 0
        %1535 = vmatpush2.bf16.msra.mxu0 0
        %1536 = vmatprep.subr.bf16.mxu0 0
        %1537 = vmatpush2.bf16.msra.mxu0 0
        %1538 = vmatprep.subr.bf16.mxu0 0
        %1539 = vmatpush2.bf16.msra.mxu0 0
        %1540 = vmatprep.subr.bf16.mxu0 0
        %1541 = vmatpush2.bf16.msra.mxu0 0
        %1542 = vmatprep.subr.bf16.mxu0 0
        %1543 = vmatpush2.bf16.msra.mxu0 0
        %1544 = vmatprep.subr.bf16.mxu0 0
        %1545 = vmatpush2.bf16.msra.mxu0 0
        %1546 = vmatprep.mubr.bf16.mxu0 0
        %1547 = vmatmul.mubr.bf16.gmra.mxu0 %v1512
        %v1548 = vpop.f32.mrf.mxu0
        %v1549 = vadd.f32 0.0, %v1548
        %v1550 = vpop.f32.mrf.mxu0
        %v1551 = vpop.f32.mrf.mxu0
        %v1552 = vpop.f32.mrf.mxu0
        %1553 = vdwg.mxu0
        %v1554 = vpack.c.bf16 %v1549, %v1549
        %v1556 = vunpack.c.l.b16 %v1554
        %v1557 = vpack.c.b16 %v1556, %v1556
        %1558 = vrot.lane.b32.xlu0 %v1557, 48
        %v1559 = vpop.permute.xlu0 %1558
        %vm1561 = vcmask 519552
        %1562 = vst.msk [vmem:[#allocation5] sm:$0xf] %vm1561, %v1559
        %v1563 = vrot.slane %v1014, 4
        %v1565 = vsel %vm1102, %v1563, 0
        %v1568 = vsel %vm1102, %v1101, 0
        %1570 = vmatprep.subr.bf16.mxu0 0
        %1571 = vmatpush1.bf16.xpose.msra.mxu0 0
        %1572 = vmatprep.subr.bf16.mxu0 0
        %1573 = vmatpush1.bf16.xpose.msra.mxu0 0
        %1574 = vmatprep.subr.bf16.mxu0 0
        %1575 = vmatpush1.bf16.xpose.msra.mxu0 0
        %1576 = vmatprep.subr.bf16.mxu0 0
        %1577 = vmatpush1.bf16.xpose.msra.mxu0 0
        %1578 = vmatprep.subr.bf16.mxu0 0
        %1579 = vmatpush1.bf16.xpose.msra.mxu0 0
        %1580 = vmatprep.subr.bf16.mxu0 0
        %1581 = vmatpush1.bf16.xpose.msra.mxu0 0
        %1582 = vmatprep.subr.bf16.mxu0 0
        %1583 = vmatpush1.bf16.xpose.msra.mxu0 0
        %1584 = vmatprep.subr.bf16.mxu0 0
        %1585 = vmatpush1.bf16.xpose.msra.mxu0 %v1568
        %1586 = vmatprep.subr.bf16.mxu0 0
        %1587 = vmatpush2.bf16.xpose.msra.mxu0 0
        %1588 = vmatprep.subr.bf16.mxu0 0
        %1589 = vmatpush2.bf16.xpose.msra.mxu0 0
        %1590 = vmatprep.subr.bf16.mxu0 0
        %1591 = vmatpush2.bf16.xpose.msra.mxu0 0
        %1592 = vmatprep.subr.bf16.mxu0 0
        %1593 = vmatpush2.bf16.xpose.msra.mxu0 0
        %1594 = vmatprep.subr.bf16.mxu0 0
        %1595 = vmatpush2.bf16.xpose.msra.mxu0 0
        %1596 = vmatprep.subr.bf16.mxu0 0
        %1597 = vmatpush2.bf16.xpose.msra.mxu0 0
        %1598 = vmatprep.subr.bf16.mxu0 0
        %1599 = vmatpush2.bf16.xpose.msra.mxu0 0
        %1600 = vmatprep.subr.bf16.mxu0 0
        %1601 = vmatpush2.bf16.xpose.msra.mxu0 0
        %1602 = vmatprep.mubr.bf16.mxu0 0
        %1603 = vmatmul.mubr.bf16.gmra.mxu0 %v1565
        %v1604 = vpop.f32.mrf.mxu0
        %v1605 = vadd.f32 0.0, %v1604
        %v1606 = vpop.f32.mrf.mxu0
        %v1607 = vpop.f32.mrf.mxu0
        %v1608 = vpop.f32.mrf.mxu0
        %1609 = vdwg.mxu0
        %v1610 = vsel %vm1102, %v1605, -inf
        %1611 = vmax.xlane.f32.xlu0 %v1610
        %v1612 = vpop.xlane.xlu0 %1611
        %v1613 = vsub.f32 %v1605, %v1612
        %v1614 = vmul.f32 %v1613, 1.442695
        %v1615 = vpow.pop %v1614
        %v1616 = vsel %vm1102, %v1615, 0.0
        %1617 = vadd.xlane.f32.xlu0 %v1616
        %v1618 = vpop.xlane.xlu0 %1617
        %v1619 = vrcp.pop %v1618
        %v1620 = vmul.f32 %v1615, %v1619
        %v1621 = vpack.c.bf16 %v1620, %v1620
        %1623 = vrot.lane.b32.xlu0 %v1101, 64
        %v1624 = vpop.permute.xlu0 %1623
        %v1627 = vsel %vm1102, %v1621, 0
        %1629 = vmatprep.subr.bf16.mxu0 0
        %1630 = vmatpush1.bf16.msra.mxu0 0
        %1631 = vmatprep.subr.bf16.mxu0 0
        %1632 = vmatpush1.bf16.msra.mxu0 0
        %1633 = vmatprep.subr.bf16.mxu0 0
        %1634 = vmatpush1.bf16.msra.mxu0 0
        %1635 = vmatprep.subr.bf16.mxu0 0
        %1636 = vmatpush1.bf16.msra.mxu0 0
        %1637 = vmatprep.subr.bf16.mxu0 0
        %1638 = vmatpush1.bf16.msra.mxu0 0
        %1639 = vmatprep.subr.bf16.mxu0 0
        %1640 = vmatpush1.bf16.msra.mxu0 0
        %1641 = vmatprep.subr.bf16.mxu0 0
        %1642 = vmatpush1.bf16.msra.mxu0 0
        %1643 = vmatprep.subr.bf16.mxu0 0
        %1644 = vmatpush1.bf16.msra.mxu0 %v1624
        %1645 = vmatprep.subr.bf16.mxu0 0
        %1646 = vmatpush2.bf16.msra.mxu0 0
        %1647 = vmatprep.subr.bf16.mxu0 0
        %1648 = vmatpush2.bf16.msra.mxu0 0
        %1649 = vmatprep.subr.bf16.mxu0 0
        %1650 = vmatpush2.bf16.msra.mxu0 0
        %1651 = vmatprep.subr.bf16.mxu0 0
        %1652 = vmatpush2.bf16.msra.mxu0 0
        %1653 = vmatprep.subr.bf16.mxu0 0
        %1654 = vmatpush2.bf16.msra.mxu0 0
        %1655 = vmatprep.subr.bf16.mxu0 0
        %1656 = vmatpush2.bf16.msra.mxu0 0
        %1657 = vmatprep.subr.bf16.mxu0 0
        %1658 = vmatpush2.bf16.msra.mxu0 0
        %1659 = vmatprep.subr.bf16.mxu0 0
        %1660 = vmatpush2.bf16.msra.mxu0 0
        %1661 = vmatprep.mubr.bf16.mxu0 0
        %1662 = vmatmul.mubr.bf16.gmra.mxu0 %v1627
        %v1663 = vpop.f32.mrf.mxu0
        %v1664 = vadd.f32 0.0, %v1663
        %v1665 = vpop.f32.mrf.mxu0
        %v1666 = vpop.f32.mrf.mxu0
        %v1667 = vpop.f32.mrf.mxu0
        %1668 = vdwg.mxu0
        %v1669 = vpack.c.bf16 %v1664, %v1664
        %1670 = vst.msk [vmem:[#allocation5 + $0x4] sm:$0xf] %vm1209, %v1669
        %1671 = vrot.lane.b32.xlu0 %v1563, 112
        %v1672 = vpop.permute.xlu0 %1671
        %1673 = vrot.lane.b32.xlu0 %v1101, 112
        %v1674 = vpop.permute.xlu0 %1673
        %v1676 = vsel %vm1102, %v1672, 0
        %v1679 = vsel %vm1102, %v1674, 0
        %1681 = vmatprep.subr.bf16.mxu0 0
        %1682 = vmatpush1.bf16.xpose.msra.mxu0 0
        %1683 = vmatprep.subr.bf16.mxu0 0
        %1684 = vmatpush1.bf16.xpose.msra.mxu0 0
        %1685 = vmatprep.subr.bf16.mxu0 0
        %1686 = vmatpush1.bf16.xpose.msra.mxu0 0
        %1687 = vmatprep.subr.bf16.mxu0 0
        %1688 = vmatpush1.bf16.xpose.msra.mxu0 0
        %1689 = vmatprep.subr.bf16.mxu0 0
        %1690 = vmatpush1.bf16.xpose.msra.mxu0 0
        %1691 = vmatprep.subr.bf16.mxu0 0
        %1692 = vmatpush1.bf16.xpose.msra.mxu0 0
        %1693 = vmatprep.subr.bf16.mxu0 0
        %1694 = vmatpush1.bf16.xpose.msra.mxu0 0
        %1695 = vmatprep.subr.bf16.mxu0 0
        %1696 = vmatpush1.bf16.xpose.msra.mxu0 %v1679
        %1697 = vmatprep.subr.bf16.mxu0 0
        %1698 = vmatpush2.bf16.xpose.msra.mxu0 0
        %1699 = vmatprep.subr.bf16.mxu0 0
        %1700 = vmatpush2.bf16.xpose.msra.mxu0 0
        %1701 = vmatprep.subr.bf16.mxu0 0
        %1702 = vmatpush2.bf16.xpose.msra.mxu0 0
        %1703 = vmatprep.subr.bf16.mxu0 0
        %1704 = vmatpush2.bf16.xpose.msra.mxu0 0
        %1705 = vmatprep.subr.bf16.mxu0 0
        %1706 = vmatpush2.bf16.xpose.msra.mxu0 0
        %1707 = vmatprep.subr.bf16.mxu0 0
        %1708 = vmatpush2.bf16.xpose.msra.mxu0 0
        %1709 = vmatprep.subr.bf16.mxu0 0
        %1710 = vmatpush2.bf16.xpose.msra.mxu0 0
        %1711 = vmatprep.subr.bf16.mxu0 0
        %1712 = vmatpush2.bf16.xpose.msra.mxu0 0
        %1713 = vmatprep.mubr.bf16.mxu0 0
        %1714 = vmatmul.mubr.bf16.gmra.mxu0 %v1676
        %v1715 = vpop.f32.mrf.mxu0
        %v1716 = vadd.f32 0.0, %v1715
        %v1717 = vpop.f32.mrf.mxu0
        %v1718 = vpop.f32.mrf.mxu0
        %v1719 = vpop.f32.mrf.mxu0
        %1720 = vdwg.mxu0
        %v1721 = vsel %vm1102, %v1716, -inf
        %1722 = vmax.xlane.f32.xlu0 %v1721
        %v1723 = vpop.xlane.xlu0 %1722
        %v1724 = vsub.f32 %v1716, %v1723
        %v1725 = vmul.f32 %v1724, 1.442695
        %v1726 = vpow.pop %v1725
        %v1727 = vsel %vm1102, %v1726, 0.0
        %1728 = vadd.xlane.f32.xlu0 %v1727
        %v1729 = vpop.xlane.xlu0 %1728
        %v1730 = vrcp.pop %v1729
        %v1731 = vmul.f32 %v1726, %v1730
        %v1732 = vpack.c.bf16 %v1731, %v1731
        %1733 = vrot.lane.b32.xlu0 %v1101, 48
        %v1734 = vpop.permute.xlu0 %1733
        %v1737 = vsel %vm1102, %v1732, 0
        %1739 = vmatprep.subr.bf16.mxu0 0
        %1740 = vmatpush1.bf16.msra.mxu0 0
        %1741 = vmatprep.subr.bf16.mxu0 0
        %1742 = vmatpush1.bf16.msra.mxu0 0
        %1743 = vmatprep.subr.bf16.mxu0 0
        %1744 = vmatpush1.bf16.msra.mxu0 0
        %1745 = vmatprep.subr.bf16.mxu0 0
        %1746 = vmatpush1.bf16.msra.mxu0 0
        %1747 = vmatprep.subr.bf16.mxu0 0
        %1748 = vmatpush1.bf16.msra.mxu0 0
        %1749 = vmatprep.subr.bf16.mxu0 0
        %1750 = vmatpush1.bf16.msra.mxu0 0
        %1751 = vmatprep.subr.bf16.mxu0 0
        %1752 = vmatpush1.bf16.msra.mxu0 0
        %1753 = vmatprep.subr.bf16.mxu0 0
        %1754 = vmatpush1.bf16.msra.mxu0 %v1734
        %1755 = vmatprep.subr.bf16.mxu0 0
        %1756 = vmatpush2.bf16.msra.mxu0 0
        %1757 = vmatprep.subr.bf16.mxu0 0
        %1758 = vmatpush2.bf16.msra.mxu0 0
        %1759 = vmatprep.subr.bf16.mxu0 0
        %1760 = vmatpush2.bf16.msra.mxu0 0
        %1761 = vmatprep.subr.bf16.mxu0 0
        %1762 = vmatpush2.bf16.msra.mxu0 0
        %1763 = vmatprep.subr.bf16.mxu0 0
        %1764 = vmatpush2.bf16.msra.mxu0 0
        %1765 = vmatprep.subr.bf16.mxu0 0
        %1766 = vmatpush2.bf16.msra.mxu0 0
        %1767 = vmatprep.subr.bf16.mxu0 0
        %1768 = vmatpush2.bf16.msra.mxu0 0
        %1769 = vmatprep.subr.bf16.mxu0 0
        %1770 = vmatpush2.bf16.msra.mxu0 0
        %1771 = vmatprep.mubr.bf16.mxu0 0
        %1772 = vmatmul.mubr.bf16.gmra.mxu0 %v1737
        %v1773 = vpop.f32.mrf.mxu0
        %v1774 = vadd.f32 0.0, %v1773
        %v1775 = vpop.f32.mrf.mxu0
        %v1776 = vpop.f32.mrf.mxu0
        %v1777 = vpop.f32.mrf.mxu0
        %1778 = vdwg.mxu0
        %v1779 = vpack.c.bf16 %v1774, %v1774
        %v1781 = vunpack.c.l.b16 %v1779
        %v1782 = vpack.c.b16 %v1781, %v1781
        %1783 = vrot.lane.b32.xlu0 %v1782, 16
        %v1784 = vpop.permute.xlu0 %1783
        %1786 = vst.msk [vmem:[#allocation5 + $0x4] sm:$0xf] %vm1327, %v1784
        %1787 = vrot.lane.b32.xlu0 %v1563, 96
        %v1788 = vpop.permute.xlu0 %1787
        %1789 = vrot.lane.b32.xlu0 %v1101, 96
        %v1790 = vpop.permute.xlu0 %1789
        %v1792 = vsel %vm1102, %v1788, 0
        %v1795 = vsel %vm1102, %v1790, 0
        %1797 = vmatprep.subr.bf16.mxu0 0
        %1798 = vmatpush1.bf16.xpose.msra.mxu0 0
        %1799 = vmatprep.subr.bf16.mxu0 0
        %1800 = vmatpush1.bf16.xpose.msra.mxu0 0
        %1801 = vmatprep.subr.bf16.mxu0 0
        %1802 = vmatpush1.bf16.xpose.msra.mxu0 0
        %1803 = vmatprep.subr.bf16.mxu0 0
        %1804 = vmatpush1.bf16.xpose.msra.mxu0 0
        %1805 = vmatprep.subr.bf16.mxu0 0
        %1806 = vmatpush1.bf16.xpose.msra.mxu0 0
        %1807 = vmatprep.subr.bf16.mxu0 0
        %1808 = vmatpush1.bf16.xpose.msra.mxu0 0
        %1809 = vmatprep.subr.bf16.mxu0 0
        %1810 = vmatpush1.bf16.xpose.msra.mxu0 0
        %1811 = vmatprep.subr.bf16.mxu0 0
        %1812 = vmatpush1.bf16.xpose.msra.mxu0 %v1795
        %1813 = vmatprep.subr.bf16.mxu0 0
        %1814 = vmatpush2.bf16.xpose.msra.mxu0 0
        %1815 = vmatprep.subr.bf16.mxu0 0
        %1816 = vmatpush2.bf16.xpose.msra.mxu0 0
        %1817 = vmatprep.subr.bf16.mxu0 0
        %1818 = vmatpush2.bf16.xpose.msra.mxu0 0
        %1819 = vmatprep.subr.bf16.mxu0 0
        %1820 = vmatpush2.bf16.xpose.msra.mxu0 0
        %1821 = vmatprep.subr.bf16.mxu0 0
        %1822 = vmatpush2.bf16.xpose.msra.mxu0 0
        %1823 = vmatprep.subr.bf16.mxu0 0
        %1824 = vmatpush2.bf16.xpose.msra.mxu0 0
        %1825 = vmatprep.subr.bf16.mxu0 0
        %1826 = vmatpush2.bf16.xpose.msra.mxu0 0
        %1827 = vmatprep.subr.bf16.mxu0 0
        %1828 = vmatpush2.bf16.xpose.msra.mxu0 0
        %1829 = vmatprep.mubr.bf16.mxu0 0
        %1830 = vmatmul.mubr.bf16.gmra.mxu0 %v1792
        %v1831 = vpop.f32.mrf.mxu0
        %v1832 = vadd.f32 0.0, %v1831
        %v1833 = vpop.f32.mrf.mxu0
        %v1834 = vpop.f32.mrf.mxu0
        %v1835 = vpop.f32.mrf.mxu0
        %1836 = vdwg.mxu0
        %v1837 = vsel %vm1102, %v1832, -inf
        %1838 = vmax.xlane.f32.xlu0 %v1837
        %v1839 = vpop.xlane.xlu0 %1838
        %v1840 = vsub.f32 %v1832, %v1839
        %v1841 = vmul.f32 %v1840, 1.442695
        %v1842 = vpow.pop %v1841
        %v1843 = vsel %vm1102, %v1842, 0.0
        %1844 = vadd.xlane.f32.xlu0 %v1843
        %v1845 = vpop.xlane.xlu0 %1844
        %v1846 = vrcp.pop %v1845
        %v1847 = vmul.f32 %v1842, %v1846
        %v1848 = vpack.c.bf16 %v1847, %v1847
        %1849 = vrot.lane.b32.xlu0 %v1101, 32
        %v1850 = vpop.permute.xlu0 %1849
        %v1853 = vsel %vm1102, %v1848, 0
        %1855 = vmatprep.subr.bf16.mxu0 0
        %1856 = vmatpush1.bf16.msra.mxu0 0
        %1857 = vmatprep.subr.bf16.mxu0 0
        %1858 = vmatpush1.bf16.msra.mxu0 0
        %1859 = vmatprep.subr.bf16.mxu0 0
        %1860 = vmatpush1.bf16.msra.mxu0 0
        %1861 = vmatprep.subr.bf16.mxu0 0
        %1862 = vmatpush1.bf16.msra.mxu0 0
        %1863 = vmatprep.subr.bf16.mxu0 0
        %1864 = vmatpush1.bf16.msra.mxu0 0
        %1865 = vmatprep.subr.bf16.mxu0 0
        %1866 = vmatpush1.bf16.msra.mxu0 0
        %1867 = vmatprep.subr.bf16.mxu0 0
        %1868 = vmatpush1.bf16.msra.mxu0 0
        %1869 = vmatprep.subr.bf16.mxu0 0
        %1870 = vmatpush1.bf16.msra.mxu0 %v1850
        %1871 = vmatprep.subr.bf16.mxu0 0
        %1872 = vmatpush2.bf16.msra.mxu0 0
        %1873 = vmatprep.subr.bf16.mxu0 0
        %1874 = vmatpush2.bf16.msra.mxu0 0
        %1875 = vmatprep.subr.bf16.mxu0 0
        %1876 = vmatpush2.bf16.msra.mxu0 0
        %1877 = vmatprep.subr.bf16.mxu0 0
        %1878 = vmatpush2.bf16.msra.mxu0 0
        %1879 = vmatprep.subr.bf16.mxu0 0
        %1880 = vmatpush2.bf16.msra.mxu0 0
        %1881 = vmatprep.subr.bf16.mxu0 0
        %1882 = vmatpush2.bf16.msra.mxu0 0
        %1883 = vmatprep.subr.bf16.mxu0 0
        %1884 = vmatpush2.bf16.msra.mxu0 0
        %1885 = vmatprep.subr.bf16.mxu0 0
        %1886 = vmatpush2.bf16.msra.mxu0 0
        %1887 = vmatprep.mubr.bf16.mxu0 0
        %1888 = vmatmul.mubr.bf16.gmra.mxu0 %v1853
        %v1889 = vpop.f32.mrf.mxu0
        %v1890 = vadd.f32 0.0, %v1889
        %v1891 = vpop.f32.mrf.mxu0
        %v1892 = vpop.f32.mrf.mxu0
        %v1893 = vpop.f32.mrf.mxu0
        %1894 = vdwg.mxu0
        %v1895 = vpack.c.bf16 %v1890, %v1890
        %v1897 = vunpack.c.l.b16 %v1895
        %v1898 = vpack.c.b16 %v1897, %v1897
        %1899 = vrot.lane.b32.xlu0 %v1898, 32
        %v1900 = vpop.permute.xlu0 %1899
        %1902 = vst.msk [vmem:[#allocation5 + $0x4] sm:$0xf] %vm1444, %v1900
        %1903 = vrot.lane.b32.xlu0 %v1563, 80
        %v1904 = vpop.permute.xlu0 %1903
        %1905 = vrot.lane.b32.xlu0 %v1101, 80
        %v1906 = vpop.permute.xlu0 %1905
        %v1908 = vsel %vm1102, %v1904, 0
        %v1911 = vsel %vm1102, %v1906, 0
        %1913 = vmatprep.subr.bf16.mxu0 0
        %1914 = vmatpush1.bf16.xpose.msra.mxu0 0
        %1915 = vmatprep.subr.bf16.mxu0 0
        %1916 = vmatpush1.bf16.xpose.msra.mxu0 0
        %1917 = vmatprep.subr.bf16.mxu0 0
        %1918 = vmatpush1.bf16.xpose.msra.mxu0 0
        %1919 = vmatprep.subr.bf16.mxu0 0
        %1920 = vmatpush1.bf16.xpose.msra.mxu0 0
        %1921 = vmatprep.subr.bf16.mxu0 0
        %1922 = vmatpush1.bf16.xpose.msra.mxu0 0
        %1923 = vmatprep.subr.bf16.mxu0 0
        %1924 = vmatpush1.bf16.xpose.msra.mxu0 0
        %1925 = vmatprep.subr.bf16.mxu0 0
        %1926 = vmatpush1.bf16.xpose.msra.mxu0 0
        %1927 = vmatprep.subr.bf16.mxu0 0
        %1928 = vmatpush1.bf16.xpose.msra.mxu0 %v1911
        %1929 = vmatprep.subr.bf16.mxu0 0
        %1930 = vmatpush2.bf16.xpose.msra.mxu0 0
        %1931 = vmatprep.subr.bf16.mxu0 0
        %1932 = vmatpush2.bf16.xpose.msra.mxu0 0
        %1933 = vmatprep.subr.bf16.mxu0 0
        %1934 = vmatpush2.bf16.xpose.msra.mxu0 0
        %1935 = vmatprep.subr.bf16.mxu0 0
        %1936 = vmatpush2.bf16.xpose.msra.mxu0 0
        %1937 = vmatprep.subr.bf16.mxu0 0
        %1938 = vmatpush2.bf16.xpose.msra.mxu0 0
        %1939 = vmatprep.subr.bf16.mxu0 0
        %1940 = vmatpush2.bf16.xpose.msra.mxu0 0
        %1941 = vmatprep.subr.bf16.mxu0 0
        %1942 = vmatpush2.bf16.xpose.msra.mxu0 0
        %1943 = vmatprep.subr.bf16.mxu0 0
        %1944 = vmatpush2.bf16.xpose.msra.mxu0 0
        %1945 = vmatprep.mubr.bf16.mxu0 0
        %1946 = vmatmul.mubr.bf16.gmra.mxu0 %v1908
        %v1947 = vpop.f32.mrf.mxu0
        %v1948 = vadd.f32 0.0, %v1947
        %v1949 = vpop.f32.mrf.mxu0
        %v1950 = vpop.f32.mrf.mxu0
        %v1951 = vpop.f32.mrf.mxu0
        %1952 = vdwg.mxu0
        %v1953 = vsel %vm1102, %v1948, -inf
        %1954 = vmax.xlane.f32.xlu0 %v1953
        %v1955 = vpop.xlane.xlu0 %1954
        %v1956 = vsub.f32 %v1948, %v1955
        %v1957 = vmul.f32 %v1956, 1.442695
        %v1958 = vpow.pop %v1957
        %v1959 = vsel %vm1102, %v1958, 0.0
        %1960 = vadd.xlane.f32.xlu0 %v1959
        %v1961 = vpop.xlane.xlu0 %1960
        %v1962 = vrcp.pop %v1961
        %v1963 = vmul.f32 %v1958, %v1962
        %v1964 = vpack.c.bf16 %v1963, %v1963
        %1965 = vrot.lane.b32.xlu0 %v1101, 16
        %v1966 = vpop.permute.xlu0 %1965
        %v1969 = vsel %vm1102, %v1964, 0
        %1971 = vmatprep.subr.bf16.mxu0 0
        %1972 = vmatpush1.bf16.msra.mxu0 0
        %1973 = vmatprep.subr.bf16.mxu0 0
        %1974 = vmatpush1.bf16.msra.mxu0 0
        %1975 = vmatprep.subr.bf16.mxu0 0
        %1976 = vmatpush1.bf16.msra.mxu0 0
        %1977 = vmatprep.subr.bf16.mxu0 0
        %1978 = vmatpush1.bf16.msra.mxu0 0
        %1979 = vmatprep.subr.bf16.mxu0 0
        %1980 = vmatpush1.bf16.msra.mxu0 0
        %1981 = vmatprep.subr.bf16.mxu0 0
        %1982 = vmatpush1.bf16.msra.mxu0 0
        %1983 = vmatprep.subr.bf16.mxu0 0
        %1984 = vmatpush1.bf16.msra.mxu0 0
        %1985 = vmatprep.subr.bf16.mxu0 0
        %1986 = vmatpush1.bf16.msra.mxu0 %v1966
        %1987 = vmatprep.subr.bf16.mxu0 0
        %1988 = vmatpush2.bf16.msra.mxu0 0
        %1989 = vmatprep.subr.bf16.mxu0 0
        %1990 = vmatpush2.bf16.msra.mxu0 0
        %1991 = vmatprep.subr.bf16.mxu0 0
        %1992 = vmatpush2.bf16.msra.mxu0 0
        %1993 = vmatprep.subr.bf16.mxu0 0
        %1994 = vmatpush2.bf16.msra.mxu0 0
        %1995 = vmatprep.subr.bf16.mxu0 0
        %1996 = vmatpush2.bf16.msra.mxu0 0
        %1997 = vmatprep.subr.bf16.mxu0 0
        %1998 = vmatpush2.bf16.msra.mxu0 0
        %1999 = vmatprep.subr.bf16.mxu0 0
        %2000 = vmatpush2.bf16.msra.mxu0 0
        %2001 = vmatprep.subr.bf16.mxu0 0
        %2002 = vmatpush2.bf16.msra.mxu0 0
        %2003 = vmatprep.mubr.bf16.mxu0 0
        %2004 = vmatmul.mubr.bf16.gmra.mxu0 %v1969
        %v2005 = vpop.f32.mrf.mxu0
        %v2006 = vadd.f32 0.0, %v2005
        %v2007 = vpop.f32.mrf.mxu0
        %v2008 = vpop.f32.mrf.mxu0
        %v2009 = vpop.f32.mrf.mxu0
        %2010 = vdwg.mxu0
        %v2011 = vpack.c.bf16 %v2006, %v2006
        %v2013 = vunpack.c.l.b16 %v2011
        %v2014 = vpack.c.b16 %v2013, %v2013
        %2015 = vrot.lane.b32.xlu0 %v2014, 48
        %v2016 = vpop.permute.xlu0 %2015
        %2018 = vst.msk [vmem:[#allocation5 + $0x4] sm:$0xf] %vm1561, %v2016
        %v2019 = vld [vmem:[#allocation5] sm:$0xf]
        %v2020 = vld [vmem:[#allocation5 + $0x4] sm:$0xf]
        %v2021 = vld [vmem:[%s755] sm:$0xf]
        %v2022 = vld [vmem:[%s755 + $0x4] sm:$0xf]
        %v2023 = vld [vmem:[%s755 + $0x8] sm:$0xf]
        %v2024 = vld [vmem:[%s755 + $0xc] sm:$0xf]
        %v2025 = vld [vmem:[%s755 + $0x10] sm:$0xf]
        %v2026 = vld [vmem:[%s755 + $0x14] sm:$0xf]
        %v2027 = vld [vmem:[%s755 + $0x18] sm:$0xf]
        %v2028 = vld [vmem:[%s755 + $0x1c] sm:$0xf]
        %v2031 = vunpack.c.l.b16 %v2019
        %v2032 = vunpack.c.l.b16 %v2020
        %v2033 = vpack.c.b16 %v2032, %v2031
        %v2042 = vunpack.c.l.b16 %v2021
        %v2043 = vunpack.c.l.b16 %v2022
        %v2044 = vunpack.c.l.b16 %v2023
        %v2045 = vunpack.c.l.b16 %v2024
        %v2046 = vunpack.c.l.b16 %v2025
        %v2047 = vunpack.c.l.b16 %v2026
        %v2048 = vunpack.c.l.b16 %v2027
        %v2049 = vunpack.c.l.b16 %v2028
        %v2050 = vpack.c.b16 %v2043, %v2042
        %v2051 = vpack.c.b16 %v2045, %v2044
        %v2052 = vpack.c.b16 %v2047, %v2046
        %v2053 = vpack.c.b16 %v2049, %v2048
        %vm2058 = vcmask 523264
        %v2060 = vsel %vm2058, %v2033, 0
        %2062 = vmatprep.subr.bf16.mxu0 0
        %2063 = vmatpush1.bf16.msra.mxu0 0
        %2064 = vmatprep.subr.bf16.mxu0 0
        %2065 = vmatpush1.bf16.msra.mxu0 0
        %2066 = vmatprep.subr.bf16.mxu0 0
        %2067 = vmatpush1.bf16.msra.mxu0 0
        %2068 = vmatprep.subr.bf16.mxu0 0
        %2069 = vmatpush1.bf16.msra.mxu0 0
        %2070 = vmatprep.subr.bf16.mxu0 0
        %2071 = vmatpush1.bf16.msra.mxu0 %v2053
        %2072 = vmatprep.subr.bf16.mxu0 0
        %2073 = vmatpush1.bf16.msra.mxu0 %v2052
        %2074 = vmatprep.subr.bf16.mxu0 0
        %2075 = vmatpush1.bf16.msra.mxu0 %v2051
        %2076 = vmatprep.subr.bf16.mxu0 0
        %2077 = vmatpush1.bf16.msra.mxu0 %v2050
        %2078 = vmatprep.subr.bf16.mxu0 0
        %2079 = vmatpush2.bf16.msra.mxu0 0
        %2080 = vmatprep.subr.bf16.mxu0 0
        %2081 = vmatpush2.bf16.msra.mxu0 0
        %2082 = vmatprep.subr.bf16.mxu0 0
        %2083 = vmatpush2.bf16.msra.mxu0 0
        %2084 = vmatprep.subr.bf16.mxu0 0
        %2085 = vmatpush2.bf16.msra.mxu0 0
        %2086 = vmatprep.subr.bf16.mxu0 0
        %2087 = vmatpush2.bf16.msra.mxu0 0
        %2088 = vmatprep.subr.bf16.mxu0 0
        %2089 = vmatpush2.bf16.msra.mxu0 0
        %2090 = vmatprep.subr.bf16.mxu0 0
        %2091 = vmatpush2.bf16.msra.mxu0 0
        %2092 = vmatprep.subr.bf16.mxu0 0
        %2093 = vmatpush2.bf16.msra.mxu0 0
        %2094 = vmatprep.mubr.bf16.mxu0 0
        %2095 = vmatmul.mubr.bf16.gmra.mxu0 %v2060
        %v2096 = vpop.f32.mrf.mxu0
        %v2097 = vadd.f32 %v852, %v2096
        %v2098 = vpop.f32.mrf.mxu0
        %v2099 = vpop.f32.mrf.mxu0
        %v2100 = vadd.f32 %v853, %v2099
        %v2101 = vpop.f32.mrf.mxu0
        %2102 = vdwg.mxu0
        %v2103 = vld [vmem:[%s758] sm:$0x1]
        %v2104 = vld [vmem:[%s761] sm:$0x1]
        %v2105 = vsel %vm856, %v2097, 0.0
        %2106 = vadd.xlane.f32.xlu0 %v2105
        %v2107 = vpop.xlane.xlu0 %2106
        %v2108 = vsel %vm856, %v2100, 0.0
        %2109 = vadd.xlane.f32.xlu0 %v2108
        %v2110 = vpop.xlane.xlu0 %2109
        %v2111 = vmul.f32 %v2107, %v863
        %v2112 = vmul.f32 %v2110, %v863
        %v2113 = vsub.f32 %v2097, %v2111
        %v2114 = vsub.f32 %v2100, %v2112
        %v2115 = vmul.f32 %v2113, %v2113
        %v2116 = vmul.f32 %v2114, %v2114
        %v2117 = vsel %vm856, %v2115, 0.0
        %2118 = vadd.xlane.f32.xlu0 %v2117
        %v2119 = vpop.xlane.xlu0 %2118
        %v2120 = vsel %vm856, %v2116, 0.0
        %2121 = vadd.xlane.f32.xlu0 %v2120
        %v2122 = vpop.xlane.xlu0 %2121
        %v2123 = vmul.f32 %v2119, %v863
        %v2124 = vmul.f32 %v2122, %v863
        %v2125 = vadd.f32 %v2123, 1e-05
        %v2126 = vadd.f32 %v2124, 1e-05
        %v2127 = vrsqrt.pop %v2125
        %v2128 = vrsqrt.pop %v2126
        %v2129 = vmul.f32 %v2113, %v2127
        %v2130 = vmul.f32 %v2114, %v2128
        %v2132 = vlaneseq
        %v2133 = vshrl.u32 %v2132, 7
        %v2134 = vsub.s32 0, %v2133
        %v2135 = vrot.slane %v2103, %v2134
        %v2137 = vmul.f32 %v2129, %v2135
        %v2138 = vmul.f32 %v2130, %v2135
        %v2140 = vlaneseq
        %v2141 = vshrl.u32 %v2140, 7
        %v2142 = vsub.s32 0, %v2141
        %v2143 = vrot.slane %v2104, %v2142
        %v2145 = vadd.f32 %v2137, %v2143
        %v2146 = vadd.f32 %v2138, %v2143
        %v2147 = vpack.c.bf16 %v2146, %v2145
        %v2148 = vld [vmem:[%s766] sm:$0xf]
        %v2149 = vld [vmem:[%s766 + $0x4] sm:$0xf]
        %v2150 = vld [vmem:[%s766 + $0x8] sm:$0xf]
        %v2151 = vld [vmem:[%s766 + $0xc] sm:$0xf]
        %v2156 = vunpack.c.l.b16 %v2148
        %v2157 = vunpack.c.l.b16 %v2149
        %v2158 = vunpack.c.l.b16 %v2150
        %v2159 = vunpack.c.l.b16 %v2151
        %v2160 = vpack.c.b16 %v2157, %v2156
        %v2161 = vpack.c.b16 %v2159, %v2158
        %v2165 = vsel %vm856, %v2147, 0
        %2167 = vmatprep.subr.bf16.mxu0 0
        %2168 = vmatpush1.bf16.msra.mxu0 0
        %2169 = vmatprep.subr.bf16.mxu0 0
        %2170 = vmatpush1.bf16.msra.mxu0 0
        %2171 = vmatprep.subr.bf16.mxu0 0
        %2172 = vmatpush1.bf16.msra.mxu0 0
        %2173 = vmatprep.subr.bf16.mxu0 0
        %2174 = vmatpush1.bf16.msra.mxu0 0
        %2175 = vmatprep.subr.bf16.mxu0 0
        %2176 = vmatpush1.bf16.msra.mxu0 0
        %2177 = vmatprep.subr.bf16.mxu0 0
        %2178 = vmatpush1.bf16.msra.mxu0 0
        %2179 = vmatprep.subr.bf16.mxu0 0
        %2180 = vmatpush1.bf16.msra.mxu0 %v2161
        %2181 = vmatprep.subr.bf16.mxu0 0
        %2182 = vmatpush1.bf16.msra.mxu0 %v2160
        %2183 = vmatprep.subr.bf16.mxu0 0
        %2184 = vmatpush2.bf16.msra.mxu0 0
        %2185 = vmatprep.subr.bf16.mxu0 0
        %2186 = vmatpush2.bf16.msra.mxu0 0
        %2187 = vmatprep.subr.bf16.mxu0 0
        %2188 = vmatpush2.bf16.msra.mxu0 0
        %2189 = vmatprep.subr.bf16.mxu0 0
        %2190 = vmatpush2.bf16.msra.mxu0 0
        %2191 = vmatprep.subr.bf16.mxu0 0
        %2192 = vmatpush2.bf16.msra.mxu0 0
        %2193 = vmatprep.subr.bf16.mxu0 0
        %2194 = vmatpush2.bf16.msra.mxu0 0
        %2195 = vmatprep.subr.bf16.mxu0 0
        %2196 = vmatpush2.bf16.msra.mxu0 0
        %2197 = vmatprep.subr.bf16.mxu0 0
        %2198 = vmatpush2.bf16.msra.mxu0 0
        %2199 = vmatprep.mubr.bf16.mxu0 0
        %2200 = vmatmul.mubr.bf16.gmra.mxu0 %v2165
        %v2201 = vpop.f32.mrf.mxu0
        %v2202 = vadd.f32 0.0, %v2201
        %v2203 = vpop.f32.mrf.mxu0
        %v2204 = vpop.f32.mrf.mxu0
        %v2205 = vadd.f32 0.0, %v2204
        %v2206 = vpop.f32.mrf.mxu0
        %2207 = vdwg.mxu0
        %v2208 = vmul.f32 %v2202, 0.5
        %v2209 = vmul.f32 %v2205, 0.5
        %v2210 = vmul.f32 %v2202, 0.70710677
        %v2211 = vmul.f32 %v2205, 0.70710677
        %v2212 = vand.u32 2147483647, %v2210
        %v2213 = vand.u32 2147483647, %v2211
        %v2214 = vmul.f32 %v2212, 0.3275911
        %v2215 = vmul.f32 %v2213, 0.3275911
        %v2216 = vadd.f32 %v2214, 1.0
        %v2217 = vadd.f32 %v2215, 1.0
        %v2218 = vrcp.pop %v2216
        %v2219 = vrcp.pop %v2217
        %v2220 = vmul.f32 %v2218, 1.0614054
        %v2221 = vmul.f32 %v2219, 1.0614054
        %v2222 = vadd.f32 %v2220, -1.4531521
        %v2223 = vadd.f32 %v2221, -1.4531521
        %v2224 = vmul.f32 %v2222, %v2218
        %v2225 = vmul.f32 %v2223, %v2219
        %v2226 = vadd.f32 %v2224, 1.4214138
        %v2227 = vadd.f32 %v2225, 1.4214138
        %v2228 = vmul.f32 %v2226, %v2218
        %v2229 = vmul.f32 %v2227, %v2219
        %v2230 = vadd.f32 %v2228, -0.28449672
        %v2231 = vadd.f32 %v2229, -0.28449672
        %v2232 = vmul.f32 %v2230, %v2218
        %v2233 = vmul.f32 %v2231, %v2219
        %v2234 = vadd.f32 %v2232, 0.2548296
        %v2235 = vadd.f32 %v2233, 0.2548296
        %v2236 = vmul.f32 %v2234, %v2218
        %v2237 = vmul.f32 %v2235, %v2219
        %v2238 = vsub.f32 0.0, %v2212
        %v2239 = vsub.f32 0.0, %v2213
        %v2240 = vmul.f32 %v2238, %v2212
        %v2241 = vmul.f32 %v2239, %v2213
        %v2242 = vmul.f32 %v2240, 1.442695
        %v2243 = vpow.pop %v2242
        %v2244 = vmul.f32 %v2241, 1.442695
        %v2245 = vpow.pop %v2244
        %v2246 = vmul.f32 %v2236, %v2243
        %v2247 = vmul.f32 %v2237, %v2245
        %v2248 = vsub.f32 1.0, %v2246
        %v2249 = vsub.f32 1.0, %v2247
        %vm2250 = vcmp.ge.f32.partialorder %v2210, 0.0
        %vm2251 = vcmp.ge.f32.partialorder %v2211, 0.0
        %v2252 = vsub.f32 0.0, %v2248
        %v2253 = vsub.f32 0.0, %v2249
        %v2254 = vsel %vm2250, %v2248, %v2252
        %v2255 = vsel %vm2251, %v2249, %v2253
        %v2256 = vadd.f32 %v2254, 1.0
        %v2257 = vadd.f32 %v2255, 1.0
        %v2258 = vmul.f32 %v2208, %v2256
        %v2259 = vmul.f32 %v2209, %v2257
        %v2260 = vpack.c.bf16 %v2259, %v2258
        %v2261 = vld [vmem:[%s771] sm:$0xf]
        %v2262 = vld [vmem:[%s771 + $0x4] sm:$0xf]
        %v2263 = vld [vmem:[%s771 + $0x8] sm:$0xf]
        %v2264 = vld [vmem:[%s771 + $0xc] sm:$0xf]
        %v2265 = vld [vmem:[%s771 + $0x10] sm:$0xf]
        %v2266 = vld [vmem:[%s771 + $0x14] sm:$0xf]
        %v2267 = vld [vmem:[%s771 + $0x18] sm:$0xf]
        %v2268 = vld [vmem:[%s771 + $0x1c] sm:$0xf]
        %v2277 = vunpack.c.l.b16 %v2261
        %v2278 = vunpack.c.l.b16 %v2262
        %v2279 = vunpack.c.l.b16 %v2263
        %v2280 = vunpack.c.l.b16 %v2264
        %v2281 = vunpack.c.l.b16 %v2265
        %v2282 = vunpack.c.l.b16 %v2266
        %v2283 = vunpack.c.l.b16 %v2267
        %v2284 = vunpack.c.l.b16 %v2268
        %v2285 = vpack.c.b16 %v2278, %v2277
        %v2286 = vpack.c.b16 %v2280, %v2279
        %v2287 = vpack.c.b16 %v2282, %v2281
        %v2288 = vpack.c.b16 %v2284, %v2283
        %v2294 = vsel %vm2058, %v2260, 0
        %2296 = vmatprep.subr.bf16.mxu0 0
        %2297 = vmatpush1.bf16.msra.mxu0 0
        %2298 = vmatprep.subr.bf16.mxu0 0
        %2299 = vmatpush1.bf16.msra.mxu0 0
        %2300 = vmatprep.subr.bf16.mxu0 0
        %2301 = vmatpush1.bf16.msra.mxu0 0
        %2302 = vmatprep.subr.bf16.mxu0 0
        %2303 = vmatpush1.bf16.msra.mxu0 0
        %2304 = vmatprep.subr.bf16.mxu0 0
        %2305 = vmatpush1.bf16.msra.mxu0 %v2288
        %2306 = vmatprep.subr.bf16.mxu0 0
        %2307 = vmatpush1.bf16.msra.mxu0 %v2287
        %2308 = vmatprep.subr.bf16.mxu0 0
        %2309 = vmatpush1.bf16.msra.mxu0 %v2286
        %2310 = vmatprep.subr.bf16.mxu0 0
        %2311 = vmatpush1.bf16.msra.mxu0 %v2285
        %2312 = vmatprep.subr.bf16.mxu0 0
        %2313 = vmatpush2.bf16.msra.mxu0 0
        %2314 = vmatprep.subr.bf16.mxu0 0
        %2315 = vmatpush2.bf16.msra.mxu0 0
        %2316 = vmatprep.subr.bf16.mxu0 0
        %2317 = vmatpush2.bf16.msra.mxu0 0
        %2318 = vmatprep.subr.bf16.mxu0 0
        %2319 = vmatpush2.bf16.msra.mxu0 0
        %2320 = vmatprep.subr.bf16.mxu0 0
        %2321 = vmatpush2.bf16.msra.mxu0 0
        %2322 = vmatprep.subr.bf16.mxu0 0
        %2323 = vmatpush2.bf16.msra.mxu0 0
        %2324 = vmatprep.subr.bf16.mxu0 0
        %2325 = vmatpush2.bf16.msra.mxu0 0
        %2326 = vmatprep.subr.bf16.mxu0 0
        %2327 = vmatpush2.bf16.msra.mxu0 0
        %2328 = vmatprep.mubr.bf16.mxu0 0
        %2329 = vmatmul.mubr.bf16.gmra.mxu0 %v2294
        %v2330 = vpop.f32.mrf.mxu0
        %v2331 = vadd.f32 %v2097, %v2330
        %v2332 = vpop.f32.mrf.mxu0
        %v2333 = vpop.f32.mrf.mxu0
        %v2334 = vadd.f32 %v2100, %v2333
        %v2335 = vpop.f32.mrf.mxu0
        %2336 = vdwg.mxu0
        %2337 = vst.msk [vmem:[#allocation3] sm:$0xff] %vm856, %v2331
        %2338 = vst.msk [vmem:[#allocation3 + $0x8] sm:$0xff] %vm856, %v2334
        %p2339 = scmp.eq.s32.totalorder %s37, 1
        // Predicated region
        $region97: #{tpu_custom_call.1} parent=91 // pred_check
          %p2340 = pneg %p2339
        $region98: #{tpu_custom_call.1} parent=91 // pred_check_branch
          %2342 = sbr.rel (%p2340) target = $region100
        $region99: #{tpu_custom_call.1} parent=91 // pred_region
          %v2343 = vld [vmem:[%s16] sm:$0x1]
          %v2344 = vld [vmem:[%s17] sm:$0x1]
          %v2345 = vsel %vm856, %v2331, 0.0
          %2346 = vadd.xlane.f32.xlu0 %v2345
          %v2347 = vpop.xlane.xlu0 %2346
          %v2348 = vsel %vm856, %v2334, 0.0
          %2349 = vadd.xlane.f32.xlu0 %v2348
          %v2350 = vpop.xlane.xlu0 %2349
          %v2351 = vmul.f32 %v2347, %v863
          %v2352 = vmul.f32 %v2350, %v863
          %v2353 = vsub.f32 %v2331, %v2351
          %v2354 = vsub.f32 %v2334, %v2352
          %v2355 = vmul.f32 %v2353, %v2353
          %v2356 = vmul.f32 %v2354, %v2354
          %v2357 = vsel %vm856, %v2355, 0.0
          %2358 = vadd.xlane.f32.xlu0 %v2357
          %v2359 = vpop.xlane.xlu0 %2358
          %v2360 = vsel %vm856, %v2356, 0.0
          %2361 = vadd.xlane.f32.xlu0 %v2360
          %v2362 = vpop.xlane.xlu0 %2361
          %v2363 = vmul.f32 %v2359, %v863
          %v2364 = vmul.f32 %v2362, %v863
          %v2365 = vadd.f32 %v2363, 1e-05
          %v2366 = vadd.f32 %v2364, 1e-05
          %v2367 = vrsqrt.pop %v2365
          %v2368 = vrsqrt.pop %v2366
          %v2369 = vmul.f32 %v2353, %v2367
          %v2370 = vmul.f32 %v2354, %v2368
          %v2372 = vlaneseq
          %v2373 = vshrl.u32 %v2372, 7
          %v2374 = vsub.s32 0, %v2373
          %v2375 = vrot.slane %v2343, %v2374
          %v2377 = vmul.f32 %v2369, %v2375
          %v2378 = vmul.f32 %v2370, %v2375
          %v2380 = vlaneseq
          %v2381 = vshrl.u32 %v2380, 7
          %v2382 = vsub.s32 0, %v2381
          %v2383 = vrot.slane %v2344, %v2382
          %v2385 = vadd.f32 %v2377, %v2383
          %v2386 = vadd.f32 %v2378, %v2383
          %2387 = vst.msk [vmem:[%s722] sm:$0xff] %vm856, %v2385
          %s2388 = scalar_lea.vmem %s722, 8 [#allocation6]
          %2389 = vst.msk [vmem:[%s2388] sm:$0xff] %vm856, %v2386
        $region100: #{tpu_custom_call.1} parent=91 // pred_fallthru
          _
        %s2390 = sand.u32 %s490, 1
        %s2391 = scalar_lea.sflag [#allocation7], %s2390
        %s2392 = sand.u32 %s490, 1
        %s2393 = smul.addr %s2392, 16
        %s2394 = scalar_lea.vmem [#allocation6], %s2393
        // Predicated region
        $region101: #{tpu_custom_call.1} parent=91 // pred_check
          %p2395 = pneg %p500
        $region102: #{tpu_custom_call.1} parent=91 // pred_check_branch
          %2397 = sbr.rel (%p2395) target = $region104
        $region103: #{tpu_custom_call.1} parent=91 // pred_region
          %s2398 = smul.u32 2, %s36
          %s2400 = ssub.s32 256, 256
          %2401 = vsyncadd %s2391, %s2400
          %s2402 = smul.addr %s2398, 128
          %s2403 = scalar_lea.hbm %s18, %s2402
          %s2404 = sshll.u32 %s2394, 4
          %s2405 = int_to_ptr.vmem [resolvable:$true] %s2404
          %2410 = dma.vmem_to_hbm [thread:$0]  %s2405, 256, %s2403, %s2391, 128, 128, 8
        $region104: #{tpu_custom_call.1} parent=91 // pred_fallthru
          _
      $region92: #{tpu_custom_call.1} parent=5 // pred_fallthru
        _
      %p2411 = scmp.le.s32.totalorder 2, %s27
      // Predicated region
      $region105: #{tpu_custom_call.1} parent=5 // pred_check
        %p2412 = pneg %p2411
      $region106: #{tpu_custom_call.1} parent=5 // pred_check_branch
        %2414 = sbr.rel (%p2412) target = $region108
      $region107: #{tpu_custom_call.1} parent=5 // pred_region
        %s2415 = ssub.s32 %s27, 2
        // Predicated region
        $region109: #{tpu_custom_call.1} parent=107 // pred_check
          %p2416 = pneg %p506
        $region110: #{tpu_custom_call.1} parent=107 // pred_check_branch
          %2418 = sbr.rel (%p2416) target = $region112
        $region111: #{tpu_custom_call.1} parent=107 // pred_region
          %s2419 = sand.u32 %s491, 1
          %s2420 = scalar_lea.sflag [#allocation7], %s2419
          %s2421 = sand.u32 %s491, 1
          %s2422 = smul.addr %s2421, 16
          %s2423 = scalar_lea.vmem [#allocation6], %s2422
          %2424 = dma.done %s2420, 256
        $region112: #{tpu_custom_call.1} parent=107 // pred_fallthru
          _
      $region108: #{tpu_custom_call.1} parent=5 // pred_fallthru
        _
    $region6: #{tpu_custom_call.1} parent=1 // loop_footer
      %s31 = sadd.s32 1, %s27
    $region7: #{tpu_custom_call.1} parent=1 // loop_footer_branch
      %26 = sbr.rel target = $region3
    $region8: #{tpu_custom_call.1} parent=1 // loop_exit
      _
    %2425 = vsyncpa [#allocation7], 1
    %s2426 = scalar_lea.sflag [#allocation7], 1
    %2427 = vsyncpa %s2426, 1

</llo_original>
